<compile_context>
chip_gen: v7x
topology: tpu7x:2x2x1
jax: 0.10.0
libtpu: 0.0.40
codegen_flags: <defaults>
</compile_context>

<pallas_src>
import jax
import jax.numpy as jnp
import numpy as np
from jax import lax
from jax.experimental import pallas as pl
from jax.experimental.pallas import tpu as pltpu

# ---- EEGNet hyper-parameters (small shapes, consistent with the module) ----
B = 2          # batch
nCh = 4        # EEG electrodes
nTime = 128    # time samples
nCls = 4       # classes
F1, C1 = 4, 7  # temporal filters / temporal kernel size (odd -> 'same' pad)
D = 2          # depth multiplier of the depthwise conv
F2, C2 = 8, 5  # separable filters / separable kernel size
P1, P2 = 4, 4  # pooling sizes

DF1 = D * F1
PAD1 = C1 // 2
PAD2 = C2 // 2
T = nTime
T1 = T // P1
T2 = T1 // P2
K_IN = nCh * T          # 512 -> MXU-aligned contraction of the first matmul
BN_EPS = 1e-5

HI = jax.lax.Precision.HIGHEST   # host-side precompute / reference only


def _elu(v):
    # ELU(alpha=1):  x if x > 0 else exp(x) - 1   (overflow-safe on TPU)
    return jnp.where(v > 0, v, jnp.exp(jnp.minimum(v, 0.0)) - 1.0)


# ------------------------------- Pallas kernel ------------------------------
def eegnet_kernel(x_ref, w1big_ref, b2_ref, mmid_ref, b3_ref, mfc_ref,
                  fcb_ref, o_ref):
    x = x_ref[...]                                            # (mt, nCh*T) bf16

    # temporal conv (Toeplitz) x depthwise spatial conv, BN1/BN2 folded
    h2 = jnp.dot(x, w1big_ref[...],
                 preferred_element_type=jnp.float32)          # (mt, DF1*T) f32
    h2 = _elu(h2 + b2_ref[...])

    # AvgPool2d((1, P1)) done in-kernel: flat column index is o*T + t1*P1 + p,
    # so a (mt, DF1*T1, P1) reshape + sum over the size-P1 minor axis pools it.
    mt = h2.shape[0]
    h2p = h2.reshape(mt, DF1 * T1, P1).sum(axis=-1) * (1.0 / P1)
    h2p = h2p.astype(jnp.bfloat16)                            # (mt, DF1*T1)

    # separable depthwise conv x pointwise mix, BN3 folded
    h4 = jnp.dot(h2p, mmid_ref[...],
                 preferred_element_type=jnp.float32)          # (mt, F2*T1) f32
    h4 = _elu(h4 + b3_ref[...]).astype(jnp.bfloat16)

    # avgpool(P2) + flatten + Linear folded into Mfc, then LogSoftmax
    logits = jnp.dot(h4, mfc_ref[...],
                     preferred_element_type=jnp.float32) + fcb_ref[...]
    m = jnp.max(logits, axis=1, keepdims=True)
    z = logits - m
    lse = jnp.log(jnp.sum(jnp.exp(z), axis=1, keepdims=True))
    o_ref[...] = z - lse


def eegnet_forward(x_nchw, kparams, m_tile=128):
    """x_nchw: (B, 1, nCh, nTime) float32 -> (B, nCls) log-probabilities."""
    bsz = x_nchw.shape[0]
    # no 'same'-padding in the wrapper: pad rows were identically zero, so the
    # corresponding W1big rows were dropped instead (K = nCh*T = 512).
    xf = x_nchw[:, 0].reshape(bsz, K_IN).astype(jnp.bfloat16)

    if bsz <= m_tile:
        mt, bp = bsz, bsz
    else:
        mt = m_tile
        bp = -(-bsz // mt) * mt
        if bp != bsz:
            xf = jnp.pad(xf, ((0, bp - bsz), (0, 0)))

    def weight_spec(a):
        # full (2-D) weight block, constant block index -> fetched once
        return pl.BlockSpec(a.shape, lambda i: (0, 0))

    w1big, b2, mmid, b3, mfc, fcb = kparams
    out = pl.pallas_call(
        eegnet_kernel,
        out_shape=jax.ShapeDtypeStruct((bp, nCls), jnp.float32),
        grid_spec=pltpu.PrefetchScalarGridSpec(
            num_scalar_prefetch=0,
            grid=(bp // mt,),
            in_specs=[pl.BlockSpec((mt, K_IN), lambda i: (i, 0)),
                      weight_spec(w1big), weight_spec(b2),
                      weight_spec(mmid), weight_spec(b3),
                      weight_spec(mfc), weight_spec(fcb)],
            out_specs=pl.BlockSpec((mt, nCls), lambda i: (i, 0)),
        ),
        compiler_params=pltpu.CompilerParams(
            dimension_semantics=("parallel",)),
    )(xf, *kparams)
    return out[:bsz]


# ------------------------- parameter construction --------------------------
def build_params(key):
    ks = jax.random.split(key, 18)
    w1 = jax.random.normal(ks[0], (F1, 1, 1, C1), jnp.float32) * 0.3
    wdw = jax.random.normal(ks[1], (DF1, 1, nCh, 1), jnp.float32) * 0.6
    # Conv2dWithNorm(max_norm=1): renorm each depthwise filter to L2 norm <= 1
    n = jnp.sqrt(jnp.sum(wdw ** 2, axis=(1, 2, 3), keepdims=True))
    wdw = wdw * jnp.minimum(1.0, 1.0 / (n + 1e-7))
    wsep = jax.random.normal(ks[2], (DF1, 1, 1, C2), jnp.float32) * 0.3
    wpw = jax.random.normal(ks[3], (F2, DF1, 1, 1), jnp.float32) * 0.3
    fcw = jax.random.normal(ks[4], (nCls, F2 * T2), jnp.float32) * 0.3
    fcb = jax.random.normal(ks[5], (nCls,), jnp.float32) * 0.1

    def bn(kg, kb, km, kv, c):
        g = 1.0 + 0.1 * jax.random.normal(kg, (c,), jnp.float32)
        bta = 0.1 * jax.random.normal(kb, (c,), jnp.float32)
        mean = 0.1 * jax.random.normal(km, (c,), jnp.float32)
        var = 1.0 + 0.1 * jnp.abs(jax.random.normal(kv, (c,), jnp.float32))
        scale = g * jax.lax.rsqrt(var + BN_EPS)
        bias = bta - mean * scale
        return scale, bias

    s1, b1 = bn(ks[6], ks[7], ks[8], ks[9], F1)
    s2, b2 = bn(ks[10], ks[11], ks[12], ks[13], DF1)
    s3, b3 = bn(ks[14], ks[15], ks[16], ks[17], F2)
    return dict(w1=w1, wdw=wdw, wsep=wsep, wpw=wpw, fcw=fcw, fcb=fcb,
                s1=s1, b1=b1, s2=s2, b2=b2, s3=s3, b3=b3)


def kernel_params(raw):
    """Host-side fusion of the whole network into 3 bf16 matrices + biases."""
    f32 = jnp.float32
    bf16 = jnp.bfloat16
    w1k = raw['w1'][:, 0, 0, :]                               # (F1, C1)
    wdwk = raw['wdw'][:, 0, :, 0]                             # (DF1, nCh)
    wsepk = raw['wsep'][:, 0, 0, :]                           # (DF1, C2)
    wpwk = raw['wpw'][:, :, 0, 0]                             # (F2, DF1)
    s1, b1 = raw['s1'], raw['b1']
    s2, b2 = raw['s2'], raw['b2']
    s3, b3 = raw['s3'], raw['b3']

    grp = jnp.arange(DF1) // D                                # owning F1 filter

    # ---- W1big: Toeplitz temporal conv x depthwise spatial conv, BN1*BN2
    # ---- scales folded.  Rows: c*T + v (UNPADDED input time); cols: o*T + u.
    v = jnp.arange(T)[:, None]
    u = jnp.arange(T)[None, :]
    k = v - u + PAD1                                          # tap index
    valid_k = (k >= 0) & (k < C1)
    w1_per_o = w1k[grp]                                       # (DF1, C1)
    wk = jnp.where(valid_k[None],
                   w1_per_o[:, jnp.clip(k, 0, C1 - 1)], 0.0)  # (DF1, T, T)
    scale_o = s2 * s1[grp]                                    # (DF1,)
    w4 = (wdwk[:, :, None, None] * wk[:, None, :, :]
          * scale_o[:, None, None, None])                     # (DF1, nCh, T, T)
    w1big = w4.transpose(1, 2, 0, 3).reshape(nCh * T, DF1 * T)

    bias2 = b2 + s2 * b1[grp] * wdwk.sum(axis=1)              # (DF1,)
    bias2_flat = jnp.repeat(bias2, T)[None, :]                # (1, DF1*T)

    # ---- Mmid: separable depthwise band conv x pointwise mix, BN3 scale
    # ---- folded.  AvgPool(P1) is now done in-kernel, so rows are already
    # ---- pooled: o*T1 + s; cols: j*T1 + t.
    s_ = jnp.arange(T1)[:, None]
    t_ = jnp.arange(T1)[None, :]
    kk = s_ - t_ + PAD2
    valid_kk = (kk >= 0) & (kk < C2)
    msep = jnp.where(valid_kk[None],
                     wsepk[:, jnp.clip(kk, 0, C2 - 1)], 0.0)  # (DF1, T1, T1)
    wpw_s = wpwk * s3[:, None]                                # (F2, DF1)
    m4 = msep[:, :, None, :] * wpw_s.T[:, None, :, None]      # (DF1, T1, F2, T1)
    mmid = m4.reshape(DF1 * T1, F2 * T1)

    bias3_flat = jnp.repeat(b3, T1)[None, :]                  # (1, F2*T1)

    # ---- Mfc: avgpool(P2) x torch-flatten x Linear.  Rows: j*T1 + t; cols: n.
    pool2 = ((jnp.arange(T1)[:, None] // P2 ==
              jnp.arange(T2)[None, :]).astype(f32) / P2)      # (T1, T2)
    fcw3 = raw['fcw'].reshape(nCls, F2, T2)                   # (n, j, t2)
    mfc = jnp.einsum('tq,njq->jtn', pool2, fcw3,
                     precision=HI).reshape(F2 * T1, nCls)
    fcb = raw['fcb'][None, :]                                 # (1, nCls)

    # bf16 storage for the matmul operands (dots accumulate in f32); biases
    # stay f32 (tiny) and are added to the f32 accumulators.
    return (w1big.astype(bf16), bias2_flat.astype(f32),
            mmid.astype(bf16), bias3_flat.astype(f32),
            mfc.astype(bf16), fcb.astype(f32))


# ------------------------- pure-JAX reference (NCHW) ------------------------
def reference_forward(x_nchw, raw):
    dn = ('NCHW', 'OIHW', 'NCHW')
    h = lax.conv_general_dilated(x_nchw, raw['w1'], (1, 1),
                                 ((0, 0), (PAD1, PAD1)), dimension_numbers=dn,
                                 precision=HI)
    h = h * raw['s1'][None, :, None, None] + raw['b1'][None, :, None, None]
    h = lax.conv_general_dilated(h, raw['wdw'], (1, 1), ((0, 0), (0, 0)),
                                 dimension_numbers=dn, feature_group_count=F1,
                                 precision=HI)
    h = h * raw['s2'][None, :, None, None] + raw['b2'][None, :, None, None]
    h = jax.nn.elu(h)
    h = h.reshape(h.shape[0], h.shape[1], h.shape[2], T1, P1).mean(-1)
    h = lax.conv_general_dilated(h, raw['wsep'], (1, 1),
                                 ((0, 0), (PAD2, PAD2)), dimension_numbers=dn,
                                 feature_group_count=DF1, precision=HI)
    h = lax.conv_general_dilated(h, raw['wpw'], (1, 1), ((0, 0), (0, 0)),
                                 dimension_numbers=dn, precision=HI)
    h = h * raw['s3'][None, :, None, None] + raw['b3'][None, :, None, None]
    h = jax.nn.elu(h)
    h = h.reshape(h.shape[0], h.shape[1], h.shape[2], T2, P2).mean(-1)
    h = h.reshape(h.shape[0], -1)
    logits = h @ raw['fcw'].T + raw['fcb'][None, :]
    return jax.nn.log_softmax(logits, axis=1)


if __name__ == "__main__":
    key = jax.random.PRNGKey(0)
    kx, kp, kb = jax.random.split(key, 3)
    x = jax.random.normal(kx, (B, 1, nCh, nTime), jnp.float32)

    raw = build_params(kp)
    kparams = kernel_params(raw)

    out = jax.block_until_ready(eegnet_forward(x, kparams))
    ref = jax.block_until_ready(reference_forward(x, raw))

    # bf16-stored weights/activations with f32 accumulation vs a HIGHEST-
    # precision f32 reference -> allow a few percent slack on log-probs.
    np.testing.assert_allclose(np.asarray(out), np.asarray(ref),
                               rtol=5e-2, atol=5e-2)
    assert out.shape == (B, nCls)
    np.testing.assert_allclose(np.exp(np.asarray(out)).sum(axis=1),
                               np.ones(B), rtol=1e-4)

    # Larger batch exercises the ("parallel",) M-tiled grid path that
    # amortizes the fixed weight DMA (2 grid steps of 128 rows each).
    xb = jax.random.normal(kb, (256, 1, nCh, nTime), jnp.float32)
    outb = jax.block_until_ready(eegnet_forward(xb, kparams, m_tile=128))
    refb = jax.block_until_ready(reference_forward(xb, raw))
    np.testing.assert_allclose(np.asarray(outb), np.asarray(refb),
                               rtol=5e-2, atol=5e-2)

    print("KERNEL_OK")
</pallas_src>

<mosaic_0001>
module attributes {stable_mosaic.version = 11 : i64} {
  func.func @eegnet_kernel(%arg0: i32, %arg1: memref<2x512xbf16, #tpu.memory_space<vmem>>, %arg2: memref<512x1024xbf16, #tpu.memory_space<vmem>>, %arg3: memref<1x1024xf32, #tpu.memory_space<vmem>>, %arg4: memref<256x256xbf16, #tpu.memory_space<vmem>>, %arg5: memref<1x256xf32, #tpu.memory_space<vmem>>, %arg6: memref<256x4xbf16, #tpu.memory_space<vmem>>, %arg7: memref<1x4xf32, #tpu.memory_space<vmem>>, %arg8: memref<2x4xf32, #tpu.memory_space<vmem>>) attributes {dimension_semantics = [#tpu.dimension_semantics<parallel>], iteration_bounds = array<i64: 1>, scalar_prefetch = 0 : i64, scratch_operands = 0 : i64, tpu.core_type = #tpu.core_type<tc>, window_params = [{transform_indices = @transform_0, window_bounds = array<i64: 2, 512>}, {pipeline_mode = #tpu.pipeline_mode<synchronous>, transform_indices = @transform_1, window_bounds = array<i64: 512, 1024>}, {pipeline_mode = #tpu.pipeline_mode<synchronous>, transform_indices = @transform_2, window_bounds = array<i64: 1, 1024>}, {pipeline_mode = #tpu.pipeline_mode<synchronous>, transform_indices = @transform_3, window_bounds = array<i64: 256, 256>}, {pipeline_mode = #tpu.pipeline_mode<synchronous>, transform_indices = @transform_4, window_bounds = array<i64: 1, 256>}, {pipeline_mode = #tpu.pipeline_mode<synchronous>, transform_indices = @transform_5, window_bounds = array<i64: 256, 4>}, {pipeline_mode = #tpu.pipeline_mode<synchronous>, transform_indices = @transform_6, window_bounds = array<i64: 1, 4>}, {transform_indices = @transform_7, window_bounds = array<i64: 2, 4>}]} {
    %c0 = arith.constant 0 : index
    %c0_0 = arith.constant 0 : index
    %0 = vector.load %arg1[%c0, %c0_0] : memref<2x512xbf16, #tpu.memory_space<vmem>>, vector<2x512xbf16>
    %c0_1 = arith.constant 0 : index
    %c0_2 = arith.constant 0 : index
    %1 = vector.load %arg2[%c0_1, %c0_2] : memref<512x1024xbf16, #tpu.memory_space<vmem>>, vector<512x1024xbf16>
    %cst = arith.constant dense<0.000000e+00> : vector<2x1024xf32>
    %2 = tpu.matmul %0, %1, %cst {dimension_numbers = #tpu.dot_dimension_numbers<[1], [0], [0], [1], [0, 0, 1, 1], [], []>} : vector<2x512xbf16>, vector<512x1024xbf16>, vector<2x1024xf32> -> vector<2x1024xf32>
    %c0_3 = arith.constant 0 : index
    %c0_4 = arith.constant 0 : index
    %3 = vector.load %arg3[%c0_3, %c0_4] : memref<1x1024xf32, #tpu.memory_space<vmem>>, vector<1x1024xf32>
    %4 = vector.broadcast %3 : vector<1x1024xf32> to vector<2x1024xf32>
    %5 = arith.addf %2, %4 : vector<2x1024xf32>
    %cst_5 = arith.constant 0.000000e+00 : f32
    %6 = vector.broadcast %cst_5 : f32 to vector<2x1024xf32>
    %7 = arith.cmpf ogt, %5, %6 : vector<2x1024xf32>
    %cst_6 = arith.constant 0.000000e+00 : f32
    %8 = vector.broadcast %cst_6 : f32 to vector<2x1024xf32>
    %9 = arith.minimumf %5, %8 : vector<2x1024xf32>
    %10 = math.exp %9 : vector<2x1024xf32>
    %cst_7 = arith.constant 1.000000e+00 : f32
    %11 = vector.broadcast %cst_7 : f32 to vector<2x1024xf32>
    %12 = arith.subf %10, %11 : vector<2x1024xf32>
    %13 = arith.select %7, %5, %12 : vector<2x1024xi1>, vector<2x1024xf32>
    %14 = vector.shape_cast %13 : vector<2x1024xf32> to vector<2x256x4xf32>
    %cst_8 = arith.constant dense<0.000000e+00> : vector<2x256xf32>
    %15 = vector.multi_reduction <add>, %14, %cst_8 [2] : vector<2x256x4xf32> to vector<2x256xf32>
    %cst_9 = arith.constant 2.500000e-01 : f32
    %16 = vector.broadcast %cst_9 : f32 to vector<2x256xf32>
    %17 = arith.mulf %15, %16 : vector<2x256xf32>
    %18 = arith.truncf %17 : vector<2x256xf32> to vector<2x256xbf16>
    %c0_10 = arith.constant 0 : index
    %c0_11 = arith.constant 0 : index
    %19 = vector.load %arg4[%c0_10, %c0_11] : memref<256x256xbf16, #tpu.memory_space<vmem>>, vector<256x256xbf16>
    %cst_12 = arith.constant dense<0.000000e+00> : vector<2x256xf32>
    %20 = tpu.matmul %18, %19, %cst_12 {dimension_numbers = #tpu.dot_dimension_numbers<[1], [0], [0], [1], [0, 0, 1, 1], [], []>} : vector<2x256xbf16>, vector<256x256xbf16>, vector<2x256xf32> -> vector<2x256xf32>
    %c0_13 = arith.constant 0 : index
    %c0_14 = arith.constant 0 : index
    %21 = vector.load %arg5[%c0_13, %c0_14] : memref<1x256xf32, #tpu.memory_space<vmem>>, vector<1x256xf32>
    %22 = vector.broadcast %21 : vector<1x256xf32> to vector<2x256xf32>
    %23 = arith.addf %20, %22 : vector<2x256xf32>
    %cst_15 = arith.constant 0.000000e+00 : f32
    %24 = vector.broadcast %cst_15 : f32 to vector<2x256xf32>
    %25 = arith.cmpf ogt, %23, %24 : vector<2x256xf32>
    %cst_16 = arith.constant 0.000000e+00 : f32
    %26 = vector.broadcast %cst_16 : f32 to vector<2x256xf32>
    %27 = arith.minimumf %23, %26 : vector<2x256xf32>
    %28 = math.exp %27 : vector<2x256xf32>
    %cst_17 = arith.constant 1.000000e+00 : f32
    %29 = vector.broadcast %cst_17 : f32 to vector<2x256xf32>
    %30 = arith.subf %28, %29 : vector<2x256xf32>
    %31 = arith.select %25, %23, %30 : vector<2x256xi1>, vector<2x256xf32>
    %32 = arith.truncf %31 : vector<2x256xf32> to vector<2x256xbf16>
    %c0_18 = arith.constant 0 : index
    %c0_19 = arith.constant 0 : index
    %33 = vector.load %arg6[%c0_18, %c0_19] : memref<256x4xbf16, #tpu.memory_space<vmem>>, vector<256x4xbf16>
    %cst_20 = arith.constant dense<0.000000e+00> : vector<2x4xf32>
    %34 = tpu.matmul %32, %33, %cst_20 {dimension_numbers = #tpu.dot_dimension_numbers<[1], [0], [0], [1], [0, 0, 1, 1], [], []>} : vector<2x256xbf16>, vector<256x4xbf16>, vector<2x4xf32> -> vector<2x4xf32>
    %c0_21 = arith.constant 0 : index
    %c0_22 = arith.constant 0 : index
    %35 = vector.load %arg7[%c0_21, %c0_22] : memref<1x4xf32, #tpu.memory_space<vmem>>, vector<1x4xf32>
    %36 = vector.broadcast %35 : vector<1x4xf32> to vector<2x4xf32>
    %37 = arith.addf %34, %36 : vector<2x4xf32>
    %cst_23 = arith.constant dense<0xFF800000> : vector<2xf32>
    %38 = vector.multi_reduction <maximumf>, %37, %cst_23 [1] : vector<2x4xf32> to vector<2xf32>
    %39 = vector.shape_cast %38 : vector<2xf32> to vector<2x1xf32>
    %40 = vector.broadcast %39 : vector<2x1xf32> to vector<2x4xf32>
    %41 = arith.subf %37, %40 : vector<2x4xf32>
    %42 = math.exp %41 : vector<2x4xf32>
    %cst_24 = arith.constant dense<0.000000e+00> : vector<2xf32>
    %43 = vector.multi_reduction <add>, %42, %cst_24 [1] : vector<2x4xf32> to vector<2xf32>
    %44 = vector.shape_cast %43 : vector<2xf32> to vector<2x1xf32>
    %45 = math.log %44 : vector<2x1xf32>
    %46 = vector.broadcast %45 : vector<2x1xf32> to vector<2x4xf32>
    %47 = arith.subf %41, %46 : vector<2x4xf32>
    %c0_25 = arith.constant 0 : index
    %c0_26 = arith.constant 0 : index
    %48 = vector.load %arg8[%c0_25, %c0_26] : memref<2x4xf32, #tpu.memory_space<vmem>>, vector<2x4xf32>
    tpu.vector_store %arg8[%c0_25, %c0_26], %47 {strides = array<i32>} : memref<2x4xf32, #tpu.memory_space<vmem>>, vector<2x4xf32>,
    return
  }
  func.func @transform_0(%arg0: i32) -> (i32, i32) {
    %c0_i32 = arith.constant 0 : i32
    %c0_i32_0 = arith.constant 0 : i32
    return %arg0, %c0_i32 : i32, i32
  }
  func.func @transform_1(%arg0: i32) -> (i32, i32) {
    %c0_i32 = arith.constant 0 : i32
    %c0_i32_0 = arith.constant 0 : i32
    %c0_i32_1 = arith.constant 0 : i32
    return %c0_i32, %c0_i32_0 : i32, i32
  }
  func.func @transform_2(%arg0: i32) -> (i32, i32) {
    %c0_i32 = arith.constant 0 : i32
    %c0_i32_0 = arith.constant 0 : i32
    %c0_i32_1 = arith.constant 0 : i32
    return %c0_i32, %c0_i32_0 : i32, i32
  }
  func.func @transform_3(%arg0: i32) -> (i32, i32) {
    %c0_i32 = arith.constant 0 : i32
    %c0_i32_0 = arith.constant 0 : i32
    %c0_i32_1 = arith.constant 0 : i32
    return %c0_i32, %c0_i32_0 : i32, i32
  }
  func.func @transform_4(%arg0: i32) -> (i32, i32) {
    %c0_i32 = arith.constant 0 : i32
    %c0_i32_0 = arith.constant 0 : i32
    %c0_i32_1 = arith.constant 0 : i32
    return %c0_i32, %c0_i32_0 : i32, i32
  }
  func.func @transform_5(%arg0: i32) -> (i32, i32) {
    %c0_i32 = arith.constant 0 : i32
    %c0_i32_0 = arith.constant 0 : i32
    %c0_i32_1 = arith.constant 0 : i32
    return %c0_i32, %c0_i32_0 : i32, i32
  }
  func.func @transform_6(%arg0: i32) -> (i32, i32) {
    %c0_i32 = arith.constant 0 : i32
    %c0_i32_0 = arith.constant 0 : i32
    %c0_i32_1 = arith.constant 0 : i32
    return %c0_i32, %c0_i32_0 : i32, i32
  }
  func.func @transform_7(%arg0: i32) -> (i32, i32) {
    %c0_i32 = arith.constant 0 : i32
    %c0_i32_0 = arith.constant 0 : i32
    return %arg0, %c0_i32 : i32, i32
  }
}

</mosaic_0001>

<llo_original>
// kernel: tpu_custom_call.1
$region0: #{tpu_custom_call.1}
  #allocation0 [shape = 'u32[]', space=smem, size = 0x4, offset = 0x4, fixed_abs, tag = 'smem constant byte address 0x4 - core index']
  #allocation1 [shape = 'u32[144,128]{1,0:T(1,128)}', space=vmem, size = 0x12000, scoped, tag = 'internal scratch']
  %s0 = inlined_call_operand.vmem [shape: bf16[2,512], index: 0, kind: input, shape index: {}]
  %s1 = inlined_call_operand.hbm [shape: bf16[512,1024], index: 1, kind: input, shape index: {}]
  %s2 = inlined_call_operand.vmem [shape: f32[1,1024], index: 2, kind: input, shape index: {}]
  %s3 = inlined_call_operand.hbm [shape: bf16[256,256], index: 3, kind: input, shape index: {}]
  %s4 = inlined_call_operand.vmem [shape: f32[1,256], index: 4, kind: input, shape index: {}]
  %s5 = inlined_call_operand.vmem [shape: bf16[256,4], index: 5, kind: input, shape index: {}]
  %s6 = inlined_call_operand.vmem [shape: f32[1,4], index: 6, kind: input, shape index: {}]
  %s7 = inlined_call_operand.hbm [shape: f32[2,4], index: 7, kind: output, shape index: {}]
  %s8 = sld [smem:[#allocation0]]
  $region46: #{tpu_custom_call.1} parent=0
    _
  %s10 = ssub.s32 1, %s8
  %s11 = scalar_select 0, %s10, %s8
  $region1: #{tpu_custom_call.1} parent=0
    #allocation2 [shape = 'u8[1048576]{0}', space=vmem, size = 0x100000, scoped, tag = 'input window, operand 1, single buffered']
    #allocation3 [shape = 's32[1]{0}', space=sflag, size = 0x4, scoped, tag = 'scoped memory for tpu_custom_call.1']
    #allocation4 [shape = 's32[1]{0}', space=sflag, size = 0x4, scoped, tag = 'scoped memory for tpu_custom_call.1']
    #allocation5 [shape = 'u8[131072]{0}', space=vmem, size = 0x20000, scoped, tag = 'input window, operand 3, single buffered']
    #allocation6 [shape = 's32[1]{0}', space=sflag, size = 0x4, scoped, tag = 'scoped memory for tpu_custom_call.1']
    #allocation7 [shape = 'u8[1024]{0}', space=vmem, size = 0x400, scoped, tag = 'output window, operand 0, single buffered']
    %12 = vsyncpa [#allocation3], 0
    %13 = vsyncpa [#allocation6], 0
    %14 = vsyncpa [#allocation4], 0
    // Predicated region
    $region2: #{tpu_custom_call.1} parent=1 // pred_check
      _
    $region3: #{tpu_custom_call.1} parent=1 // pred_check_branch
      %16 = sbr.rel (0) target = $region5
    $region4: #{tpu_custom_call.1} parent=1 // pred_region
      _
    $region5: #{tpu_custom_call.1} parent=1 // pred_fallthru
      _
    // Predicated region
    $region6: #{tpu_custom_call.1} parent=1 // pred_check
      _
    $region7: #{tpu_custom_call.1} parent=1 // pred_check_branch
      %18 = sbr.rel (0) target = $region9
    $region8: #{tpu_custom_call.1} parent=1 // pred_region
      %s20 = ssub.s32 32768, 32768
      %21 = vsyncadd [#allocation3], %s20
      %s22 = sshll.u32 [#allocation2], 4
      %s23 = int_to_ptr.vmem [resolvable:$true] %s22
      %28 = dma.hbm_to_vmem [thread:$0]  %s1, 32768, %s23, [#allocation3], 512, 512, 32
    $region9: #{tpu_custom_call.1} parent=1 // pred_fallthru
      _
    // Predicated region
    $region10: #{tpu_custom_call.1} parent=1 // pred_check
      _
    $region11: #{tpu_custom_call.1} parent=1 // pred_check_branch
      %30 = sbr.rel (0) target = $region13
    $region12: #{tpu_custom_call.1} parent=1 // pred_region
      _
    $region13: #{tpu_custom_call.1} parent=1 // pred_fallthru
      _
    // Predicated region
    $region14: #{tpu_custom_call.1} parent=1 // pred_check
      _
    $region15: #{tpu_custom_call.1} parent=1 // pred_check_branch
      %32 = sbr.rel (0) target = $region17
    $region16: #{tpu_custom_call.1} parent=1 // pred_region
      %s34 = ssub.s32 4096, 4096
      %35 = vsyncadd [#allocation6], %s34
      %s36 = sshll.u32 [#allocation5], 4
      %s37 = int_to_ptr.vmem [resolvable:$true] %s36
      %42 = dma.hbm_to_vmem [thread:$0]  %s3, 4096, %s37, [#allocation6], 128, 128, 8
    $region17: #{tpu_custom_call.1} parent=1 // pred_fallthru
      _
    // Predicated region
    $region18: #{tpu_custom_call.1} parent=1 // pred_check
      _
    $region19: #{tpu_custom_call.1} parent=1 // pred_check_branch
      %44 = sbr.rel (0) target = $region21
    $region20: #{tpu_custom_call.1} parent=1 // pred_region
      _
    $region21: #{tpu_custom_call.1} parent=1 // pred_fallthru
      _
    // Predicated region
    $region22: #{tpu_custom_call.1} parent=1 // pred_check
      _
    $region23: #{tpu_custom_call.1} parent=1 // pred_check_branch
      %46 = sbr.rel (0) target = $region25
    $region24: #{tpu_custom_call.1} parent=1 // pred_region
      _
    $region25: #{tpu_custom_call.1} parent=1 // pred_fallthru
      _
    // Predicated region
    $region26: #{tpu_custom_call.1} parent=1 // pred_check
      _
    $region27: #{tpu_custom_call.1} parent=1 // pred_check_branch
      %48 = sbr.rel (0) target = $region29
    $region28: #{tpu_custom_call.1} parent=1 // pred_region
      _
    $region29: #{tpu_custom_call.1} parent=1 // pred_fallthru
      _
    // Predicated region
    $region30: #{tpu_custom_call.1} parent=1 // pred_check
      _
    $region31: #{tpu_custom_call.1} parent=1 // pred_check_branch
      %50 = sbr.rel (0) target = $region33
    $region32: #{tpu_custom_call.1} parent=1 // pred_region
      %51 = dma.done [#allocation3], 32768
    $region33: #{tpu_custom_call.1} parent=1 // pred_fallthru
      _
    // Predicated region
    $region34: #{tpu_custom_call.1} parent=1 // pred_check
      _
    $region35: #{tpu_custom_call.1} parent=1 // pred_check_branch
      %53 = sbr.rel (0) target = $region37
    $region36: #{tpu_custom_call.1} parent=1 // pred_region
      %54 = dma.done [#allocation6], 4096
    $region37: #{tpu_custom_call.1} parent=1 // pred_fallthru
      _
    %v56 = vld [vmem:[%s0] sm:$0xf]
    %v57 = vld [vmem:[#allocation2] sm:$0xff]
    %v58 = vld [vmem:[#allocation2 + $0x8] sm:$0xff]
    %v59 = vld [vmem:[#allocation2 + $0x10] sm:$0xff]
    %v60 = vld [vmem:[#allocation2 + $0x18] sm:$0xff]
    %v61 = vld [vmem:[#allocation2 + $0x20] sm:$0xff]
    %v62 = vld [vmem:[#allocation2 + $0x28] sm:$0xff]
    %v63 = vld [vmem:[#allocation2 + $0x30] sm:$0xff]
    %v64 = vld [vmem:[#allocation2 + $0x38] sm:$0xff]
    %v65 = vld [vmem:[#allocation2 + $0x40] sm:$0xff]
    %v66 = vld [vmem:[#allocation2 + $0x48] sm:$0xff]
    %v67 = vld [vmem:[#allocation2 + $0x50] sm:$0xff]
    %v68 = vld [vmem:[#allocation2 + $0x58] sm:$0xff]
    %v69 = vld [vmem:[#allocation2 + $0x60] sm:$0xff]
    %v70 = vld [vmem:[#allocation2 + $0x68] sm:$0xff]
    %v71 = vld [vmem:[#allocation2 + $0x70] sm:$0xff]
    %v72 = vld [vmem:[#allocation2 + $0x78] sm:$0xff]
    %v73 = vld [vmem:[#allocation2 + $0x80] sm:$0xff]
    %v74 = vld [vmem:[#allocation2 + $0x88] sm:$0xff]
    %v75 = vld [vmem:[#allocation2 + $0x90] sm:$0xff]
    %v76 = vld [vmem:[#allocation2 + $0x98] sm:$0xff]
    %v77 = vld [vmem:[#allocation2 + $0xa0] sm:$0xff]
    %v78 = vld [vmem:[#allocation2 + $0xa8] sm:$0xff]
    %v79 = vld [vmem:[#allocation2 + $0xb0] sm:$0xff]
    %v80 = vld [vmem:[#allocation2 + $0xb8] sm:$0xff]
    %v81 = vld [vmem:[#allocation2 + $0xc0] sm:$0xff]
    %v82 = vld [vmem:[#allocation2 + $0xc8] sm:$0xff]
    %v83 = vld [vmem:[#allocation2 + $0xd0] sm:$0xff]
    %v84 = vld [vmem:[#allocation2 + $0xd8] sm:$0xff]
    %v85 = vld [vmem:[#allocation2 + $0xe0] sm:$0xff]
    %v86 = vld [vmem:[#allocation2 + $0xe8] sm:$0xff]
    %v87 = vld [vmem:[#allocation2 + $0xf0] sm:$0xff]
    %v88 = vld [vmem:[#allocation2 + $0xf8] sm:$0xff]
    %v89 = vld [vmem:[#allocation2 + $0x100] sm:$0xff]
    %v90 = vld [vmem:[#allocation2 + $0x108] sm:$0xff]
    %v91 = vld [vmem:[#allocation2 + $0x110] sm:$0xff]
    %v92 = vld [vmem:[#allocation2 + $0x118] sm:$0xff]
    %v93 = vld [vmem:[#allocation2 + $0x120] sm:$0xff]
    %v94 = vld [vmem:[#allocation2 + $0x128] sm:$0xff]
    %v95 = vld [vmem:[#allocation2 + $0x130] sm:$0xff]
    %v96 = vld [vmem:[#allocation2 + $0x138] sm:$0xff]
    %v97 = vld [vmem:[#allocation2 + $0x140] sm:$0xff]
    %v98 = vld [vmem:[#allocation2 + $0x148] sm:$0xff]
    %v99 = vld [vmem:[#allocation2 + $0x150] sm:$0xff]
    %v100 = vld [vmem:[#allocation2 + $0x158] sm:$0xff]
    %v101 = vld [vmem:[#allocation2 + $0x160] sm:$0xff]
    %v102 = vld [vmem:[#allocation2 + $0x168] sm:$0xff]
    %v103 = vld [vmem:[#allocation2 + $0x170] sm:$0xff]
    %v104 = vld [vmem:[#allocation2 + $0x178] sm:$0xff]
    %v105 = vld [vmem:[#allocation2 + $0x180] sm:$0xff]
    %v106 = vld [vmem:[#allocation2 + $0x188] sm:$0xff]
    %v107 = vld [vmem:[#allocation2 + $0x190] sm:$0xff]
    %v108 = vld [vmem:[#allocation2 + $0x198] sm:$0xff]
    %v109 = vld [vmem:[#allocation2 + $0x1a0] sm:$0xff]
    %v110 = vld [vmem:[#allocation2 + $0x1a8] sm:$0xff]
    %v111 = vld [vmem:[#allocation2 + $0x1b0] sm:$0xff]
    %v112 = vld [vmem:[#allocation2 + $0x1b8] sm:$0xff]
    %v113 = vld [vmem:[#allocation2 + $0x1c0] sm:$0xff]
    %v114 = vld [vmem:[#allocation2 + $0x1c8] sm:$0xff]
    %v115 = vld [vmem:[#allocation2 + $0x1d0] sm:$0xff]
    %v116 = vld [vmem:[#allocation2 + $0x1d8] sm:$0xff]
    %v117 = vld [vmem:[#allocation2 + $0x1e0] sm:$0xff]
    %v118 = vld [vmem:[#allocation2 + $0x1e8] sm:$0xff]
    %v119 = vld [vmem:[#allocation2 + $0x1f0] sm:$0xff]
    %v120 = vld [vmem:[#allocation2 + $0x1f8] sm:$0xff]
    %v121 = vld [vmem:[#allocation2 + $0x200] sm:$0xff]
    %v122 = vld [vmem:[#allocation2 + $0x208] sm:$0xff]
    %v123 = vld [vmem:[#allocation2 + $0x210] sm:$0xff]
    %v124 = vld [vmem:[#allocation2 + $0x218] sm:$0xff]
    %v125 = vld [vmem:[#allocation2 + $0x220] sm:$0xff]
    %v126 = vld [vmem:[#allocation2 + $0x228] sm:$0xff]
    %v127 = vld [vmem:[#allocation2 + $0x230] sm:$0xff]
    %v128 = vld [vmem:[#allocation2 + $0x238] sm:$0xff]
    %v129 = vld [vmem:[#allocation2 + $0x240] sm:$0xff]
    %v130 = vld [vmem:[#allocation2 + $0x248] sm:$0xff]
    %v131 = vld [vmem:[#allocation2 + $0x250] sm:$0xff]
    %v132 = vld [vmem:[#allocation2 + $0x258] sm:$0xff]
    %v133 = vld [vmem:[#allocation2 + $0x260] sm:$0xff]
    %v134 = vld [vmem:[#allocation2 + $0x268] sm:$0xff]
    %v135 = vld [vmem:[#allocation2 + $0x270] sm:$0xff]
    %v136 = vld [vmem:[#allocation2 + $0x278] sm:$0xff]
    %v137 = vld [vmem:[#allocation2 + $0x280] sm:$0xff]
    %v138 = vld [vmem:[#allocation2 + $0x288] sm:$0xff]
    %v139 = vld [vmem:[#allocation2 + $0x290] sm:$0xff]
    %v140 = vld [vmem:[#allocation2 + $0x298] sm:$0xff]
    %v141 = vld [vmem:[#allocation2 + $0x2a0] sm:$0xff]
    %v142 = vld [vmem:[#allocation2 + $0x2a8] sm:$0xff]
    %v143 = vld [vmem:[#allocation2 + $0x2b0] sm:$0xff]
    %v144 = vld [vmem:[#allocation2 + $0x2b8] sm:$0xff]
    %v145 = vld [vmem:[#allocation2 + $0x2c0] sm:$0xff]
    %v146 = vld [vmem:[#allocation2 + $0x2c8] sm:$0xff]
    %v147 = vld [vmem:[#allocation2 + $0x2d0] sm:$0xff]
    %v148 = vld [vmem:[#allocation2 + $0x2d8] sm:$0xff]
    %v149 = vld [vmem:[#allocation2 + $0x2e0] sm:$0xff]
    %v150 = vld [vmem:[#allocation2 + $0x2e8] sm:$0xff]
    %v151 = vld [vmem:[#allocation2 + $0x2f0] sm:$0xff]
    %v152 = vld [vmem:[#allocation2 + $0x2f8] sm:$0xff]
    %v153 = vld [vmem:[#allocation2 + $0x300] sm:$0xff]
    %v154 = vld [vmem:[#allocation2 + $0x308] sm:$0xff]
    %v155 = vld [vmem:[#allocation2 + $0x310] sm:$0xff]
    %v156 = vld [vmem:[#allocation2 + $0x318] sm:$0xff]
    %v157 = vld [vmem:[#allocation2 + $0x320] sm:$0xff]
    %v158 = vld [vmem:[#allocation2 + $0x328] sm:$0xff]
    %v159 = vld [vmem:[#allocation2 + $0x330] sm:$0xff]
    %v160 = vld [vmem:[#allocation2 + $0x338] sm:$0xff]
    %v161 = vld [vmem:[#allocation2 + $0x340] sm:$0xff]
    %v162 = vld [vmem:[#allocation2 + $0x348] sm:$0xff]
    %v163 = vld [vmem:[#allocation2 + $0x350] sm:$0xff]
    %v164 = vld [vmem:[#allocation2 + $0x358] sm:$0xff]
    %v165 = vld [vmem:[#allocation2 + $0x360] sm:$0xff]
    %v166 = vld [vmem:[#allocation2 + $0x368] sm:$0xff]
    %v167 = vld [vmem:[#allocation2 + $0x370] sm:$0xff]
    %v168 = vld [vmem:[#allocation2 + $0x378] sm:$0xff]
    %v169 = vld [vmem:[#allocation2 + $0x380] sm:$0xff]
    %v170 = vld [vmem:[#allocation2 + $0x388] sm:$0xff]
    %v171 = vld [vmem:[#allocation2 + $0x390] sm:$0xff]
    %v172 = vld [vmem:[#allocation2 + $0x398] sm:$0xff]
    %v173 = vld [vmem:[#allocation2 + $0x3a0] sm:$0xff]
    %v174 = vld [vmem:[#allocation2 + $0x3a8] sm:$0xff]
    %v175 = vld [vmem:[#allocation2 + $0x3b0] sm:$0xff]
    %v176 = vld [vmem:[#allocation2 + $0x3b8] sm:$0xff]
    %v177 = vld [vmem:[#allocation2 + $0x3c0] sm:$0xff]
    %v178 = vld [vmem:[#allocation2 + $0x3c8] sm:$0xff]
    %v179 = vld [vmem:[#allocation2 + $0x3d0] sm:$0xff]
    %v180 = vld [vmem:[#allocation2 + $0x3d8] sm:$0xff]
    %v181 = vld [vmem:[#allocation2 + $0x3e0] sm:$0xff]
    %v182 = vld [vmem:[#allocation2 + $0x3e8] sm:$0xff]
    %v183 = vld [vmem:[#allocation2 + $0x3f0] sm:$0xff]
    %v184 = vld [vmem:[#allocation2 + $0x3f8] sm:$0xff]
    %v185 = vld [vmem:[#allocation2 + $0x400] sm:$0xff]
    %v186 = vld [vmem:[#allocation2 + $0x408] sm:$0xff]
    %v187 = vld [vmem:[#allocation2 + $0x410] sm:$0xff]
    %v188 = vld [vmem:[#allocation2 + $0x418] sm:$0xff]
    %v189 = vld [vmem:[#allocation2 + $0x420] sm:$0xff]
    %v190 = vld [vmem:[#allocation2 + $0x428] sm:$0xff]
    %v191 = vld [vmem:[#allocation2 + $0x430] sm:$0xff]
    %v192 = vld [vmem:[#allocation2 + $0x438] sm:$0xff]
    %v193 = vld [vmem:[#allocation2 + $0x440] sm:$0xff]
    %v194 = vld [vmem:[#allocation2 + $0x448] sm:$0xff]
    %v195 = vld [vmem:[#allocation2 + $0x450] sm:$0xff]
    %v196 = vld [vmem:[#allocation2 + $0x458] sm:$0xff]
    %v197 = vld [vmem:[#allocation2 + $0x460] sm:$0xff]
    %v198 = vld [vmem:[#allocation2 + $0x468] sm:$0xff]
    %v199 = vld [vmem:[#allocation2 + $0x470] sm:$0xff]
    %v200 = vld [vmem:[#allocation2 + $0x478] sm:$0xff]
    %v201 = vld [vmem:[#allocation2 + $0x480] sm:$0xff]
    %v202 = vld [vmem:[#allocation2 + $0x488] sm:$0xff]
    %v203 = vld [vmem:[#allocation2 + $0x490] sm:$0xff]
    %v204 = vld [vmem:[#allocation2 + $0x498] sm:$0xff]
    %v205 = vld [vmem:[#allocation2 + $0x4a0] sm:$0xff]
    %v206 = vld [vmem:[#allocation2 + $0x4a8] sm:$0xff]
    %v207 = vld [vmem:[#allocation2 + $0x4b0] sm:$0xff]
    %v208 = vld [vmem:[#allocation2 + $0x4b8] sm:$0xff]
    %v209 = vld [vmem:[#allocation2 + $0x4c0] sm:$0xff]
    %v210 = vld [vmem:[#allocation2 + $0x4c8] sm:$0xff]
    %v211 = vld [vmem:[#allocation2 + $0x4d0] sm:$0xff]
    %v212 = vld [vmem:[#allocation2 + $0x4d8] sm:$0xff]
    %v213 = vld [vmem:[#allocation2 + $0x4e0] sm:$0xff]
    %v214 = vld [vmem:[#allocation2 + $0x4e8] sm:$0xff]
    %v215 = vld [vmem:[#allocation2 + $0x4f0] sm:$0xff]
    %v216 = vld [vmem:[#allocation2 + $0x4f8] sm:$0xff]
    %v217 = vld [vmem:[#allocation2 + $0x500] sm:$0xff]
    %v218 = vld [vmem:[#allocation2 + $0x508] sm:$0xff]
    %v219 = vld [vmem:[#allocation2 + $0x510] sm:$0xff]
    %v220 = vld [vmem:[#allocation2 + $0x518] sm:$0xff]
    %v221 = vld [vmem:[#allocation2 + $0x520] sm:$0xff]
    %v222 = vld [vmem:[#allocation2 + $0x528] sm:$0xff]
    %v223 = vld [vmem:[#allocation2 + $0x530] sm:$0xff]
    %v224 = vld [vmem:[#allocation2 + $0x538] sm:$0xff]
    %v225 = vld [vmem:[#allocation2 + $0x540] sm:$0xff]
    %v226 = vld [vmem:[#allocation2 + $0x548] sm:$0xff]
    %v227 = vld [vmem:[#allocation2 + $0x550] sm:$0xff]
    %v228 = vld [vmem:[#allocation2 + $0x558] sm:$0xff]
    %v229 = vld [vmem:[#allocation2 + $0x560] sm:$0xff]
    %v230 = vld [vmem:[#allocation2 + $0x568] sm:$0xff]
    %v231 = vld [vmem:[#allocation2 + $0x570] sm:$0xff]
    %v232 = vld [vmem:[#allocation2 + $0x578] sm:$0xff]
    %v233 = vld [vmem:[#allocation2 + $0x580] sm:$0xff]
    %v234 = vld [vmem:[#allocation2 + $0x588] sm:$0xff]
    %v235 = vld [vmem:[#allocation2 + $0x590] sm:$0xff]
    %v236 = vld [vmem:[#allocation2 + $0x598] sm:$0xff]
    %v237 = vld [vmem:[#allocation2 + $0x5a0] sm:$0xff]
    %v238 = vld [vmem:[#allocation2 + $0x5a8] sm:$0xff]
    %v239 = vld [vmem:[#allocation2 + $0x5b0] sm:$0xff]
    %v240 = vld [vmem:[#allocation2 + $0x5b8] sm:$0xff]
    %v241 = vld [vmem:[#allocation2 + $0x5c0] sm:$0xff]
    %v242 = vld [vmem:[#allocation2 + $0x5c8] sm:$0xff]
    %v243 = vld [vmem:[#allocation2 + $0x5d0] sm:$0xff]
    %v244 = vld [vmem:[#allocation2 + $0x5d8] sm:$0xff]
    %v245 = vld [vmem:[#allocation2 + $0x5e0] sm:$0xff]
    %v246 = vld [vmem:[#allocation2 + $0x5e8] sm:$0xff]
    %v247 = vld [vmem:[#allocation2 + $0x5f0] sm:$0xff]
    %v248 = vld [vmem:[#allocation2 + $0x5f8] sm:$0xff]
    %v249 = vld [vmem:[#allocation2 + $0x600] sm:$0xff]
    %v250 = vld [vmem:[#allocation2 + $0x608] sm:$0xff]
    %v251 = vld [vmem:[#allocation2 + $0x610] sm:$0xff]
    %v252 = vld [vmem:[#allocation2 + $0x618] sm:$0xff]
    %v253 = vld [vmem:[#allocation2 + $0x620] sm:$0xff]
    %v254 = vld [vmem:[#allocation2 + $0x628] sm:$0xff]
    %v255 = vld [vmem:[#allocation2 + $0x630] sm:$0xff]
    %v256 = vld [vmem:[#allocation2 + $0x638] sm:$0xff]
    %v257 = vld [vmem:[#allocation2 + $0x640] sm:$0xff]
    %v258 = vld [vmem:[#allocation2 + $0x648] sm:$0xff]
    %v259 = vld [vmem:[#allocation2 + $0x650] sm:$0xff]
    %v260 = vld [vmem:[#allocation2 + $0x658] sm:$0xff]
    %v261 = vld [vmem:[#allocation2 + $0x660] sm:$0xff]
    %v262 = vld [vmem:[#allocation2 + $0x668] sm:$0xff]
    %v263 = vld [vmem:[#allocation2 + $0x670] sm:$0xff]
    %v264 = vld [vmem:[#allocation2 + $0x678] sm:$0xff]
    %v265 = vld [vmem:[#allocation2 + $0x680] sm:$0xff]
    %v266 = vld [vmem:[#allocation2 + $0x688] sm:$0xff]
    %v267 = vld [vmem:[#allocation2 + $0x690] sm:$0xff]
    %v268 = vld [vmem:[#allocation2 + $0x698] sm:$0xff]
    %v269 = vld [vmem:[#allocation2 + $0x6a0] sm:$0xff]
    %v270 = vld [vmem:[#allocation2 + $0x6a8] sm:$0xff]
    %v271 = vld [vmem:[#allocation2 + $0x6b0] sm:$0xff]
    %v272 = vld [vmem:[#allocation2 + $0x6b8] sm:$0xff]
    %v273 = vld [vmem:[#allocation2 + $0x6c0] sm:$0xff]
    %v274 = vld [vmem:[#allocation2 + $0x6c8] sm:$0xff]
    %v275 = vld [vmem:[#allocation2 + $0x6d0] sm:$0xff]
    %v276 = vld [vmem:[#allocation2 + $0x6d8] sm:$0xff]
    %v277 = vld [vmem:[#allocation2 + $0x6e0] sm:$0xff]
    %v278 = vld [vmem:[#allocation2 + $0x6e8] sm:$0xff]
    %v279 = vld [vmem:[#allocation2 + $0x6f0] sm:$0xff]
    %v280 = vld [vmem:[#allocation2 + $0x6f8] sm:$0xff]
    %v281 = vld [vmem:[#allocation2 + $0x700] sm:$0xff]
    %v282 = vld [vmem:[#allocation2 + $0x708] sm:$0xff]
    %v283 = vld [vmem:[#allocation2 + $0x710] sm:$0xff]
    %v284 = vld [vmem:[#allocation2 + $0x718] sm:$0xff]
    %v285 = vld [vmem:[#allocation2 + $0x720] sm:$0xff]
    %v286 = vld [vmem:[#allocation2 + $0x728] sm:$0xff]
    %v287 = vld [vmem:[#allocation2 + $0x730] sm:$0xff]
    %v288 = vld [vmem:[#allocation2 + $0x738] sm:$0xff]
    %v289 = vld [vmem:[#allocation2 + $0x740] sm:$0xff]
    %v290 = vld [vmem:[#allocation2 + $0x748] sm:$0xff]
    %v291 = vld [vmem:[#allocation2 + $0x750] sm:$0xff]
    %v292 = vld [vmem:[#allocation2 + $0x758] sm:$0xff]
    %v293 = vld [vmem:[#allocation2 + $0x760] sm:$0xff]
    %v294 = vld [vmem:[#allocation2 + $0x768] sm:$0xff]
    %v295 = vld [vmem:[#allocation2 + $0x770] sm:$0xff]
    %v296 = vld [vmem:[#allocation2 + $0x778] sm:$0xff]
    %v297 = vld [vmem:[#allocation2 + $0x780] sm:$0xff]
    %v298 = vld [vmem:[#allocation2 + $0x788] sm:$0xff]
    %v299 = vld [vmem:[#allocation2 + $0x790] sm:$0xff]
    %v300 = vld [vmem:[#allocation2 + $0x798] sm:$0xff]
    %v301 = vld [vmem:[#allocation2 + $0x7a0] sm:$0xff]
    %v302 = vld [vmem:[#allocation2 + $0x7a8] sm:$0xff]
    %v303 = vld [vmem:[#allocation2 + $0x7b0] sm:$0xff]
    %v304 = vld [vmem:[#allocation2 + $0x7b8] sm:$0xff]
    %v305 = vld [vmem:[#allocation2 + $0x7c0] sm:$0xff]
    %v306 = vld [vmem:[#allocation2 + $0x7c8] sm:$0xff]
    %v307 = vld [vmem:[#allocation2 + $0x7d0] sm:$0xff]
    %v308 = vld [vmem:[#allocation2 + $0x7d8] sm:$0xff]
    %v309 = vld [vmem:[#allocation2 + $0x7e0] sm:$0xff]
    %v310 = vld [vmem:[#allocation2 + $0x7e8] sm:$0xff]
    %v311 = vld [vmem:[#allocation2 + $0x7f0] sm:$0xff]
    %v312 = vld [vmem:[#allocation2 + $0x7f8] sm:$0xff]
    %v313 = vld [vmem:[%s2] sm:$0xff]
    %v315 = vlaneseq
    %v316 = vshrl.u32 %v315, 7
    %v317 = vsub.s32 0, %v316
    %v318 = vrot.slane %v313, %v317
    %v319 = vlaneseq
    %v320 = vshrl.u32 %v319, 7
    %v321 = vsub.s32 1, %v320
    %v322 = vrot.slane %v313, %v321
    %v323 = vlaneseq
    %v324 = vshrl.u32 %v323, 7
    %v325 = vsub.s32 2, %v324
    %v326 = vrot.slane %v313, %v325
    %v327 = vlaneseq
    %v328 = vshrl.u32 %v327, 7
    %v329 = vsub.s32 3, %v328
    %v330 = vrot.slane %v313, %v329
    %v331 = vlaneseq
    %v332 = vshrl.u32 %v331, 7
    %v333 = vsub.s32 4, %v332
    %v334 = vrot.slane %v313, %v333
    %v335 = vlaneseq
    %v336 = vshrl.u32 %v335, 7
    %v337 = vsub.s32 5, %v336
    %v338 = vrot.slane %v313, %v337
    %v339 = vlaneseq
    %v340 = vshrl.u32 %v339, 7
    %v341 = vsub.s32 6, %v340
    %v342 = vrot.slane %v313, %v341
    %v343 = vlaneseq
    %v344 = vshrl.u32 %v343, 7
    %v345 = vsub.s32 7, %v344
    %v346 = vrot.slane %v313, %v345
    %v357 = vunpack.c.l.s4 1966171168
    %v358 = vunpack.c.0.s8 %v357
    %v359 = vlaneseq
    %v360 = vshrl.u32 %v359, 7
    %v361 = vsub.s32 %v358, %v360
    %v362 = vrot.slane %v56, %v361
    %v363 = vcombine.high %v362, %v362
    %v365 = vunpack.c.l.s4 1966171168
    %v366 = vunpack.c.0.s8 %v365
    %v367 = vlaneseq
    %v368 = vshrl.u32 %v367, 7
    %v369 = vsub.s32 %v366, %v368
    %v370 = vrot.slane %v362, %v369
    %v372 = vunpack.c.l.s4 1966171168
    %v373 = vunpack.c.0.s8 %v372
    %v374 = vlaneseq
    %v375 = vshrl.u32 %v374, 7
    %v376 = vsub.s32 %v373, %v375
    %v377 = vrot.slane %v363, %v376
    %v378 = vcombine.high %v370, %v370
    %v379 = vcombine.high %v377, %v377
    %v640 = vunpack.c.l.b16 %v57
    %v641 = vunpack.c.h.b16 %v57
    %v642 = vunpack.c.l.b16 %v58
    %v643 = vunpack.c.h.b16 %v58
    %v644 = vunpack.c.l.b16 %v59
    %v645 = vunpack.c.h.b16 %v59
    %v646 = vunpack.c.l.b16 %v60
    %v647 = vunpack.c.h.b16 %v60
    %v648 = vunpack.c.l.b16 %v61
    %v649 = vunpack.c.h.b16 %v61
    %v650 = vunpack.c.l.b16 %v62
    %v651 = vunpack.c.h.b16 %v62
    %v652 = vunpack.c.l.b16 %v63
    %v653 = vunpack.c.h.b16 %v63
    %v654 = vunpack.c.l.b16 %v64
    %v655 = vunpack.c.h.b16 %v64
    %v656 = vunpack.c.l.b16 %v65
    %v657 = vunpack.c.h.b16 %v65
    %v658 = vunpack.c.l.b16 %v66
    %v659 = vunpack.c.h.b16 %v66
    %v660 = vunpack.c.l.b16 %v67
    %v661 = vunpack.c.h.b16 %v67
    %v662 = vunpack.c.l.b16 %v68
    %v663 = vunpack.c.h.b16 %v68
    %v664 = vunpack.c.l.b16 %v69
    %v665 = vunpack.c.h.b16 %v69
    %v666 = vunpack.c.l.b16 %v70
    %v667 = vunpack.c.h.b16 %v70
    %v668 = vunpack.c.l.b16 %v71
    %v669 = vunpack.c.h.b16 %v71
    %v670 = vunpack.c.l.b16 %v72
    %v671 = vunpack.c.h.b16 %v72
    %v672 = vunpack.c.l.b16 %v73
    %v673 = vunpack.c.h.b16 %v73
    %v674 = vunpack.c.l.b16 %v74
    %v675 = vunpack.c.h.b16 %v74
    %v676 = vunpack.c.l.b16 %v75
    %v677 = vunpack.c.h.b16 %v75
    %v678 = vunpack.c.l.b16 %v76
    %v679 = vunpack.c.h.b16 %v76
    %v680 = vunpack.c.l.b16 %v77
    %v681 = vunpack.c.h.b16 %v77
    %v682 = vunpack.c.l.b16 %v78
    %v683 = vunpack.c.h.b16 %v78
    %v684 = vunpack.c.l.b16 %v79
    %v685 = vunpack.c.h.b16 %v79
    %v686 = vunpack.c.l.b16 %v80
    %v687 = vunpack.c.h.b16 %v80
    %v688 = vunpack.c.l.b16 %v81
    %v689 = vunpack.c.h.b16 %v81
    %v690 = vunpack.c.l.b16 %v82
    %v691 = vunpack.c.h.b16 %v82
    %v692 = vunpack.c.l.b16 %v83
    %v693 = vunpack.c.h.b16 %v83
    %v694 = vunpack.c.l.b16 %v84
    %v695 = vunpack.c.h.b16 %v84
    %v696 = vunpack.c.l.b16 %v85
    %v697 = vunpack.c.h.b16 %v85
    %v698 = vunpack.c.l.b16 %v86
    %v699 = vunpack.c.h.b16 %v86
    %v700 = vunpack.c.l.b16 %v87
    %v701 = vunpack.c.h.b16 %v87
    %v702 = vunpack.c.l.b16 %v88
    %v703 = vunpack.c.h.b16 %v88
    %v704 = vunpack.c.l.b16 %v89
    %v705 = vunpack.c.h.b16 %v89
    %v706 = vunpack.c.l.b16 %v90
    %v707 = vunpack.c.h.b16 %v90
    %v708 = vunpack.c.l.b16 %v91
    %v709 = vunpack.c.h.b16 %v91
    %v710 = vunpack.c.l.b16 %v92
    %v711 = vunpack.c.h.b16 %v92
    %v712 = vunpack.c.l.b16 %v93
    %v713 = vunpack.c.h.b16 %v93
    %v714 = vunpack.c.l.b16 %v94
    %v715 = vunpack.c.h.b16 %v94
    %v716 = vunpack.c.l.b16 %v95
    %v717 = vunpack.c.h.b16 %v95
    %v718 = vunpack.c.l.b16 %v96
    %v719 = vunpack.c.h.b16 %v96
    %v720 = vunpack.c.l.b16 %v97
    %v721 = vunpack.c.h.b16 %v97
    %v722 = vunpack.c.l.b16 %v98
    %v723 = vunpack.c.h.b16 %v98
    %v724 = vunpack.c.l.b16 %v99
    %v725 = vunpack.c.h.b16 %v99
    %v726 = vunpack.c.l.b16 %v100
    %v727 = vunpack.c.h.b16 %v100
    %v728 = vunpack.c.l.b16 %v101
    %v729 = vunpack.c.h.b16 %v101
    %v730 = vunpack.c.l.b16 %v102
    %v731 = vunpack.c.h.b16 %v102
    %v732 = vunpack.c.l.b16 %v103
    %v733 = vunpack.c.h.b16 %v103
    %v734 = vunpack.c.l.b16 %v104
    %v735 = vunpack.c.h.b16 %v104
    %v736 = vunpack.c.l.b16 %v105
    %v737 = vunpack.c.h.b16 %v105
    %v738 = vunpack.c.l.b16 %v106
    %v739 = vunpack.c.h.b16 %v106
    %v740 = vunpack.c.l.b16 %v107
    %v741 = vunpack.c.h.b16 %v107
    %v742 = vunpack.c.l.b16 %v108
    %v743 = vunpack.c.h.b16 %v108
    %v744 = vunpack.c.l.b16 %v109
    %v745 = vunpack.c.h.b16 %v109
    %v746 = vunpack.c.l.b16 %v110
    %v747 = vunpack.c.h.b16 %v110
    %v748 = vunpack.c.l.b16 %v111
    %v749 = vunpack.c.h.b16 %v111
    %v750 = vunpack.c.l.b16 %v112
    %v751 = vunpack.c.h.b16 %v112
    %v752 = vunpack.c.l.b16 %v113
    %v753 = vunpack.c.h.b16 %v113
    %v754 = vunpack.c.l.b16 %v114
    %v755 = vunpack.c.h.b16 %v114
    %v756 = vunpack.c.l.b16 %v115
    %v757 = vunpack.c.h.b16 %v115
    %v758 = vunpack.c.l.b16 %v116
    %v759 = vunpack.c.h.b16 %v116
    %v760 = vunpack.c.l.b16 %v117
    %v761 = vunpack.c.h.b16 %v117
    %v762 = vunpack.c.l.b16 %v118
    %v763 = vunpack.c.h.b16 %v118
    %v764 = vunpack.c.l.b16 %v119
    %v765 = vunpack.c.h.b16 %v119
    %v766 = vunpack.c.l.b16 %v120
    %v767 = vunpack.c.h.b16 %v120
    %v768 = vunpack.c.l.b16 %v121
    %v769 = vunpack.c.h.b16 %v121
    %v770 = vunpack.c.l.b16 %v122
    %v771 = vunpack.c.h.b16 %v122
    %v772 = vunpack.c.l.b16 %v123
    %v773 = vunpack.c.h.b16 %v123
    %v774 = vunpack.c.l.b16 %v124
    %v775 = vunpack.c.h.b16 %v124
    %v776 = vunpack.c.l.b16 %v125
    %v777 = vunpack.c.h.b16 %v125
    %v778 = vunpack.c.l.b16 %v126
    %v779 = vunpack.c.h.b16 %v126
    %v780 = vunpack.c.l.b16 %v127
    %v781 = vunpack.c.h.b16 %v127
    %v782 = vunpack.c.l.b16 %v128
    %v783 = vunpack.c.h.b16 %v128
    %v784 = vunpack.c.l.b16 %v129
    %v785 = vunpack.c.h.b16 %v129
    %v786 = vunpack.c.l.b16 %v130
    %v787 = vunpack.c.h.b16 %v130
    %v788 = vunpack.c.l.b16 %v131
    %v789 = vunpack.c.h.b16 %v131
    %v790 = vunpack.c.l.b16 %v132
    %v791 = vunpack.c.h.b16 %v132
    %v792 = vunpack.c.l.b16 %v133
    %v793 = vunpack.c.h.b16 %v133
    %v794 = vunpack.c.l.b16 %v134
    %v795 = vunpack.c.h.b16 %v134
    %v796 = vunpack.c.l.b16 %v135
    %v797 = vunpack.c.h.b16 %v135
    %v798 = vunpack.c.l.b16 %v136
    %v799 = vunpack.c.h.b16 %v136
    %v800 = vunpack.c.l.b16 %v137
    %v801 = vunpack.c.h.b16 %v137
    %v802 = vunpack.c.l.b16 %v138
    %v803 = vunpack.c.h.b16 %v138
    %v804 = vunpack.c.l.b16 %v139
    %v805 = vunpack.c.h.b16 %v139
    %v806 = vunpack.c.l.b16 %v140
    %v807 = vunpack.c.h.b16 %v140
    %v808 = vunpack.c.l.b16 %v141
    %v809 = vunpack.c.h.b16 %v141
    %v810 = vunpack.c.l.b16 %v142
    %v811 = vunpack.c.h.b16 %v142
    %v812 = vunpack.c.l.b16 %v143
    %v813 = vunpack.c.h.b16 %v143
    %v814 = vunpack.c.l.b16 %v144
    %v815 = vunpack.c.h.b16 %v144
    %v816 = vunpack.c.l.b16 %v145
    %v817 = vunpack.c.h.b16 %v145
    %v818 = vunpack.c.l.b16 %v146
    %v819 = vunpack.c.h.b16 %v146
    %v820 = vunpack.c.l.b16 %v147
    %v821 = vunpack.c.h.b16 %v147
    %v822 = vunpack.c.l.b16 %v148
    %v823 = vunpack.c.h.b16 %v148
    %v824 = vunpack.c.l.b16 %v149
    %v825 = vunpack.c.h.b16 %v149
    %v826 = vunpack.c.l.b16 %v150
    %v827 = vunpack.c.h.b16 %v150
    %v828 = vunpack.c.l.b16 %v151
    %v829 = vunpack.c.h.b16 %v151
    %v830 = vunpack.c.l.b16 %v152
    %v831 = vunpack.c.h.b16 %v152
    %v832 = vunpack.c.l.b16 %v153
    %v833 = vunpack.c.h.b16 %v153
    %v834 = vunpack.c.l.b16 %v154
    %v835 = vunpack.c.h.b16 %v154
    %v836 = vunpack.c.l.b16 %v155
    %v837 = vunpack.c.h.b16 %v155
    %v838 = vunpack.c.l.b16 %v156
    %v839 = vunpack.c.h.b16 %v156
    %v840 = vunpack.c.l.b16 %v157
    %v841 = vunpack.c.h.b16 %v157
    %v842 = vunpack.c.l.b16 %v158
    %v843 = vunpack.c.h.b16 %v158
    %v844 = vunpack.c.l.b16 %v159
    %v845 = vunpack.c.h.b16 %v159
    %v846 = vunpack.c.l.b16 %v160
    %v847 = vunpack.c.h.b16 %v160
    %v848 = vunpack.c.l.b16 %v161
    %v849 = vunpack.c.h.b16 %v161
    %v850 = vunpack.c.l.b16 %v162
    %v851 = vunpack.c.h.b16 %v162
    %v852 = vunpack.c.l.b16 %v163
    %v853 = vunpack.c.h.b16 %v163
    %v854 = vunpack.c.l.b16 %v164
    %v855 = vunpack.c.h.b16 %v164
    %v856 = vunpack.c.l.b16 %v165
    %v857 = vunpack.c.h.b16 %v165
    %v858 = vunpack.c.l.b16 %v166
    %v859 = vunpack.c.h.b16 %v166
    %v860 = vunpack.c.l.b16 %v167
    %v861 = vunpack.c.h.b16 %v167
    %v862 = vunpack.c.l.b16 %v168
    %v863 = vunpack.c.h.b16 %v168
    %v864 = vunpack.c.l.b16 %v169
    %v865 = vunpack.c.h.b16 %v169
    %v866 = vunpack.c.l.b16 %v170
    %v867 = vunpack.c.h.b16 %v170
    %v868 = vunpack.c.l.b16 %v171
    %v869 = vunpack.c.h.b16 %v171
    %v870 = vunpack.c.l.b16 %v172
    %v871 = vunpack.c.h.b16 %v172
    %v872 = vunpack.c.l.b16 %v173
    %v873 = vunpack.c.h.b16 %v173
    %v874 = vunpack.c.l.b16 %v174
    %v875 = vunpack.c.h.b16 %v174
    %v876 = vunpack.c.l.b16 %v175
    %v877 = vunpack.c.h.b16 %v175
    %v878 = vunpack.c.l.b16 %v176
    %v879 = vunpack.c.h.b16 %v176
    %v880 = vunpack.c.l.b16 %v177
    %v881 = vunpack.c.h.b16 %v177
    %v882 = vunpack.c.l.b16 %v178
    %v883 = vunpack.c.h.b16 %v178
    %v884 = vunpack.c.l.b16 %v179
    %v885 = vunpack.c.h.b16 %v179
    %v886 = vunpack.c.l.b16 %v180
    %v887 = vunpack.c.h.b16 %v180
    %v888 = vunpack.c.l.b16 %v181
    %v889 = vunpack.c.h.b16 %v181
    %v890 = vunpack.c.l.b16 %v182
    %v891 = vunpack.c.h.b16 %v182
    %v892 = vunpack.c.l.b16 %v183
    %v893 = vunpack.c.h.b16 %v183
    %v894 = vunpack.c.l.b16 %v184
    %v895 = vunpack.c.h.b16 %v184
    %v896 = vunpack.c.l.b16 %v185
    %v897 = vunpack.c.h.b16 %v185
    %v898 = vunpack.c.l.b16 %v186
    %v899 = vunpack.c.h.b16 %v186
    %v900 = vunpack.c.l.b16 %v187
    %v901 = vunpack.c.h.b16 %v187
    %v902 = vunpack.c.l.b16 %v188
    %v903 = vunpack.c.h.b16 %v188
    %v904 = vunpack.c.l.b16 %v189
    %v905 = vunpack.c.h.b16 %v189
    %v906 = vunpack.c.l.b16 %v190
    %v907 = vunpack.c.h.b16 %v190
    %v908 = vunpack.c.l.b16 %v191
    %v909 = vunpack.c.h.b16 %v191
    %v910 = vunpack.c.l.b16 %v192
    %v911 = vunpack.c.h.b16 %v192
    %v912 = vunpack.c.l.b16 %v193
    %v913 = vunpack.c.h.b16 %v193
    %v914 = vunpack.c.l.b16 %v194
    %v915 = vunpack.c.h.b16 %v194
    %v916 = vunpack.c.l.b16 %v195
    %v917 = vunpack.c.h.b16 %v195
    %v918 = vunpack.c.l.b16 %v196
    %v919 = vunpack.c.h.b16 %v196
    %v920 = vunpack.c.l.b16 %v197
    %v921 = vunpack.c.h.b16 %v197
    %v922 = vunpack.c.l.b16 %v198
    %v923 = vunpack.c.h.b16 %v198
    %v924 = vunpack.c.l.b16 %v199
    %v925 = vunpack.c.h.b16 %v199
    %v926 = vunpack.c.l.b16 %v200
    %v927 = vunpack.c.h.b16 %v200
    %v928 = vunpack.c.l.b16 %v201
    %v929 = vunpack.c.h.b16 %v201
    %v930 = vunpack.c.l.b16 %v202
    %v931 = vunpack.c.h.b16 %v202
    %v932 = vunpack.c.l.b16 %v203
    %v933 = vunpack.c.h.b16 %v203
    %v934 = vunpack.c.l.b16 %v204
    %v935 = vunpack.c.h.b16 %v204
    %v936 = vunpack.c.l.b16 %v205
    %v937 = vunpack.c.h.b16 %v205
    %v938 = vunpack.c.l.b16 %v206
    %v939 = vunpack.c.h.b16 %v206
    %v940 = vunpack.c.l.b16 %v207
    %v941 = vunpack.c.h.b16 %v207
    %v942 = vunpack.c.l.b16 %v208
    %v943 = vunpack.c.h.b16 %v208
    %v944 = vunpack.c.l.b16 %v209
    %v945 = vunpack.c.h.b16 %v209
    %v946 = vunpack.c.l.b16 %v210
    %v947 = vunpack.c.h.b16 %v210
    %v948 = vunpack.c.l.b16 %v211
    %v949 = vunpack.c.h.b16 %v211
    %v950 = vunpack.c.l.b16 %v212
    %v951 = vunpack.c.h.b16 %v212
    %v952 = vunpack.c.l.b16 %v213
    %v953 = vunpack.c.h.b16 %v213
    %v954 = vunpack.c.l.b16 %v214
    %v955 = vunpack.c.h.b16 %v214
    %v956 = vunpack.c.l.b16 %v215
    %v957 = vunpack.c.h.b16 %v215
    %v958 = vunpack.c.l.b16 %v216
    %v959 = vunpack.c.h.b16 %v216
    %v960 = vunpack.c.l.b16 %v217
    %v961 = vunpack.c.h.b16 %v217
    %v962 = vunpack.c.l.b16 %v218
    %v963 = vunpack.c.h.b16 %v218
    %v964 = vunpack.c.l.b16 %v219
    %v965 = vunpack.c.h.b16 %v219
    %v966 = vunpack.c.l.b16 %v220
    %v967 = vunpack.c.h.b16 %v220
    %v968 = vunpack.c.l.b16 %v221
    %v969 = vunpack.c.h.b16 %v221
    %v970 = vunpack.c.l.b16 %v222
    %v971 = vunpack.c.h.b16 %v222
    %v972 = vunpack.c.l.b16 %v223
    %v973 = vunpack.c.h.b16 %v223
    %v974 = vunpack.c.l.b16 %v224
    %v975 = vunpack.c.h.b16 %v224
    %v976 = vunpack.c.l.b16 %v225
    %v977 = vunpack.c.h.b16 %v225
    %v978 = vunpack.c.l.b16 %v226
    %v979 = vunpack.c.h.b16 %v226
    %v980 = vunpack.c.l.b16 %v227
    %v981 = vunpack.c.h.b16 %v227
    %v982 = vunpack.c.l.b16 %v228
    %v983 = vunpack.c.h.b16 %v228
    %v984 = vunpack.c.l.b16 %v229
    %v985 = vunpack.c.h.b16 %v229
    %v986 = vunpack.c.l.b16 %v230
    %v987 = vunpack.c.h.b16 %v230
    %v988 = vunpack.c.l.b16 %v231
    %v989 = vunpack.c.h.b16 %v231
    %v990 = vunpack.c.l.b16 %v232
    %v991 = vunpack.c.h.b16 %v232
    %v992 = vunpack.c.l.b16 %v233
    %v993 = vunpack.c.h.b16 %v233
    %v994 = vunpack.c.l.b16 %v234
    %v995 = vunpack.c.h.b16 %v234
    %v996 = vunpack.c.l.b16 %v235
    %v997 = vunpack.c.h.b16 %v235
    %v998 = vunpack.c.l.b16 %v236
    %v999 = vunpack.c.h.b16 %v236
    %v1000 = vunpack.c.l.b16 %v237
    %v1001 = vunpack.c.h.b16 %v237
    %v1002 = vunpack.c.l.b16 %v238
    %v1003 = vunpack.c.h.b16 %v238
    %v1004 = vunpack.c.l.b16 %v239
    %v1005 = vunpack.c.h.b16 %v239
    %v1006 = vunpack.c.l.b16 %v240
    %v1007 = vunpack.c.h.b16 %v240
    %v1008 = vunpack.c.l.b16 %v241
    %v1009 = vunpack.c.h.b16 %v241
    %v1010 = vunpack.c.l.b16 %v242
    %v1011 = vunpack.c.h.b16 %v242
    %v1012 = vunpack.c.l.b16 %v243
    %v1013 = vunpack.c.h.b16 %v243
    %v1014 = vunpack.c.l.b16 %v244
    %v1015 = vunpack.c.h.b16 %v244
    %v1016 = vunpack.c.l.b16 %v245
    %v1017 = vunpack.c.h.b16 %v245
    %v1018 = vunpack.c.l.b16 %v246
    %v1019 = vunpack.c.h.b16 %v246
    %v1020 = vunpack.c.l.b16 %v247
    %v1021 = vunpack.c.h.b16 %v247
    %v1022 = vunpack.c.l.b16 %v248
    %v1023 = vunpack.c.h.b16 %v248
    %v1024 = vunpack.c.l.b16 %v249
    %v1025 = vunpack.c.h.b16 %v249
    %v1026 = vunpack.c.l.b16 %v250
    %v1027 = vunpack.c.h.b16 %v250
    %v1028 = vunpack.c.l.b16 %v251
    %v1029 = vunpack.c.h.b16 %v251
    %v1030 = vunpack.c.l.b16 %v252
    %v1031 = vunpack.c.h.b16 %v252
    %v1032 = vunpack.c.l.b16 %v253
    %v1033 = vunpack.c.h.b16 %v253
    %v1034 = vunpack.c.l.b16 %v254
    %v1035 = vunpack.c.h.b16 %v254
    %v1036 = vunpack.c.l.b16 %v255
    %v1037 = vunpack.c.h.b16 %v255
    %v1038 = vunpack.c.l.b16 %v256
    %v1039 = vunpack.c.h.b16 %v256
    %v1040 = vunpack.c.l.b16 %v257
    %v1041 = vunpack.c.h.b16 %v257
    %v1042 = vunpack.c.l.b16 %v258
    %v1043 = vunpack.c.h.b16 %v258
    %v1044 = vunpack.c.l.b16 %v259
    %v1045 = vunpack.c.h.b16 %v259
    %v1046 = vunpack.c.l.b16 %v260
    %v1047 = vunpack.c.h.b16 %v260
    %v1048 = vunpack.c.l.b16 %v261
    %v1049 = vunpack.c.h.b16 %v261
    %v1050 = vunpack.c.l.b16 %v262
    %v1051 = vunpack.c.h.b16 %v262
    %v1052 = vunpack.c.l.b16 %v263
    %v1053 = vunpack.c.h.b16 %v263
    %v1054 = vunpack.c.l.b16 %v264
    %v1055 = vunpack.c.h.b16 %v264
    %v1056 = vunpack.c.l.b16 %v265
    %v1057 = vunpack.c.h.b16 %v265
    %v1058 = vunpack.c.l.b16 %v266
    %v1059 = vunpack.c.h.b16 %v266
    %v1060 = vunpack.c.l.b16 %v267
    %v1061 = vunpack.c.h.b16 %v267
    %v1062 = vunpack.c.l.b16 %v268
    %v1063 = vunpack.c.h.b16 %v268
    %v1064 = vunpack.c.l.b16 %v269
    %v1065 = vunpack.c.h.b16 %v269
    %v1066 = vunpack.c.l.b16 %v270
    %v1067 = vunpack.c.h.b16 %v270
    %v1068 = vunpack.c.l.b16 %v271
    %v1069 = vunpack.c.h.b16 %v271
    %v1070 = vunpack.c.l.b16 %v272
    %v1071 = vunpack.c.h.b16 %v272
    %v1072 = vunpack.c.l.b16 %v273
    %v1073 = vunpack.c.h.b16 %v273
    %v1074 = vunpack.c.l.b16 %v274
    %v1075 = vunpack.c.h.b16 %v274
    %v1076 = vunpack.c.l.b16 %v275
    %v1077 = vunpack.c.h.b16 %v275
    %v1078 = vunpack.c.l.b16 %v276
    %v1079 = vunpack.c.h.b16 %v276
    %v1080 = vunpack.c.l.b16 %v277
    %v1081 = vunpack.c.h.b16 %v277
    %v1082 = vunpack.c.l.b16 %v278
    %v1083 = vunpack.c.h.b16 %v278
    %v1084 = vunpack.c.l.b16 %v279
    %v1085 = vunpack.c.h.b16 %v279
    %v1086 = vunpack.c.l.b16 %v280
    %v1087 = vunpack.c.h.b16 %v280
    %v1088 = vunpack.c.l.b16 %v281
    %v1089 = vunpack.c.h.b16 %v281
    %v1090 = vunpack.c.l.b16 %v282
    %v1091 = vunpack.c.h.b16 %v282
    %v1092 = vunpack.c.l.b16 %v283
    %v1093 = vunpack.c.h.b16 %v283
    %v1094 = vunpack.c.l.b16 %v284
    %v1095 = vunpack.c.h.b16 %v284
    %v1096 = vunpack.c.l.b16 %v285
    %v1097 = vunpack.c.h.b16 %v285
    %v1098 = vunpack.c.l.b16 %v286
    %v1099 = vunpack.c.h.b16 %v286
    %v1100 = vunpack.c.l.b16 %v287
    %v1101 = vunpack.c.h.b16 %v287
    %v1102 = vunpack.c.l.b16 %v288
    %v1103 = vunpack.c.h.b16 %v288
    %v1104 = vunpack.c.l.b16 %v289
    %v1105 = vunpack.c.h.b16 %v289
    %v1106 = vunpack.c.l.b16 %v290
    %v1107 = vunpack.c.h.b16 %v290
    %v1108 = vunpack.c.l.b16 %v291
    %v1109 = vunpack.c.h.b16 %v291
    %v1110 = vunpack.c.l.b16 %v292
    %v1111 = vunpack.c.h.b16 %v292
    %v1112 = vunpack.c.l.b16 %v293
    %v1113 = vunpack.c.h.b16 %v293
    %v1114 = vunpack.c.l.b16 %v294
    %v1115 = vunpack.c.h.b16 %v294
    %v1116 = vunpack.c.l.b16 %v295
    %v1117 = vunpack.c.h.b16 %v295
    %v1118 = vunpack.c.l.b16 %v296
    %v1119 = vunpack.c.h.b16 %v296
    %v1120 = vunpack.c.l.b16 %v297
    %v1121 = vunpack.c.h.b16 %v297
    %v1122 = vunpack.c.l.b16 %v298
    %v1123 = vunpack.c.h.b16 %v298
    %v1124 = vunpack.c.l.b16 %v299
    %v1125 = vunpack.c.h.b16 %v299
    %v1126 = vunpack.c.l.b16 %v300
    %v1127 = vunpack.c.h.b16 %v300
    %v1128 = vunpack.c.l.b16 %v301
    %v1129 = vunpack.c.h.b16 %v301
    %v1130 = vunpack.c.l.b16 %v302
    %v1131 = vunpack.c.h.b16 %v302
    %v1132 = vunpack.c.l.b16 %v303
    %v1133 = vunpack.c.h.b16 %v303
    %v1134 = vunpack.c.l.b16 %v304
    %v1135 = vunpack.c.h.b16 %v304
    %v1136 = vunpack.c.l.b16 %v305
    %v1137 = vunpack.c.h.b16 %v305
    %v1138 = vunpack.c.l.b16 %v306
    %v1139 = vunpack.c.h.b16 %v306
    %v1140 = vunpack.c.l.b16 %v307
    %v1141 = vunpack.c.h.b16 %v307
    %v1142 = vunpack.c.l.b16 %v308
    %v1143 = vunpack.c.h.b16 %v308
    %v1144 = vunpack.c.l.b16 %v309
    %v1145 = vunpack.c.h.b16 %v309
    %v1146 = vunpack.c.l.b16 %v310
    %v1147 = vunpack.c.h.b16 %v310
    %v1148 = vunpack.c.l.b16 %v311
    %v1149 = vunpack.c.h.b16 %v311
    %v1150 = vunpack.c.l.b16 %v312
    %v1151 = vunpack.c.h.b16 %v312
    %v1152 = vpack.c.b16 %v648, %v640
    %v1153 = vpack.c.b16 %v649, %v641
    %v1154 = vpack.c.b16 %v650, %v642
    %v1155 = vpack.c.b16 %v651, %v643
    %v1156 = vpack.c.b16 %v652, %v644
    %v1157 = vpack.c.b16 %v653, %v645
    %v1158 = vpack.c.b16 %v654, %v646
    %v1159 = vpack.c.b16 %v655, %v647
    %v1160 = vpack.c.b16 %v664, %v656
    %v1161 = vpack.c.b16 %v665, %v657
    %v1162 = vpack.c.b16 %v666, %v658
    %v1163 = vpack.c.b16 %v667, %v659
    %v1164 = vpack.c.b16 %v668, %v660
    %v1165 = vpack.c.b16 %v669, %v661
    %v1166 = vpack.c.b16 %v670, %v662
    %v1167 = vpack.c.b16 %v671, %v663
    %v1168 = vpack.c.b16 %v680, %v672
    %v1169 = vpack.c.b16 %v681, %v673
    %v1170 = vpack.c.b16 %v682, %v674
    %v1171 = vpack.c.b16 %v683, %v675
    %v1172 = vpack.c.b16 %v684, %v676
    %v1173 = vpack.c.b16 %v685, %v677
    %v1174 = vpack.c.b16 %v686, %v678
    %v1175 = vpack.c.b16 %v687, %v679
    %v1176 = vpack.c.b16 %v696, %v688
    %v1177 = vpack.c.b16 %v697, %v689
    %v1178 = vpack.c.b16 %v698, %v690
    %v1179 = vpack.c.b16 %v699, %v691
    %v1180 = vpack.c.b16 %v700, %v692
    %v1181 = vpack.c.b16 %v701, %v693
    %v1182 = vpack.c.b16 %v702, %v694
    %v1183 = vpack.c.b16 %v703, %v695
    %v1184 = vpack.c.b16 %v712, %v704
    %v1185 = vpack.c.b16 %v713, %v705
    %v1186 = vpack.c.b16 %v714, %v706
    %v1187 = vpack.c.b16 %v715, %v707
    %v1188 = vpack.c.b16 %v716, %v708
    %v1189 = vpack.c.b16 %v717, %v709
    %v1190 = vpack.c.b16 %v718, %v710
    %v1191 = vpack.c.b16 %v719, %v711
    %v1192 = vpack.c.b16 %v728, %v720
    %v1193 = vpack.c.b16 %v729, %v721
    %v1194 = vpack.c.b16 %v730, %v722
    %v1195 = vpack.c.b16 %v731, %v723
    %v1196 = vpack.c.b16 %v732, %v724
    %v1197 = vpack.c.b16 %v733, %v725
    %v1198 = vpack.c.b16 %v734, %v726
    %v1199 = vpack.c.b16 %v735, %v727
    %v1200 = vpack.c.b16 %v744, %v736
    %v1201 = vpack.c.b16 %v745, %v737
    %v1202 = vpack.c.b16 %v746, %v738
    %v1203 = vpack.c.b16 %v747, %v739
    %v1204 = vpack.c.b16 %v748, %v740
    %v1205 = vpack.c.b16 %v749, %v741
    %v1206 = vpack.c.b16 %v750, %v742
    %v1207 = vpack.c.b16 %v751, %v743
    %v1208 = vpack.c.b16 %v760, %v752
    %v1209 = vpack.c.b16 %v761, %v753
    %v1210 = vpack.c.b16 %v762, %v754
    %v1211 = vpack.c.b16 %v763, %v755
    %v1212 = vpack.c.b16 %v764, %v756
    %v1213 = vpack.c.b16 %v765, %v757
    %v1214 = vpack.c.b16 %v766, %v758
    %v1215 = vpack.c.b16 %v767, %v759
    %v1216 = vpack.c.b16 %v776, %v768
    %v1217 = vpack.c.b16 %v777, %v769
    %v1218 = vpack.c.b16 %v778, %v770
    %v1219 = vpack.c.b16 %v779, %v771
    %v1220 = vpack.c.b16 %v780, %v772
    %v1221 = vpack.c.b16 %v781, %v773
    %v1222 = vpack.c.b16 %v782, %v774
    %v1223 = vpack.c.b16 %v783, %v775
    %v1224 = vpack.c.b16 %v792, %v784
    %v1225 = vpack.c.b16 %v793, %v785
    %v1226 = vpack.c.b16 %v794, %v786
    %v1227 = vpack.c.b16 %v795, %v787
    %v1228 = vpack.c.b16 %v796, %v788
    %v1229 = vpack.c.b16 %v797, %v789
    %v1230 = vpack.c.b16 %v798, %v790
    %v1231 = vpack.c.b16 %v799, %v791
    %v1232 = vpack.c.b16 %v808, %v800
    %v1233 = vpack.c.b16 %v809, %v801
    %v1234 = vpack.c.b16 %v810, %v802
    %v1235 = vpack.c.b16 %v811, %v803
    %v1236 = vpack.c.b16 %v812, %v804
    %v1237 = vpack.c.b16 %v813, %v805
    %v1238 = vpack.c.b16 %v814, %v806
    %v1239 = vpack.c.b16 %v815, %v807
    %v1240 = vpack.c.b16 %v824, %v816
    %v1241 = vpack.c.b16 %v825, %v817
    %v1242 = vpack.c.b16 %v826, %v818
    %v1243 = vpack.c.b16 %v827, %v819
    %v1244 = vpack.c.b16 %v828, %v820
    %v1245 = vpack.c.b16 %v829, %v821
    %v1246 = vpack.c.b16 %v830, %v822
    %v1247 = vpack.c.b16 %v831, %v823
    %v1248 = vpack.c.b16 %v840, %v832
    %v1249 = vpack.c.b16 %v841, %v833
    %v1250 = vpack.c.b16 %v842, %v834
    %v1251 = vpack.c.b16 %v843, %v835
    %v1252 = vpack.c.b16 %v844, %v836
    %v1253 = vpack.c.b16 %v845, %v837
    %v1254 = vpack.c.b16 %v846, %v838
    %v1255 = vpack.c.b16 %v847, %v839
    %v1256 = vpack.c.b16 %v856, %v848
    %v1257 = vpack.c.b16 %v857, %v849
    %v1258 = vpack.c.b16 %v858, %v850
    %v1259 = vpack.c.b16 %v859, %v851
    %v1260 = vpack.c.b16 %v860, %v852
    %v1261 = vpack.c.b16 %v861, %v853
    %v1262 = vpack.c.b16 %v862, %v854
    %v1263 = vpack.c.b16 %v863, %v855
    %v1264 = vpack.c.b16 %v872, %v864
    %v1265 = vpack.c.b16 %v873, %v865
    %v1266 = vpack.c.b16 %v874, %v866
    %v1267 = vpack.c.b16 %v875, %v867
    %v1268 = vpack.c.b16 %v876, %v868
    %v1269 = vpack.c.b16 %v877, %v869
    %v1270 = vpack.c.b16 %v878, %v870
    %v1271 = vpack.c.b16 %v879, %v871
    %v1272 = vpack.c.b16 %v888, %v880
    %v1273 = vpack.c.b16 %v889, %v881
    %v1274 = vpack.c.b16 %v890, %v882
    %v1275 = vpack.c.b16 %v891, %v883
    %v1276 = vpack.c.b16 %v892, %v884
    %v1277 = vpack.c.b16 %v893, %v885
    %v1278 = vpack.c.b16 %v894, %v886
    %v1279 = vpack.c.b16 %v895, %v887
    %v1280 = vpack.c.b16 %v904, %v896
    %v1281 = vpack.c.b16 %v905, %v897
    %v1282 = vpack.c.b16 %v906, %v898
    %v1283 = vpack.c.b16 %v907, %v899
    %v1284 = vpack.c.b16 %v908, %v900
    %v1285 = vpack.c.b16 %v909, %v901
    %v1286 = vpack.c.b16 %v910, %v902
    %v1287 = vpack.c.b16 %v911, %v903
    %v1288 = vpack.c.b16 %v920, %v912
    %v1289 = vpack.c.b16 %v921, %v913
    %v1290 = vpack.c.b16 %v922, %v914
    %v1291 = vpack.c.b16 %v923, %v915
    %v1292 = vpack.c.b16 %v924, %v916
    %v1293 = vpack.c.b16 %v925, %v917
    %v1294 = vpack.c.b16 %v926, %v918
    %v1295 = vpack.c.b16 %v927, %v919
    %v1296 = vpack.c.b16 %v936, %v928
    %v1297 = vpack.c.b16 %v937, %v929
    %v1298 = vpack.c.b16 %v938, %v930
    %v1299 = vpack.c.b16 %v939, %v931
    %v1300 = vpack.c.b16 %v940, %v932
    %v1301 = vpack.c.b16 %v941, %v933
    %v1302 = vpack.c.b16 %v942, %v934
    %v1303 = vpack.c.b16 %v943, %v935
    %v1304 = vpack.c.b16 %v952, %v944
    %v1305 = vpack.c.b16 %v953, %v945
    %v1306 = vpack.c.b16 %v954, %v946
    %v1307 = vpack.c.b16 %v955, %v947
    %v1308 = vpack.c.b16 %v956, %v948
    %v1309 = vpack.c.b16 %v957, %v949
    %v1310 = vpack.c.b16 %v958, %v950
    %v1311 = vpack.c.b16 %v959, %v951
    %v1312 = vpack.c.b16 %v968, %v960
    %v1313 = vpack.c.b16 %v969, %v961
    %v1314 = vpack.c.b16 %v970, %v962
    %v1315 = vpack.c.b16 %v971, %v963
    %v1316 = vpack.c.b16 %v972, %v964
    %v1317 = vpack.c.b16 %v973, %v965
    %v1318 = vpack.c.b16 %v974, %v966
    %v1319 = vpack.c.b16 %v975, %v967
    %v1320 = vpack.c.b16 %v984, %v976
    %v1321 = vpack.c.b16 %v985, %v977
    %v1322 = vpack.c.b16 %v986, %v978
    %v1323 = vpack.c.b16 %v987, %v979
    %v1324 = vpack.c.b16 %v988, %v980
    %v1325 = vpack.c.b16 %v989, %v981
    %v1326 = vpack.c.b16 %v990, %v982
    %v1327 = vpack.c.b16 %v991, %v983
    %v1328 = vpack.c.b16 %v1000, %v992
    %v1329 = vpack.c.b16 %v1001, %v993
    %v1330 = vpack.c.b16 %v1002, %v994
    %v1331 = vpack.c.b16 %v1003, %v995
    %v1332 = vpack.c.b16 %v1004, %v996
    %v1333 = vpack.c.b16 %v1005, %v997
    %v1334 = vpack.c.b16 %v1006, %v998
    %v1335 = vpack.c.b16 %v1007, %v999
    %v1336 = vpack.c.b16 %v1016, %v1008
    %v1337 = vpack.c.b16 %v1017, %v1009
    %v1338 = vpack.c.b16 %v1018, %v1010
    %v1339 = vpack.c.b16 %v1019, %v1011
    %v1340 = vpack.c.b16 %v1020, %v1012
    %v1341 = vpack.c.b16 %v1021, %v1013
    %v1342 = vpack.c.b16 %v1022, %v1014
    %v1343 = vpack.c.b16 %v1023, %v1015
    %v1344 = vpack.c.b16 %v1032, %v1024
    %v1345 = vpack.c.b16 %v1033, %v1025
    %v1346 = vpack.c.b16 %v1034, %v1026
    %v1347 = vpack.c.b16 %v1035, %v1027
    %v1348 = vpack.c.b16 %v1036, %v1028
    %v1349 = vpack.c.b16 %v1037, %v1029
    %v1350 = vpack.c.b16 %v1038, %v1030
    %v1351 = vpack.c.b16 %v1039, %v1031
    %v1352 = vpack.c.b16 %v1048, %v1040
    %v1353 = vpack.c.b16 %v1049, %v1041
    %v1354 = vpack.c.b16 %v1050, %v1042
    %v1355 = vpack.c.b16 %v1051, %v1043
    %v1356 = vpack.c.b16 %v1052, %v1044
    %v1357 = vpack.c.b16 %v1053, %v1045
    %v1358 = vpack.c.b16 %v1054, %v1046
    %v1359 = vpack.c.b16 %v1055, %v1047
    %v1360 = vpack.c.b16 %v1064, %v1056
    %v1361 = vpack.c.b16 %v1065, %v1057
    %v1362 = vpack.c.b16 %v1066, %v1058
    %v1363 = vpack.c.b16 %v1067, %v1059
    %v1364 = vpack.c.b16 %v1068, %v1060
    %v1365 = vpack.c.b16 %v1069, %v1061
    %v1366 = vpack.c.b16 %v1070, %v1062
    %v1367 = vpack.c.b16 %v1071, %v1063
    %v1368 = vpack.c.b16 %v1080, %v1072
    %v1369 = vpack.c.b16 %v1081, %v1073
    %v1370 = vpack.c.b16 %v1082, %v1074
    %v1371 = vpack.c.b16 %v1083, %v1075
    %v1372 = vpack.c.b16 %v1084, %v1076
    %v1373 = vpack.c.b16 %v1085, %v1077
    %v1374 = vpack.c.b16 %v1086, %v1078
    %v1375 = vpack.c.b16 %v1087, %v1079
    %v1376 = vpack.c.b16 %v1096, %v1088
    %v1377 = vpack.c.b16 %v1097, %v1089
    %v1378 = vpack.c.b16 %v1098, %v1090
    %v1379 = vpack.c.b16 %v1099, %v1091
    %v1380 = vpack.c.b16 %v1100, %v1092
    %v1381 = vpack.c.b16 %v1101, %v1093
    %v1382 = vpack.c.b16 %v1102, %v1094
    %v1383 = vpack.c.b16 %v1103, %v1095
    %v1384 = vpack.c.b16 %v1112, %v1104
    %v1385 = vpack.c.b16 %v1113, %v1105
    %v1386 = vpack.c.b16 %v1114, %v1106
    %v1387 = vpack.c.b16 %v1115, %v1107
    %v1388 = vpack.c.b16 %v1116, %v1108
    %v1389 = vpack.c.b16 %v1117, %v1109
    %v1390 = vpack.c.b16 %v1118, %v1110
    %v1391 = vpack.c.b16 %v1119, %v1111
    %v1392 = vpack.c.b16 %v1128, %v1120
    %v1393 = vpack.c.b16 %v1129, %v1121
    %v1394 = vpack.c.b16 %v1130, %v1122
    %v1395 = vpack.c.b16 %v1131, %v1123
    %v1396 = vpack.c.b16 %v1132, %v1124
    %v1397 = vpack.c.b16 %v1133, %v1125
    %v1398 = vpack.c.b16 %v1134, %v1126
    %v1399 = vpack.c.b16 %v1135, %v1127
    %v1400 = vpack.c.b16 %v1144, %v1136
    %v1401 = vpack.c.b16 %v1145, %v1137
    %v1402 = vpack.c.b16 %v1146, %v1138
    %v1403 = vpack.c.b16 %v1147, %v1139
    %v1404 = vpack.c.b16 %v1148, %v1140
    %v1405 = vpack.c.b16 %v1149, %v1141
    %v1406 = vpack.c.b16 %v1150, %v1142
    %v1407 = vpack.c.b16 %v1151, %v1143
    %1664 = vmatprep.subr.bf16.mxu0 %v1153
    %1665 = vmatpush1.bf16.msra.mxu0 %v1152
    %1666 = vmatprep.subr.bf16.mxu0 %v1161
    %1667 = vmatpush1.bf16.msra.mxu0 %v1160
    %1668 = vmatprep.subr.bf16.mxu0 %v1169
    %1669 = vmatpush1.bf16.msra.mxu0 %v1168
    %1670 = vmatprep.subr.bf16.mxu0 %v1177
    %1671 = vmatpush1.bf16.msra.mxu0 %v1176
    %1672 = vmatprep.subr.bf16.mxu0 %v1185
    %1673 = vmatpush1.bf16.msra.mxu0 %v1184
    %1674 = vmatprep.subr.bf16.mxu0 %v1193
    %1675 = vmatpush1.bf16.msra.mxu0 %v1192
    %1676 = vmatprep.subr.bf16.mxu0 %v1201
    %1677 = vmatpush1.bf16.msra.mxu0 %v1200
    %1678 = vmatprep.subr.bf16.mxu0 %v1209
    %1679 = vmatpush1.bf16.msra.mxu0 %v1208
    %1680 = vmatprep.subr.bf16.mxu0 %v1217
    %1681 = vmatpush1.bf16.msra.mxu0 %v1216
    %1682 = vmatprep.subr.bf16.mxu0 %v1225
    %1683 = vmatpush1.bf16.msra.mxu0 %v1224
    %1684 = vmatprep.subr.bf16.mxu0 %v1233
    %1685 = vmatpush1.bf16.msra.mxu0 %v1232
    %1686 = vmatprep.subr.bf16.mxu0 %v1241
    %1687 = vmatpush1.bf16.msra.mxu0 %v1240
    %1688 = vmatprep.subr.bf16.mxu0 %v1249
    %1689 = vmatpush1.bf16.msra.mxu0 %v1248
    %1690 = vmatprep.subr.bf16.mxu0 %v1257
    %1691 = vmatpush1.bf16.msra.mxu0 %v1256
    %1692 = vmatprep.subr.bf16.mxu0 %v1265
    %1693 = vmatpush1.bf16.msra.mxu0 %v1264
    %1694 = vmatprep.subr.bf16.mxu0 %v1273
    %1695 = vmatpush1.bf16.msra.mxu0 %v1272
    %1696 = vmatprep.mubr.bf16.mxu0 %v377
    %1697 = vmatmul.mubr.bf16.gmra.mrb[0].mxu0 %v370
    %v1698 = vpop.f32.mrb[0].mxu0
    %v1699 = vadd.f32 %v318, %v1698
    %v1700 = vpop.f32.mrb[0].mxu0
    %v1701 = vadd.f32 %v322, %v1700
    %v1702 = vpop.f32.mrb[0].mxu0
    %v1703 = vpop.f32.mrb[0].mxu0
    %1704 = vdwg.mxu0
    %1705 = vmatprep.subr.bf16.mxu0 %v1281
    %1706 = vmatpush1.bf16.msra.mxu0 %v1280
    %1707 = vmatprep.subr.bf16.mxu0 %v1289
    %1708 = vmatpush1.bf16.msra.mxu0 %v1288
    %1709 = vmatprep.subr.bf16.mxu0 %v1297
    %1710 = vmatpush1.bf16.msra.mxu0 %v1296
    %1711 = vmatprep.subr.bf16.mxu0 %v1305
    %1712 = vmatpush1.bf16.msra.mxu0 %v1304
    %1713 = vmatprep.subr.bf16.mxu0 %v1313
    %1714 = vmatpush1.bf16.msra.mxu0 %v1312
    %1715 = vmatprep.subr.bf16.mxu0 %v1321
    %1716 = vmatpush1.bf16.msra.mxu0 %v1320
    %1717 = vmatprep.subr.bf16.mxu0 %v1329
    %1718 = vmatpush1.bf16.msra.mxu0 %v1328
    %1719 = vmatprep.subr.bf16.mxu0 %v1337
    %1720 = vmatpush1.bf16.msra.mxu0 %v1336
    %1721 = vmatprep.subr.bf16.mxu0 %v1345
    %1722 = vmatpush1.bf16.msra.mxu0 %v1344
    %1723 = vmatprep.subr.bf16.mxu0 %v1353
    %1724 = vmatpush1.bf16.msra.mxu0 %v1352
    %1725 = vmatprep.subr.bf16.mxu0 %v1361
    %1726 = vmatpush1.bf16.msra.mxu0 %v1360
    %1727 = vmatprep.subr.bf16.mxu0 %v1369
    %1728 = vmatpush1.bf16.msra.mxu0 %v1368
    %1729 = vmatprep.subr.bf16.mxu0 %v1377
    %1730 = vmatpush1.bf16.msra.mxu0 %v1376
    %1731 = vmatprep.subr.bf16.mxu0 %v1385
    %1732 = vmatpush1.bf16.msra.mxu0 %v1384
    %1733 = vmatprep.subr.bf16.mxu0 %v1393
    %1734 = vmatpush1.bf16.msra.mxu0 %v1392
    %1735 = vmatprep.subr.bf16.mxu0 %v1401
    %1736 = vmatpush1.bf16.msra.mxu0 %v1400
    %1737 = vmatprep.mubr.bf16.mxu0 %v379
    %1738 = vmatmul.mubr.bf16.gmra.mrb[0].mxu0 %v378
    %v1739 = vpop.f32.mrb[0].mxu0
    %v1740 = vadd.f32 %v1699, %v1739
    %v1741 = vpop.f32.mrb[0].mxu0
    %v1742 = vadd.f32 %v1701, %v1741
    %v1743 = vpop.f32.mrb[0].mxu0
    %v1744 = vpop.f32.mrb[0].mxu0
    %1745 = vdwg.mxu0
    %1746 = vmatprep.subr.bf16.mxu0 %v1155
    %1747 = vmatpush1.bf16.msra.mxu0 %v1154
    %1748 = vmatprep.subr.bf16.mxu0 %v1163
    %1749 = vmatpush1.bf16.msra.mxu0 %v1162
    %1750 = vmatprep.subr.bf16.mxu0 %v1171
    %1751 = vmatpush1.bf16.msra.mxu0 %v1170
    %1752 = vmatprep.subr.bf16.mxu0 %v1179
    %1753 = vmatpush1.bf16.msra.mxu0 %v1178
    %1754 = vmatprep.subr.bf16.mxu0 %v1187
    %1755 = vmatpush1.bf16.msra.mxu0 %v1186
    %1756 = vmatprep.subr.bf16.mxu0 %v1195
    %1757 = vmatpush1.bf16.msra.mxu0 %v1194
    %1758 = vmatprep.subr.bf16.mxu0 %v1203
    %1759 = vmatpush1.bf16.msra.mxu0 %v1202
    %1760 = vmatprep.subr.bf16.mxu0 %v1211
    %1761 = vmatpush1.bf16.msra.mxu0 %v1210
    %1762 = vmatprep.subr.bf16.mxu0 %v1219
    %1763 = vmatpush1.bf16.msra.mxu0 %v1218
    %1764 = vmatprep.subr.bf16.mxu0 %v1227
    %1765 = vmatpush1.bf16.msra.mxu0 %v1226
    %1766 = vmatprep.subr.bf16.mxu0 %v1235
    %1767 = vmatpush1.bf16.msra.mxu0 %v1234
    %1768 = vmatprep.subr.bf16.mxu0 %v1243
    %1769 = vmatpush1.bf16.msra.mxu0 %v1242
    %1770 = vmatprep.subr.bf16.mxu0 %v1251
    %1771 = vmatpush1.bf16.msra.mxu0 %v1250
    %1772 = vmatprep.subr.bf16.mxu0 %v1259
    %1773 = vmatpush1.bf16.msra.mxu0 %v1258
    %1774 = vmatprep.subr.bf16.mxu0 %v1267
    %1775 = vmatpush1.bf16.msra.mxu0 %v1266
    %1776 = vmatprep.subr.bf16.mxu0 %v1275
    %1777 = vmatpush1.bf16.msra.mxu0 %v1274
    %1778 = vmatprep.mubr.bf16.mxu0 %v377
    %1779 = vmatmul.mubr.bf16.gmra.mrb[0].mxu0 %v370
    %v1780 = vpop.f32.mrb[0].mxu0
    %v1781 = vadd.f32 %v326, %v1780
    %v1782 = vpop.f32.mrb[0].mxu0
    %v1783 = vadd.f32 %v330, %v1782
    %v1784 = vpop.f32.mrb[0].mxu0
    %v1785 = vpop.f32.mrb[0].mxu0
    %1786 = vdwg.mxu0
    %1787 = vmatprep.subr.bf16.mxu0 %v1283
    %1788 = vmatpush1.bf16.msra.mxu0 %v1282
    %1789 = vmatprep.subr.bf16.mxu0 %v1291
    %1790 = vmatpush1.bf16.msra.mxu0 %v1290
    %1791 = vmatprep.subr.bf16.mxu0 %v1299
    %1792 = vmatpush1.bf16.msra.mxu0 %v1298
    %1793 = vmatprep.subr.bf16.mxu0 %v1307
    %1794 = vmatpush1.bf16.msra.mxu0 %v1306
    %1795 = vmatprep.subr.bf16.mxu0 %v1315
    %1796 = vmatpush1.bf16.msra.mxu0 %v1314
    %1797 = vmatprep.subr.bf16.mxu0 %v1323
    %1798 = vmatpush1.bf16.msra.mxu0 %v1322
    %1799 = vmatprep.subr.bf16.mxu0 %v1331
    %1800 = vmatpush1.bf16.msra.mxu0 %v1330
    %1801 = vmatprep.subr.bf16.mxu0 %v1339
    %1802 = vmatpush1.bf16.msra.mxu0 %v1338
    %1803 = vmatprep.subr.bf16.mxu0 %v1347
    %1804 = vmatpush1.bf16.msra.mxu0 %v1346
    %1805 = vmatprep.subr.bf16.mxu0 %v1355
    %1806 = vmatpush1.bf16.msra.mxu0 %v1354
    %1807 = vmatprep.subr.bf16.mxu0 %v1363
    %1808 = vmatpush1.bf16.msra.mxu0 %v1362
    %1809 = vmatprep.subr.bf16.mxu0 %v1371
    %1810 = vmatpush1.bf16.msra.mxu0 %v1370
    %1811 = vmatprep.subr.bf16.mxu0 %v1379
    %1812 = vmatpush1.bf16.msra.mxu0 %v1378
    %1813 = vmatprep.subr.bf16.mxu0 %v1387
    %1814 = vmatpush1.bf16.msra.mxu0 %v1386
    %1815 = vmatprep.subr.bf16.mxu0 %v1395
    %1816 = vmatpush1.bf16.msra.mxu0 %v1394
    %1817 = vmatprep.subr.bf16.mxu0 %v1403
    %1818 = vmatpush1.bf16.msra.mxu0 %v1402
    %1819 = vmatprep.mubr.bf16.mxu0 %v379
    %1820 = vmatmul.mubr.bf16.gmra.mrb[0].mxu0 %v378
    %v1821 = vpop.f32.mrb[0].mxu0
    %v1822 = vadd.f32 %v1781, %v1821
    %v1823 = vpop.f32.mrb[0].mxu0
    %v1824 = vadd.f32 %v1783, %v1823
    %v1825 = vpop.f32.mrb[0].mxu0
    %v1826 = vpop.f32.mrb[0].mxu0
    %1827 = vdwg.mxu0
    %1828 = vmatprep.subr.bf16.mxu0 %v1157
    %1829 = vmatpush1.bf16.msra.mxu0 %v1156
    %1830 = vmatprep.subr.bf16.mxu0 %v1165
    %1831 = vmatpush1.bf16.msra.mxu0 %v1164
    %1832 = vmatprep.subr.bf16.mxu0 %v1173
    %1833 = vmatpush1.bf16.msra.mxu0 %v1172
    %1834 = vmatprep.subr.bf16.mxu0 %v1181
    %1835 = vmatpush1.bf16.msra.mxu0 %v1180
    %1836 = vmatprep.subr.bf16.mxu0 %v1189
    %1837 = vmatpush1.bf16.msra.mxu0 %v1188
    %1838 = vmatprep.subr.bf16.mxu0 %v1197
    %1839 = vmatpush1.bf16.msra.mxu0 %v1196
    %1840 = vmatprep.subr.bf16.mxu0 %v1205
    %1841 = vmatpush1.bf16.msra.mxu0 %v1204
    %1842 = vmatprep.subr.bf16.mxu0 %v1213
    %1843 = vmatpush1.bf16.msra.mxu0 %v1212
    %1844 = vmatprep.subr.bf16.mxu0 %v1221
    %1845 = vmatpush1.bf16.msra.mxu0 %v1220
    %1846 = vmatprep.subr.bf16.mxu0 %v1229
    %1847 = vmatpush1.bf16.msra.mxu0 %v1228
    %1848 = vmatprep.subr.bf16.mxu0 %v1237
    %1849 = vmatpush1.bf16.msra.mxu0 %v1236
    %1850 = vmatprep.subr.bf16.mxu0 %v1245
    %1851 = vmatpush1.bf16.msra.mxu0 %v1244
    %1852 = vmatprep.subr.bf16.mxu0 %v1253
    %1853 = vmatpush1.bf16.msra.mxu0 %v1252
    %1854 = vmatprep.subr.bf16.mxu0 %v1261
    %1855 = vmatpush1.bf16.msra.mxu0 %v1260
    %1856 = vmatprep.subr.bf16.mxu0 %v1269
    %1857 = vmatpush1.bf16.msra.mxu0 %v1268
    %1858 = vmatprep.subr.bf16.mxu0 %v1277
    %1859 = vmatpush1.bf16.msra.mxu0 %v1276
    %1860 = vmatprep.mubr.bf16.mxu0 %v377
    %1861 = vmatmul.mubr.bf16.gmra.mrb[0].mxu0 %v370
    %v1862 = vpop.f32.mrb[0].mxu0
    %v1863 = vadd.f32 %v334, %v1862
    %v1864 = vpop.f32.mrb[0].mxu0
    %v1865 = vadd.f32 %v338, %v1864
    %v1866 = vpop.f32.mrb[0].mxu0
    %v1867 = vpop.f32.mrb[0].mxu0
    %1868 = vdwg.mxu0
    %1869 = vmatprep.subr.bf16.mxu0 %v1285
    %1870 = vmatpush1.bf16.msra.mxu0 %v1284
    %1871 = vmatprep.subr.bf16.mxu0 %v1293
    %1872 = vmatpush1.bf16.msra.mxu0 %v1292
    %1873 = vmatprep.subr.bf16.mxu0 %v1301
    %1874 = vmatpush1.bf16.msra.mxu0 %v1300
    %1875 = vmatprep.subr.bf16.mxu0 %v1309
    %1876 = vmatpush1.bf16.msra.mxu0 %v1308
    %1877 = vmatprep.subr.bf16.mxu0 %v1317
    %1878 = vmatpush1.bf16.msra.mxu0 %v1316
    %1879 = vmatprep.subr.bf16.mxu0 %v1325
    %1880 = vmatpush1.bf16.msra.mxu0 %v1324
    %1881 = vmatprep.subr.bf16.mxu0 %v1333
    %1882 = vmatpush1.bf16.msra.mxu0 %v1332
    %1883 = vmatprep.subr.bf16.mxu0 %v1341
    %1884 = vmatpush1.bf16.msra.mxu0 %v1340
    %1885 = vmatprep.subr.bf16.mxu0 %v1349
    %1886 = vmatpush1.bf16.msra.mxu0 %v1348
    %1887 = vmatprep.subr.bf16.mxu0 %v1357
    %1888 = vmatpush1.bf16.msra.mxu0 %v1356
    %1889 = vmatprep.subr.bf16.mxu0 %v1365
    %1890 = vmatpush1.bf16.msra.mxu0 %v1364
    %1891 = vmatprep.subr.bf16.mxu0 %v1373
    %1892 = vmatpush1.bf16.msra.mxu0 %v1372
    %1893 = vmatprep.subr.bf16.mxu0 %v1381
    %1894 = vmatpush1.bf16.msra.mxu0 %v1380
    %1895 = vmatprep.subr.bf16.mxu0 %v1389
    %1896 = vmatpush1.bf16.msra.mxu0 %v1388
    %1897 = vmatprep.subr.bf16.mxu0 %v1397
    %1898 = vmatpush1.bf16.msra.mxu0 %v1396
    %1899 = vmatprep.subr.bf16.mxu0 %v1405
    %1900 = vmatpush1.bf16.msra.mxu0 %v1404
    %1901 = vmatprep.mubr.bf16.mxu0 %v379
    %1902 = vmatmul.mubr.bf16.gmra.mrb[0].mxu0 %v378
    %v1903 = vpop.f32.mrb[0].mxu0
    %v1904 = vadd.f32 %v1863, %v1903
    %v1905 = vpop.f32.mrb[0].mxu0
    %v1906 = vadd.f32 %v1865, %v1905
    %v1907 = vpop.f32.mrb[0].mxu0
    %v1908 = vpop.f32.mrb[0].mxu0
    %1909 = vdwg.mxu0
    %1910 = vmatprep.subr.bf16.mxu0 %v1159
    %1911 = vmatpush1.bf16.msra.mxu0 %v1158
    %1912 = vmatprep.subr.bf16.mxu0 %v1167
    %1913 = vmatpush1.bf16.msra.mxu0 %v1166
    %1914 = vmatprep.subr.bf16.mxu0 %v1175
    %1915 = vmatpush1.bf16.msra.mxu0 %v1174
    %1916 = vmatprep.subr.bf16.mxu0 %v1183
    %1917 = vmatpush1.bf16.msra.mxu0 %v1182
    %1918 = vmatprep.subr.bf16.mxu0 %v1191
    %1919 = vmatpush1.bf16.msra.mxu0 %v1190
    %1920 = vmatprep.subr.bf16.mxu0 %v1199
    %1921 = vmatpush1.bf16.msra.mxu0 %v1198
    %1922 = vmatprep.subr.bf16.mxu0 %v1207
    %1923 = vmatpush1.bf16.msra.mxu0 %v1206
    %1924 = vmatprep.subr.bf16.mxu0 %v1215
    %1925 = vmatpush1.bf16.msra.mxu0 %v1214
    %1926 = vmatprep.subr.bf16.mxu0 %v1223
    %1927 = vmatpush1.bf16.msra.mxu0 %v1222
    %1928 = vmatprep.subr.bf16.mxu0 %v1231
    %1929 = vmatpush1.bf16.msra.mxu0 %v1230
    %1930 = vmatprep.subr.bf16.mxu0 %v1239
    %1931 = vmatpush1.bf16.msra.mxu0 %v1238
    %1932 = vmatprep.subr.bf16.mxu0 %v1247
    %1933 = vmatpush1.bf16.msra.mxu0 %v1246
    %1934 = vmatprep.subr.bf16.mxu0 %v1255
    %1935 = vmatpush1.bf16.msra.mxu0 %v1254
    %1936 = vmatprep.subr.bf16.mxu0 %v1263
    %1937 = vmatpush1.bf16.msra.mxu0 %v1262
    %1938 = vmatprep.subr.bf16.mxu0 %v1271
    %1939 = vmatpush1.bf16.msra.mxu0 %v1270
    %1940 = vmatprep.subr.bf16.mxu0 %v1279
    %1941 = vmatpush1.bf16.msra.mxu0 %v1278
    %1942 = vmatprep.mubr.bf16.mxu0 %v377
    %1943 = vmatmul.mubr.bf16.gmra.mrb[0].mxu0 %v370
    %v1944 = vpop.f32.mrb[0].mxu0
    %v1945 = vadd.f32 %v342, %v1944
    %v1946 = vpop.f32.mrb[0].mxu0
    %v1947 = vadd.f32 %v346, %v1946
    %v1948 = vpop.f32.mrb[0].mxu0
    %v1949 = vpop.f32.mrb[0].mxu0
    %1950 = vdwg.mxu0
    %1951 = vmatprep.subr.bf16.mxu0 %v1287
    %1952 = vmatpush1.bf16.msra.mxu0 %v1286
    %1953 = vmatprep.subr.bf16.mxu0 %v1295
    %1954 = vmatpush1.bf16.msra.mxu0 %v1294
    %1955 = vmatprep.subr.bf16.mxu0 %v1303
    %1956 = vmatpush1.bf16.msra.mxu0 %v1302
    %1957 = vmatprep.subr.bf16.mxu0 %v1311
    %1958 = vmatpush1.bf16.msra.mxu0 %v1310
    %1959 = vmatprep.subr.bf16.mxu0 %v1319
    %1960 = vmatpush1.bf16.msra.mxu0 %v1318
    %1961 = vmatprep.subr.bf16.mxu0 %v1327
    %1962 = vmatpush1.bf16.msra.mxu0 %v1326
    %1963 = vmatprep.subr.bf16.mxu0 %v1335
    %1964 = vmatpush1.bf16.msra.mxu0 %v1334
    %1965 = vmatprep.subr.bf16.mxu0 %v1343
    %1966 = vmatpush1.bf16.msra.mxu0 %v1342
    %1967 = vmatprep.subr.bf16.mxu0 %v1351
    %1968 = vmatpush1.bf16.msra.mxu0 %v1350
    %1969 = vmatprep.subr.bf16.mxu0 %v1359
    %1970 = vmatpush1.bf16.msra.mxu0 %v1358
    %1971 = vmatprep.subr.bf16.mxu0 %v1367
    %1972 = vmatpush1.bf16.msra.mxu0 %v1366
    %1973 = vmatprep.subr.bf16.mxu0 %v1375
    %1974 = vmatpush1.bf16.msra.mxu0 %v1374
    %1975 = vmatprep.subr.bf16.mxu0 %v1383
    %1976 = vmatpush1.bf16.msra.mxu0 %v1382
    %1977 = vmatprep.subr.bf16.mxu0 %v1391
    %1978 = vmatpush1.bf16.msra.mxu0 %v1390
    %1979 = vmatprep.subr.bf16.mxu0 %v1399
    %1980 = vmatpush1.bf16.msra.mxu0 %v1398
    %1981 = vmatprep.subr.bf16.mxu0 %v1407
    %1982 = vmatpush1.bf16.msra.mxu0 %v1406
    %1983 = vmatprep.mubr.bf16.mxu0 %v379
    %1984 = vmatmul.mubr.bf16.gmra.mrb[0].mxu0 %v378
    %v1985 = vpop.f32.mrb[0].mxu0
    %v1986 = vadd.f32 %v1945, %v1985
    %v1987 = vpop.f32.mrb[0].mxu0
    %v1988 = vadd.f32 %v1947, %v1987
    %v1989 = vpop.f32.mrb[0].mxu0
    %v1990 = vpop.f32.mrb[0].mxu0
    %1991 = vdwg.mxu0
    %vm1992 = vcmp.gt.f32.partialorder %v1740, 0.0
    %vm1993 = vcmp.gt.f32.partialorder %v1742, 0.0
    %vm1994 = vcmp.gt.f32.partialorder %v1822, 0.0
    %vm1995 = vcmp.gt.f32.partialorder %v1824, 0.0
    %vm1996 = vcmp.gt.f32.partialorder %v1904, 0.0
    %vm1997 = vcmp.gt.f32.partialorder %v1906, 0.0
    %vm1998 = vcmp.gt.f32.partialorder %v1986, 0.0
    %vm1999 = vcmp.gt.f32.partialorder %v1988, 0.0
    %v2000 = vmin.f32 %v1740, 0.0
    %v2001 = vmin.f32 %v1742, 0.0
    %v2002 = vmin.f32 %v1822, 0.0
    %v2003 = vmin.f32 %v1824, 0.0
    %v2004 = vmin.f32 %v1904, 0.0
    %v2005 = vmin.f32 %v1906, 0.0
    %v2006 = vmin.f32 %v1986, 0.0
    %v2007 = vmin.f32 %v1988, 0.0
    %v2008 = vmul.f32 %v2000, 1.442695
    %v2009 = vpow.pop %v2008
    %v2010 = vmul.f32 %v2001, 1.442695
    %v2011 = vpow.pop %v2010
    %v2012 = vmul.f32 %v2002, 1.442695
    %v2013 = vpow.pop %v2012
    %v2014 = vmul.f32 %v2003, 1.442695
    %v2015 = vpow.pop %v2014
    %v2016 = vmul.f32 %v2004, 1.442695
    %v2017 = vpow.pop %v2016
    %v2018 = vmul.f32 %v2005, 1.442695
    %v2019 = vpow.pop %v2018
    %v2020 = vmul.f32 %v2006, 1.442695
    %v2021 = vpow.pop %v2020
    %v2022 = vmul.f32 %v2007, 1.442695
    %v2023 = vpow.pop %v2022
    %v2024 = vsub.f32 %v2009, 1.0
    %v2025 = vsub.f32 %v2011, 1.0
    %v2026 = vsub.f32 %v2013, 1.0
    %v2027 = vsub.f32 %v2015, 1.0
    %v2028 = vsub.f32 %v2017, 1.0
    %v2029 = vsub.f32 %v2019, 1.0
    %v2030 = vsub.f32 %v2021, 1.0
    %v2031 = vsub.f32 %v2023, 1.0
    %v2032 = vsel %vm1992, %v1740, %v2024
    %v2033 = vsel %vm1993, %v1742, %v2025
    %v2034 = vsel %vm1994, %v1822, %v2026
    %v2035 = vsel %vm1995, %v1824, %v2027
    %v2036 = vsel %vm1996, %v1904, %v2028
    %v2037 = vsel %vm1997, %v1906, %v2029
    %v2038 = vsel %vm1998, %v1986, %v2030
    %v2039 = vsel %vm1999, %v1988, %v2031
    %2041 = vrot.lane.b32.xlu0 %v2032, 124
    %v2042 = vpop.permute.xlu0 %2041
    %2044 = vrot.lane.b32.xlu0 %v2032, 120
    %v2045 = vpop.permute.xlu0 %2044
    %2047 = vrot.lane.b32.xlu0 %v2032, 116
    %v2048 = vpop.permute.xlu0 %2047
    %2050 = vrot.lane.b32.xlu0 %v2032, 112
    %v2051 = vpop.permute.xlu0 %2050
    %2053 = vrot.lane.b32.xlu0 %v2032, 108
    %v2054 = vpop.permute.xlu0 %2053
    %2056 = vrot.lane.b32.xlu0 %v2032, 104
    %v2057 = vpop.permute.xlu0 %2056
    %2059 = vrot.lane.b32.xlu0 %v2032, 100
    %v2060 = vpop.permute.xlu0 %2059
    %2062 = vrot.lane.b32.xlu0 %v2032, 96
    %v2063 = vpop.permute.xlu0 %2062
    %2065 = vrot.lane.b32.xlu0 %v2032, 92
    %v2066 = vpop.permute.xlu0 %2065
    %2068 = vrot.lane.b32.xlu0 %v2032, 88
    %v2069 = vpop.permute.xlu0 %2068
    %2071 = vrot.lane.b32.xlu0 %v2032, 84
    %v2072 = vpop.permute.xlu0 %2071
    %2074 = vrot.lane.b32.xlu0 %v2032, 80
    %v2075 = vpop.permute.xlu0 %2074
    %2077 = vrot.lane.b32.xlu0 %v2032, 76
    %v2078 = vpop.permute.xlu0 %2077
    %2080 = vrot.lane.b32.xlu0 %v2032, 72
    %v2081 = vpop.permute.xlu0 %2080
    %2083 = vrot.lane.b32.xlu0 %v2032, 68
    %v2084 = vpop.permute.xlu0 %2083
    %2086 = vrot.lane.b32.xlu0 %v2032, 64
    %v2087 = vpop.permute.xlu0 %2086
    %2089 = vrot.lane.b32.xlu0 %v2032, 60
    %v2090 = vpop.permute.xlu0 %2089
    %2092 = vrot.lane.b32.xlu0 %v2032, 56
    %v2093 = vpop.permute.xlu0 %2092
    %2095 = vrot.lane.b32.xlu0 %v2032, 52
    %v2096 = vpop.permute.xlu0 %2095
    %2098 = vrot.lane.b32.xlu0 %v2032, 48
    %v2099 = vpop.permute.xlu0 %2098
    %2101 = vrot.lane.b32.xlu0 %v2032, 44
    %v2102 = vpop.permute.xlu0 %2101
    %2104 = vrot.lane.b32.xlu0 %v2032, 40
    %v2105 = vpop.permute.xlu0 %2104
    %2107 = vrot.lane.b32.xlu0 %v2032, 36
    %v2108 = vpop.permute.xlu0 %2107
    %2110 = vrot.lane.b32.xlu0 %v2032, 32
    %v2111 = vpop.permute.xlu0 %2110
    %2113 = vrot.lane.b32.xlu0 %v2032, 28
    %v2114 = vpop.permute.xlu0 %2113
    %2116 = vrot.lane.b32.xlu0 %v2032, 24
    %v2117 = vpop.permute.xlu0 %2116
    %2119 = vrot.lane.b32.xlu0 %v2032, 20
    %v2120 = vpop.permute.xlu0 %2119
    %2122 = vrot.lane.b32.xlu0 %v2032, 16
    %v2123 = vpop.permute.xlu0 %2122
    %2125 = vrot.lane.b32.xlu0 %v2032, 12
    %v2126 = vpop.permute.xlu0 %2125
    %2128 = vrot.lane.b32.xlu0 %v2032, 8
    %v2129 = vpop.permute.xlu0 %2128
    %2131 = vrot.lane.b32.xlu0 %v2032, 4
    %v2132 = vpop.permute.xlu0 %2131
    %2135 = vrot.lane.b32.xlu0 %v2033, 124
    %v2136 = vpop.permute.xlu0 %2135
    %2138 = vrot.lane.b32.xlu0 %v2033, 120
    %v2139 = vpop.permute.xlu0 %2138
    %2141 = vrot.lane.b32.xlu0 %v2033, 116
    %v2142 = vpop.permute.xlu0 %2141
    %2144 = vrot.lane.b32.xlu0 %v2033, 112
    %v2145 = vpop.permute.xlu0 %2144
    %2147 = vrot.lane.b32.xlu0 %v2033, 108
    %v2148 = vpop.permute.xlu0 %2147
    %2150 = vrot.lane.b32.xlu0 %v2033, 104
    %v2151 = vpop.permute.xlu0 %2150
    %2153 = vrot.lane.b32.xlu0 %v2033, 100
    %v2154 = vpop.permute.xlu0 %2153
    %2156 = vrot.lane.b32.xlu0 %v2033, 96
    %v2157 = vpop.permute.xlu0 %2156
    %2159 = vrot.lane.b32.xlu0 %v2033, 92
    %v2160 = vpop.permute.xlu0 %2159
    %2162 = vrot.lane.b32.xlu0 %v2033, 88
    %v2163 = vpop.permute.xlu0 %2162
    %2165 = vrot.lane.b32.xlu0 %v2033, 84
    %v2166 = vpop.permute.xlu0 %2165
    %2168 = vrot.lane.b32.xlu0 %v2033, 80
    %v2169 = vpop.permute.xlu0 %2168
    %2171 = vrot.lane.b32.xlu0 %v2033, 76
    %v2172 = vpop.permute.xlu0 %2171
    %2174 = vrot.lane.b32.xlu0 %v2033, 72
    %v2175 = vpop.permute.xlu0 %2174
    %2177 = vrot.lane.b32.xlu0 %v2033, 68
    %v2178 = vpop.permute.xlu0 %2177
    %2180 = vrot.lane.b32.xlu0 %v2033, 64
    %v2181 = vpop.permute.xlu0 %2180
    %2183 = vrot.lane.b32.xlu0 %v2033, 60
    %v2184 = vpop.permute.xlu0 %2183
    %2186 = vrot.lane.b32.xlu0 %v2033, 56
    %v2187 = vpop.permute.xlu0 %2186
    %2189 = vrot.lane.b32.xlu0 %v2033, 52
    %v2190 = vpop.permute.xlu0 %2189
    %2192 = vrot.lane.b32.xlu0 %v2033, 48
    %v2193 = vpop.permute.xlu0 %2192
    %2195 = vrot.lane.b32.xlu0 %v2033, 44
    %v2196 = vpop.permute.xlu0 %2195
    %2198 = vrot.lane.b32.xlu0 %v2033, 40
    %v2199 = vpop.permute.xlu0 %2198
    %2201 = vrot.lane.b32.xlu0 %v2033, 36
    %v2202 = vpop.permute.xlu0 %2201
    %2204 = vrot.lane.b32.xlu0 %v2033, 32
    %v2205 = vpop.permute.xlu0 %2204
    %2207 = vrot.lane.b32.xlu0 %v2033, 28
    %v2208 = vpop.permute.xlu0 %2207
    %2210 = vrot.lane.b32.xlu0 %v2033, 24
    %v2211 = vpop.permute.xlu0 %2210
    %2213 = vrot.lane.b32.xlu0 %v2033, 20
    %v2214 = vpop.permute.xlu0 %2213
    %2216 = vrot.lane.b32.xlu0 %v2033, 16
    %v2217 = vpop.permute.xlu0 %2216
    %2219 = vrot.lane.b32.xlu0 %v2033, 12
    %v2220 = vpop.permute.xlu0 %2219
    %2222 = vrot.lane.b32.xlu0 %v2033, 8
    %v2223 = vpop.permute.xlu0 %2222
    %2225 = vrot.lane.b32.xlu0 %v2033, 4
    %v2226 = vpop.permute.xlu0 %2225
    %2229 = vrot.lane.b32.xlu0 %v2034, 124
    %v2230 = vpop.permute.xlu0 %2229
    %2232 = vrot.lane.b32.xlu0 %v2034, 120
    %v2233 = vpop.permute.xlu0 %2232
    %2235 = vrot.lane.b32.xlu0 %v2034, 116
    %v2236 = vpop.permute.xlu0 %2235
    %2238 = vrot.lane.b32.xlu0 %v2034, 112
    %v2239 = vpop.permute.xlu0 %2238
    %2241 = vrot.lane.b32.xlu0 %v2034, 108
    %v2242 = vpop.permute.xlu0 %2241
    %2244 = vrot.lane.b32.xlu0 %v2034, 104
    %v2245 = vpop.permute.xlu0 %2244
    %2247 = vrot.lane.b32.xlu0 %v2034, 100
    %v2248 = vpop.permute.xlu0 %2247
    %2250 = vrot.lane.b32.xlu0 %v2034, 96
    %v2251 = vpop.permute.xlu0 %2250
    %2253 = vrot.lane.b32.xlu0 %v2034, 92
    %v2254 = vpop.permute.xlu0 %2253
    %2256 = vrot.lane.b32.xlu0 %v2034, 88
    %v2257 = vpop.permute.xlu0 %2256
    %2259 = vrot.lane.b32.xlu0 %v2034, 84
    %v2260 = vpop.permute.xlu0 %2259
    %2262 = vrot.lane.b32.xlu0 %v2034, 80
    %v2263 = vpop.permute.xlu0 %2262
    %2265 = vrot.lane.b32.xlu0 %v2034, 76
    %v2266 = vpop.permute.xlu0 %2265
    %2268 = vrot.lane.b32.xlu0 %v2034, 72
    %v2269 = vpop.permute.xlu0 %2268
    %2271 = vrot.lane.b32.xlu0 %v2034, 68
    %v2272 = vpop.permute.xlu0 %2271
    %2274 = vrot.lane.b32.xlu0 %v2034, 64
    %v2275 = vpop.permute.xlu0 %2274
    %2277 = vrot.lane.b32.xlu0 %v2034, 60
    %v2278 = vpop.permute.xlu0 %2277
    %2280 = vrot.lane.b32.xlu0 %v2034, 56
    %v2281 = vpop.permute.xlu0 %2280
    %2283 = vrot.lane.b32.xlu0 %v2034, 52
    %v2284 = vpop.permute.xlu0 %2283
    %2286 = vrot.lane.b32.xlu0 %v2034, 48
    %v2287 = vpop.permute.xlu0 %2286
    %2289 = vrot.lane.b32.xlu0 %v2034, 44
    %v2290 = vpop.permute.xlu0 %2289
    %2292 = vrot.lane.b32.xlu0 %v2034, 40
    %v2293 = vpop.permute.xlu0 %2292
    %2295 = vrot.lane.b32.xlu0 %v2034, 36
    %v2296 = vpop.permute.xlu0 %2295
    %2298 = vrot.lane.b32.xlu0 %v2034, 32
    %v2299 = vpop.permute.xlu0 %2298
    %2301 = vrot.lane.b32.xlu0 %v2034, 28
    %v2302 = vpop.permute.xlu0 %2301
    %2304 = vrot.lane.b32.xlu0 %v2034, 24
    %v2305 = vpop.permute.xlu0 %2304
    %2307 = vrot.lane.b32.xlu0 %v2034, 20
    %v2308 = vpop.permute.xlu0 %2307
    %2310 = vrot.lane.b32.xlu0 %v2034, 16
    %v2311 = vpop.permute.xlu0 %2310
    %2313 = vrot.lane.b32.xlu0 %v2034, 12
    %v2314 = vpop.permute.xlu0 %2313
    %2316 = vrot.lane.b32.xlu0 %v2034, 8
    %v2317 = vpop.permute.xlu0 %2316
    %2319 = vrot.lane.b32.xlu0 %v2034, 4
    %v2320 = vpop.permute.xlu0 %2319
    %2323 = vrot.lane.b32.xlu0 %v2035, 124
    %v2324 = vpop.permute.xlu0 %2323
    %2326 = vrot.lane.b32.xlu0 %v2035, 120
    %v2327 = vpop.permute.xlu0 %2326
    %2329 = vrot.lane.b32.xlu0 %v2035, 116
    %v2330 = vpop.permute.xlu0 %2329
    %2332 = vrot.lane.b32.xlu0 %v2035, 112
    %v2333 = vpop.permute.xlu0 %2332
    %2335 = vrot.lane.b32.xlu0 %v2035, 108
    %v2336 = vpop.permute.xlu0 %2335
    %2338 = vrot.lane.b32.xlu0 %v2035, 104
    %v2339 = vpop.permute.xlu0 %2338
    %2341 = vrot.lane.b32.xlu0 %v2035, 100
    %v2342 = vpop.permute.xlu0 %2341
    %2344 = vrot.lane.b32.xlu0 %v2035, 96
    %v2345 = vpop.permute.xlu0 %2344
    %2347 = vrot.lane.b32.xlu0 %v2035, 92
    %v2348 = vpop.permute.xlu0 %2347
    %2350 = vrot.lane.b32.xlu0 %v2035, 88
    %v2351 = vpop.permute.xlu0 %2350
    %2353 = vrot.lane.b32.xlu0 %v2035, 84
    %v2354 = vpop.permute.xlu0 %2353
    %2356 = vrot.lane.b32.xlu0 %v2035, 80
    %v2357 = vpop.permute.xlu0 %2356
    %2359 = vrot.lane.b32.xlu0 %v2035, 76
    %v2360 = vpop.permute.xlu0 %2359
    %2362 = vrot.lane.b32.xlu0 %v2035, 72
    %v2363 = vpop.permute.xlu0 %2362
    %2365 = vrot.lane.b32.xlu0 %v2035, 68
    %v2366 = vpop.permute.xlu0 %2365
    %2368 = vrot.lane.b32.xlu0 %v2035, 64
    %v2369 = vpop.permute.xlu0 %2368
    %2371 = vrot.lane.b32.xlu0 %v2035, 60
    %v2372 = vpop.permute.xlu0 %2371
    %2374 = vrot.lane.b32.xlu0 %v2035, 56
    %v2375 = vpop.permute.xlu0 %2374
    %2377 = vrot.lane.b32.xlu0 %v2035, 52
    %v2378 = vpop.permute.xlu0 %2377
    %2380 = vrot.lane.b32.xlu0 %v2035, 48
    %v2381 = vpop.permute.xlu0 %2380
    %2383 = vrot.lane.b32.xlu0 %v2035, 44
    %v2384 = vpop.permute.xlu0 %2383
    %2386 = vrot.lane.b32.xlu0 %v2035, 40
    %v2387 = vpop.permute.xlu0 %2386
    %2389 = vrot.lane.b32.xlu0 %v2035, 36
    %v2390 = vpop.permute.xlu0 %2389
    %2392 = vrot.lane.b32.xlu0 %v2035, 32
    %v2393 = vpop.permute.xlu0 %2392
    %2395 = vrot.lane.b32.xlu0 %v2035, 28
    %v2396 = vpop.permute.xlu0 %2395
    %2398 = vrot.lane.b32.xlu0 %v2035, 24
    %v2399 = vpop.permute.xlu0 %2398
    %2401 = vrot.lane.b32.xlu0 %v2035, 20
    %v2402 = vpop.permute.xlu0 %2401
    %2404 = vrot.lane.b32.xlu0 %v2035, 16
    %v2405 = vpop.permute.xlu0 %2404
    %2407 = vrot.lane.b32.xlu0 %v2035, 12
    %v2408 = vpop.permute.xlu0 %2407
    %2410 = vrot.lane.b32.xlu0 %v2035, 8
    %v2411 = vpop.permute.xlu0 %2410
    %2413 = vrot.lane.b32.xlu0 %v2035, 4
    %v2414 = vpop.permute.xlu0 %2413
    %2417 = vrot.lane.b32.xlu0 %v2036, 124
    %v2418 = vpop.permute.xlu0 %2417
    %2420 = vrot.lane.b32.xlu0 %v2036, 120
    %v2421 = vpop.permute.xlu0 %2420
    %2423 = vrot.lane.b32.xlu0 %v2036, 116
    %v2424 = vpop.permute.xlu0 %2423
    %2426 = vrot.lane.b32.xlu0 %v2036, 112
    %v2427 = vpop.permute.xlu0 %2426
    %2429 = vrot.lane.b32.xlu0 %v2036, 108
    %v2430 = vpop.permute.xlu0 %2429
    %2432 = vrot.lane.b32.xlu0 %v2036, 104
    %v2433 = vpop.permute.xlu0 %2432
    %2435 = vrot.lane.b32.xlu0 %v2036, 100
    %v2436 = vpop.permute.xlu0 %2435
    %2438 = vrot.lane.b32.xlu0 %v2036, 96
    %v2439 = vpop.permute.xlu0 %2438
    %2441 = vrot.lane.b32.xlu0 %v2036, 92
    %v2442 = vpop.permute.xlu0 %2441
    %2444 = vrot.lane.b32.xlu0 %v2036, 88
    %v2445 = vpop.permute.xlu0 %2444
    %2447 = vrot.lane.b32.xlu0 %v2036, 84
    %v2448 = vpop.permute.xlu0 %2447
    %2450 = vrot.lane.b32.xlu0 %v2036, 80
    %v2451 = vpop.permute.xlu0 %2450
    %2453 = vrot.lane.b32.xlu0 %v2036, 76
    %v2454 = vpop.permute.xlu0 %2453
    %2456 = vrot.lane.b32.xlu0 %v2036, 72
    %v2457 = vpop.permute.xlu0 %2456
    %2459 = vrot.lane.b32.xlu0 %v2036, 68
    %v2460 = vpop.permute.xlu0 %2459
    %2462 = vrot.lane.b32.xlu0 %v2036, 64
    %v2463 = vpop.permute.xlu0 %2462
    %2465 = vrot.lane.b32.xlu0 %v2036, 60
    %v2466 = vpop.permute.xlu0 %2465
    %2468 = vrot.lane.b32.xlu0 %v2036, 56
    %v2469 = vpop.permute.xlu0 %2468
    %2471 = vrot.lane.b32.xlu0 %v2036, 52
    %v2472 = vpop.permute.xlu0 %2471
    %2474 = vrot.lane.b32.xlu0 %v2036, 48
    %v2475 = vpop.permute.xlu0 %2474
    %2477 = vrot.lane.b32.xlu0 %v2036, 44
    %v2478 = vpop.permute.xlu0 %2477
    %2480 = vrot.lane.b32.xlu0 %v2036, 40
    %v2481 = vpop.permute.xlu0 %2480
    %2483 = vrot.lane.b32.xlu0 %v2036, 36
    %v2484 = vpop.permute.xlu0 %2483
    %2486 = vrot.lane.b32.xlu0 %v2036, 32
    %v2487 = vpop.permute.xlu0 %2486
    %2489 = vrot.lane.b32.xlu0 %v2036, 28
    %v2490 = vpop.permute.xlu0 %2489
    %2492 = vrot.lane.b32.xlu0 %v2036, 24
    %v2493 = vpop.permute.xlu0 %2492
    %2495 = vrot.lane.b32.xlu0 %v2036, 20
    %v2496 = vpop.permute.xlu0 %2495
    %2498 = vrot.lane.b32.xlu0 %v2036, 16
    %v2499 = vpop.permute.xlu0 %2498
    %2501 = vrot.lane.b32.xlu0 %v2036, 12
    %v2502 = vpop.permute.xlu0 %2501
    %2504 = vrot.lane.b32.xlu0 %v2036, 8
    %v2505 = vpop.permute.xlu0 %2504
    %2507 = vrot.lane.b32.xlu0 %v2036, 4
    %v2508 = vpop.permute.xlu0 %2507
    %2511 = vrot.lane.b32.xlu0 %v2037, 124
    %v2512 = vpop.permute.xlu0 %2511
    %2514 = vrot.lane.b32.xlu0 %v2037, 120
    %v2515 = vpop.permute.xlu0 %2514
    %2517 = vrot.lane.b32.xlu0 %v2037, 116
    %v2518 = vpop.permute.xlu0 %2517
    %2520 = vrot.lane.b32.xlu0 %v2037, 112
    %v2521 = vpop.permute.xlu0 %2520
    %2523 = vrot.lane.b32.xlu0 %v2037, 108
    %v2524 = vpop.permute.xlu0 %2523
    %2526 = vrot.lane.b32.xlu0 %v2037, 104
    %v2527 = vpop.permute.xlu0 %2526
    %2529 = vrot.lane.b32.xlu0 %v2037, 100
    %v2530 = vpop.permute.xlu0 %2529
    %2532 = vrot.lane.b32.xlu0 %v2037, 96
    %v2533 = vpop.permute.xlu0 %2532
    %2535 = vrot.lane.b32.xlu0 %v2037, 92
    %v2536 = vpop.permute.xlu0 %2535
    %2538 = vrot.lane.b32.xlu0 %v2037, 88
    %v2539 = vpop.permute.xlu0 %2538
    %2541 = vrot.lane.b32.xlu0 %v2037, 84
    %v2542 = vpop.permute.xlu0 %2541
    %2544 = vrot.lane.b32.xlu0 %v2037, 80
    %v2545 = vpop.permute.xlu0 %2544
    %2547 = vrot.lane.b32.xlu0 %v2037, 76
    %v2548 = vpop.permute.xlu0 %2547
    %2550 = vrot.lane.b32.xlu0 %v2037, 72
    %v2551 = vpop.permute.xlu0 %2550
    %2553 = vrot.lane.b32.xlu0 %v2037, 68
    %v2554 = vpop.permute.xlu0 %2553
    %2556 = vrot.lane.b32.xlu0 %v2037, 64
    %v2557 = vpop.permute.xlu0 %2556
    %2559 = vrot.lane.b32.xlu0 %v2037, 60
    %v2560 = vpop.permute.xlu0 %2559
    %2562 = vrot.lane.b32.xlu0 %v2037, 56
    %v2563 = vpop.permute.xlu0 %2562
    %2565 = vrot.lane.b32.xlu0 %v2037, 52
    %v2566 = vpop.permute.xlu0 %2565
    %2568 = vrot.lane.b32.xlu0 %v2037, 48
    %v2569 = vpop.permute.xlu0 %2568
    %2571 = vrot.lane.b32.xlu0 %v2037, 44
    %v2572 = vpop.permute.xlu0 %2571
    %2574 = vrot.lane.b32.xlu0 %v2037, 40
    %v2575 = vpop.permute.xlu0 %2574
    %2577 = vrot.lane.b32.xlu0 %v2037, 36
    %v2578 = vpop.permute.xlu0 %2577
    %2580 = vrot.lane.b32.xlu0 %v2037, 32
    %v2581 = vpop.permute.xlu0 %2580
    %2583 = vrot.lane.b32.xlu0 %v2037, 28
    %v2584 = vpop.permute.xlu0 %2583
    %2586 = vrot.lane.b32.xlu0 %v2037, 24
    %v2587 = vpop.permute.xlu0 %2586
    %2589 = vrot.lane.b32.xlu0 %v2037, 20
    %v2590 = vpop.permute.xlu0 %2589
    %2592 = vrot.lane.b32.xlu0 %v2037, 16
    %v2593 = vpop.permute.xlu0 %2592
    %2595 = vrot.lane.b32.xlu0 %v2037, 12
    %v2596 = vpop.permute.xlu0 %2595
    %2598 = vrot.lane.b32.xlu0 %v2037, 8
    %v2599 = vpop.permute.xlu0 %2598
    %2601 = vrot.lane.b32.xlu0 %v2037, 4
    %v2602 = vpop.permute.xlu0 %2601
    %2605 = vrot.lane.b32.xlu0 %v2038, 124
    %v2606 = vpop.permute.xlu0 %2605
    %2608 = vrot.lane.b32.xlu0 %v2038, 120
    %v2609 = vpop.permute.xlu0 %2608
    %2611 = vrot.lane.b32.xlu0 %v2038, 116
    %v2612 = vpop.permute.xlu0 %2611
    %2614 = vrot.lane.b32.xlu0 %v2038, 112
    %v2615 = vpop.permute.xlu0 %2614
    %2617 = vrot.lane.b32.xlu0 %v2038, 108
    %v2618 = vpop.permute.xlu0 %2617
    %2620 = vrot.lane.b32.xlu0 %v2038, 104
    %v2621 = vpop.permute.xlu0 %2620
    %2623 = vrot.lane.b32.xlu0 %v2038, 100
    %v2624 = vpop.permute.xlu0 %2623
    %2626 = vrot.lane.b32.xlu0 %v2038, 96
    %v2627 = vpop.permute.xlu0 %2626
    %2629 = vrot.lane.b32.xlu0 %v2038, 92
    %v2630 = vpop.permute.xlu0 %2629
    %2632 = vrot.lane.b32.xlu0 %v2038, 88
    %v2633 = vpop.permute.xlu0 %2632
    %2635 = vrot.lane.b32.xlu0 %v2038, 84
    %v2636 = vpop.permute.xlu0 %2635
    %2638 = vrot.lane.b32.xlu0 %v2038, 80
    %v2639 = vpop.permute.xlu0 %2638
    %2641 = vrot.lane.b32.xlu0 %v2038, 76
    %v2642 = vpop.permute.xlu0 %2641
    %2644 = vrot.lane.b32.xlu0 %v2038, 72
    %v2645 = vpop.permute.xlu0 %2644
    %2647 = vrot.lane.b32.xlu0 %v2038, 68
    %v2648 = vpop.permute.xlu0 %2647
    %2650 = vrot.lane.b32.xlu0 %v2038, 64
    %v2651 = vpop.permute.xlu0 %2650
    %2653 = vrot.lane.b32.xlu0 %v2038, 60
    %v2654 = vpop.permute.xlu0 %2653
    %2656 = vrot.lane.b32.xlu0 %v2038, 56
    %v2657 = vpop.permute.xlu0 %2656
    %2659 = vrot.lane.b32.xlu0 %v2038, 52
    %v2660 = vpop.permute.xlu0 %2659
    %2662 = vrot.lane.b32.xlu0 %v2038, 48
    %v2663 = vpop.permute.xlu0 %2662
    %2665 = vrot.lane.b32.xlu0 %v2038, 44
    %v2666 = vpop.permute.xlu0 %2665
    %2668 = vrot.lane.b32.xlu0 %v2038, 40
    %v2669 = vpop.permute.xlu0 %2668
    %2671 = vrot.lane.b32.xlu0 %v2038, 36
    %v2672 = vpop.permute.xlu0 %2671
    %2674 = vrot.lane.b32.xlu0 %v2038, 32
    %v2675 = vpop.permute.xlu0 %2674
    %2677 = vrot.lane.b32.xlu0 %v2038, 28
    %v2678 = vpop.permute.xlu0 %2677
    %2680 = vrot.lane.b32.xlu0 %v2038, 24
    %v2681 = vpop.permute.xlu0 %2680
    %2683 = vrot.lane.b32.xlu0 %v2038, 20
    %v2684 = vpop.permute.xlu0 %2683
    %2686 = vrot.lane.b32.xlu0 %v2038, 16
    %v2687 = vpop.permute.xlu0 %2686
    %2689 = vrot.lane.b32.xlu0 %v2038, 12
    %v2690 = vpop.permute.xlu0 %2689
    %2692 = vrot.lane.b32.xlu0 %v2038, 8
    %v2693 = vpop.permute.xlu0 %2692
    %2695 = vrot.lane.b32.xlu0 %v2038, 4
    %v2696 = vpop.permute.xlu0 %2695
    %2699 = vrot.lane.b32.xlu0 %v2039, 124
    %v2700 = vpop.permute.xlu0 %2699
    %2702 = vrot.lane.b32.xlu0 %v2039, 120
    %v2703 = vpop.permute.xlu0 %2702
    %2705 = vrot.lane.b32.xlu0 %v2039, 116
    %v2706 = vpop.permute.xlu0 %2705
    %2708 = vrot.lane.b32.xlu0 %v2039, 112
    %v2709 = vpop.permute.xlu0 %2708
    %2711 = vrot.lane.b32.xlu0 %v2039, 108
    %v2712 = vpop.permute.xlu0 %2711
    %2714 = vrot.lane.b32.xlu0 %v2039, 104
    %v2715 = vpop.permute.xlu0 %2714
    %2717 = vrot.lane.b32.xlu0 %v2039, 100
    %v2718 = vpop.permute.xlu0 %2717
    %2720 = vrot.lane.b32.xlu0 %v2039, 96
    %v2721 = vpop.permute.xlu0 %2720
    %2723 = vrot.lane.b32.xlu0 %v2039, 92
    %v2724 = vpop.permute.xlu0 %2723
    %2726 = vrot.lane.b32.xlu0 %v2039, 88
    %v2727 = vpop.permute.xlu0 %2726
    %2729 = vrot.lane.b32.xlu0 %v2039, 84
    %v2730 = vpop.permute.xlu0 %2729
    %2732 = vrot.lane.b32.xlu0 %v2039, 80
    %v2733 = vpop.permute.xlu0 %2732
    %2735 = vrot.lane.b32.xlu0 %v2039, 76
    %v2736 = vpop.permute.xlu0 %2735
    %2738 = vrot.lane.b32.xlu0 %v2039, 72
    %v2739 = vpop.permute.xlu0 %2738
    %2741 = vrot.lane.b32.xlu0 %v2039, 68
    %v2742 = vpop.permute.xlu0 %2741
    %2744 = vrot.lane.b32.xlu0 %v2039, 64
    %v2745 = vpop.permute.xlu0 %2744
    %2747 = vrot.lane.b32.xlu0 %v2039, 60
    %v2748 = vpop.permute.xlu0 %2747
    %2750 = vrot.lane.b32.xlu0 %v2039, 56
    %v2751 = vpop.permute.xlu0 %2750
    %2753 = vrot.lane.b32.xlu0 %v2039, 52
    %v2754 = vpop.permute.xlu0 %2753
    %2756 = vrot.lane.b32.xlu0 %v2039, 48
    %v2757 = vpop.permute.xlu0 %2756
    %2759 = vrot.lane.b32.xlu0 %v2039, 44
    %v2760 = vpop.permute.xlu0 %2759
    %2762 = vrot.lane.b32.xlu0 %v2039, 40
    %v2763 = vpop.permute.xlu0 %2762
    %2765 = vrot.lane.b32.xlu0 %v2039, 36
    %v2766 = vpop.permute.xlu0 %2765
    %2768 = vrot.lane.b32.xlu0 %v2039, 32
    %v2769 = vpop.permute.xlu0 %2768
    %2771 = vrot.lane.b32.xlu0 %v2039, 28
    %v2772 = vpop.permute.xlu0 %2771
    %2774 = vrot.lane.b32.xlu0 %v2039, 24
    %v2775 = vpop.permute.xlu0 %2774
    %2777 = vrot.lane.b32.xlu0 %v2039, 20
    %v2778 = vpop.permute.xlu0 %2777
    %2780 = vrot.lane.b32.xlu0 %v2039, 16
    %v2781 = vpop.permute.xlu0 %2780
    %2783 = vrot.lane.b32.xlu0 %v2039, 12
    %v2784 = vpop.permute.xlu0 %2783
    %2786 = vrot.lane.b32.xlu0 %v2039, 8
    %v2787 = vpop.permute.xlu0 %2786
    %2789 = vrot.lane.b32.xlu0 %v2039, 4
    %v2790 = vpop.permute.xlu0 %2789
    %v2792 = vcombine.low %v2032, %v2045
    %v2794 = vunpack.c.l.s4 1983009808
    %v2795 = vunpack.c.0.s8 %v2794
    %v2796 = vlaneseq
    %v2797 = vshrl.u32 %v2796, 7
    %v2798 = vsub.s32 %v2795, %v2797
    %v2799 = vrot.slane %v2792, %v2798
    %v2800 = vcombine.low %v2042, %v2048
    %v2802 = vunpack.c.l.s4 1983009808
    %v2803 = vunpack.c.0.s8 %v2802
    %v2804 = vlaneseq
    %v2805 = vshrl.u32 %v2804, 7
    %v2806 = vsub.s32 %v2803, %v2805
    %v2807 = vrot.slane %v2800, %v2806
    %v2808 = vcombine.low %v2051, %v2057
    %v2810 = vunpack.c.l.s4 1983009808
    %v2811 = vunpack.c.0.s8 %v2810
    %v2812 = vlaneseq
    %v2813 = vshrl.u32 %v2812, 7
    %v2814 = vsub.s32 %v2811, %v2813
    %v2815 = vrot.slane %v2808, %v2814
    %v2816 = vcombine.low %v2054, %v2060
    %v2818 = vunpack.c.l.s4 1983009808
    %v2819 = vunpack.c.0.s8 %v2818
    %v2820 = vlaneseq
    %v2821 = vshrl.u32 %v2820, 7
    %v2822 = vsub.s32 %v2819, %v2821
    %v2823 = vrot.slane %v2816, %v2822
    %v2824 = vcombine.low %v2799, %v2807
    %v2826 = vunpack.c.l.s4 1934713408
    %v2827 = vunpack.c.0.s8 %v2826
    %v2828 = vlaneseq
    %v2829 = vshrl.u32 %v2828, 7
    %v2830 = vsub.s32 %v2827, %v2829
    %v2831 = vrot.slane %v2824, %v2830
    %v2832 = vcombine.low %v2815, %v2823
    %v2834 = vunpack.c.l.s4 1934713408
    %v2835 = vunpack.c.0.s8 %v2834
    %v2836 = vlaneseq
    %v2837 = vshrl.u32 %v2836, 7
    %v2838 = vsub.s32 %v2835, %v2837
    %v2839 = vrot.slane %v2832, %v2838
    %v2840 = vcombine.low %v2831, %v2839
    %v2841 = vcombine.high %v2831, %v2839
    %v2842 = vcombine.low %v2063, %v2069
    %v2844 = vunpack.c.l.s4 1983009808
    %v2845 = vunpack.c.0.s8 %v2844
    %v2846 = vlaneseq
    %v2847 = vshrl.u32 %v2846, 7
    %v2848 = vsub.s32 %v2845, %v2847
    %v2849 = vrot.slane %v2842, %v2848
    %v2850 = vcombine.low %v2066, %v2072
    %v2852 = vunpack.c.l.s4 1983009808
    %v2853 = vunpack.c.0.s8 %v2852
    %v2854 = vlaneseq
    %v2855 = vshrl.u32 %v2854, 7
    %v2856 = vsub.s32 %v2853, %v2855
    %v2857 = vrot.slane %v2850, %v2856
    %v2858 = vcombine.low %v2075, %v2081
    %v2860 = vunpack.c.l.s4 1983009808
    %v2861 = vunpack.c.0.s8 %v2860
    %v2862 = vlaneseq
    %v2863 = vshrl.u32 %v2862, 7
    %v2864 = vsub.s32 %v2861, %v2863
    %v2865 = vrot.slane %v2858, %v2864
    %v2866 = vcombine.low %v2078, %v2084
    %v2868 = vunpack.c.l.s4 1983009808
    %v2869 = vunpack.c.0.s8 %v2868
    %v2870 = vlaneseq
    %v2871 = vshrl.u32 %v2870, 7
    %v2872 = vsub.s32 %v2869, %v2871
    %v2873 = vrot.slane %v2866, %v2872
    %v2874 = vcombine.low %v2849, %v2857
    %v2876 = vunpack.c.l.s4 1934713408
    %v2877 = vunpack.c.0.s8 %v2876
    %v2878 = vlaneseq
    %v2879 = vshrl.u32 %v2878, 7
    %v2880 = vsub.s32 %v2877, %v2879
    %v2881 = vrot.slane %v2874, %v2880
    %v2882 = vcombine.low %v2865, %v2873
    %v2884 = vunpack.c.l.s4 1934713408
    %v2885 = vunpack.c.0.s8 %v2884
    %v2886 = vlaneseq
    %v2887 = vshrl.u32 %v2886, 7
    %v2888 = vsub.s32 %v2885, %v2887
    %v2889 = vrot.slane %v2882, %v2888
    %v2890 = vcombine.low %v2881, %v2889
    %v2891 = vcombine.high %v2881, %v2889
    %v2892 = vcombine.low %v2087, %v2093
    %v2894 = vunpack.c.l.s4 1983009808
    %v2895 = vunpack.c.0.s8 %v2894
    %v2896 = vlaneseq
    %v2897 = vshrl.u32 %v2896, 7
    %v2898 = vsub.s32 %v2895, %v2897
    %v2899 = vrot.slane %v2892, %v2898
    %v2900 = vcombine.low %v2090, %v2096
    %v2902 = vunpack.c.l.s4 1983009808
    %v2903 = vunpack.c.0.s8 %v2902
    %v2904 = vlaneseq
    %v2905 = vshrl.u32 %v2904, 7
    %v2906 = vsub.s32 %v2903, %v2905
    %v2907 = vrot.slane %v2900, %v2906
    %v2908 = vcombine.low %v2099, %v2105
    %v2910 = vunpack.c.l.s4 1983009808
    %v2911 = vunpack.c.0.s8 %v2910
    %v2912 = vlaneseq
    %v2913 = vshrl.u32 %v2912, 7
    %v2914 = vsub.s32 %v2911, %v2913
    %v2915 = vrot.slane %v2908, %v2914
    %v2916 = vcombine.low %v2102, %v2108
    %v2918 = vunpack.c.l.s4 1983009808
    %v2919 = vunpack.c.0.s8 %v2918
    %v2920 = vlaneseq
    %v2921 = vshrl.u32 %v2920, 7
    %v2922 = vsub.s32 %v2919, %v2921
    %v2923 = vrot.slane %v2916, %v2922
    %v2924 = vcombine.low %v2899, %v2907
    %v2926 = vunpack.c.l.s4 1934713408
    %v2927 = vunpack.c.0.s8 %v2926
    %v2928 = vlaneseq
    %v2929 = vshrl.u32 %v2928, 7
    %v2930 = vsub.s32 %v2927, %v2929
    %v2931 = vrot.slane %v2924, %v2930
    %v2932 = vcombine.low %v2915, %v2923
    %v2934 = vunpack.c.l.s4 1934713408
    %v2935 = vunpack.c.0.s8 %v2934
    %v2936 = vlaneseq
    %v2937 = vshrl.u32 %v2936, 7
    %v2938 = vsub.s32 %v2935, %v2937
    %v2939 = vrot.slane %v2932, %v2938
    %v2940 = vcombine.low %v2931, %v2939
    %v2941 = vcombine.high %v2931, %v2939
    %v2942 = vcombine.low %v2111, %v2117
    %v2944 = vunpack.c.l.s4 1983009808
    %v2945 = vunpack.c.0.s8 %v2944
    %v2946 = vlaneseq
    %v2947 = vshrl.u32 %v2946, 7
    %v2948 = vsub.s32 %v2945, %v2947
    %v2949 = vrot.slane %v2942, %v2948
    %v2950 = vcombine.low %v2114, %v2120
    %v2952 = vunpack.c.l.s4 1983009808
    %v2953 = vunpack.c.0.s8 %v2952
    %v2954 = vlaneseq
    %v2955 = vshrl.u32 %v2954, 7
    %v2956 = vsub.s32 %v2953, %v2955
    %v2957 = vrot.slane %v2950, %v2956
    %v2958 = vcombine.low %v2123, %v2129
    %v2960 = vunpack.c.l.s4 1983009808
    %v2961 = vunpack.c.0.s8 %v2960
    %v2962 = vlaneseq
    %v2963 = vshrl.u32 %v2962, 7
    %v2964 = vsub.s32 %v2961, %v2963
    %v2965 = vrot.slane %v2958, %v2964
    %v2966 = vcombine.low %v2126, %v2132
    %v2968 = vunpack.c.l.s4 1983009808
    %v2969 = vunpack.c.0.s8 %v2968
    %v2970 = vlaneseq
    %v2971 = vshrl.u32 %v2970, 7
    %v2972 = vsub.s32 %v2969, %v2971
    %v2973 = vrot.slane %v2966, %v2972
    %v2974 = vcombine.low %v2949, %v2957
    %v2976 = vunpack.c.l.s4 1934713408
    %v2977 = vunpack.c.0.s8 %v2976
    %v2978 = vlaneseq
    %v2979 = vshrl.u32 %v2978, 7
    %v2980 = vsub.s32 %v2977, %v2979
    %v2981 = vrot.slane %v2974, %v2980
    %v2982 = vcombine.low %v2965, %v2973
    %v2984 = vunpack.c.l.s4 1934713408
    %v2985 = vunpack.c.0.s8 %v2984
    %v2986 = vlaneseq
    %v2987 = vshrl.u32 %v2986, 7
    %v2988 = vsub.s32 %v2985, %v2987
    %v2989 = vrot.slane %v2982, %v2988
    %v2990 = vcombine.low %v2981, %v2989
    %v2991 = vcombine.high %v2981, %v2989
    %v2992 = vcombine.low %v2033, %v2139
    %v2994 = vunpack.c.l.s4 1983009808
    %v2995 = vunpack.c.0.s8 %v2994
    %v2996 = vlaneseq
    %v2997 = vshrl.u32 %v2996, 7
    %v2998 = vsub.s32 %v2995, %v2997
    %v2999 = vrot.slane %v2992, %v2998
    %v3000 = vcombine.low %v2136, %v2142
    %v3002 = vunpack.c.l.s4 1983009808
    %v3003 = vunpack.c.0.s8 %v3002
    %v3004 = vlaneseq
    %v3005 = vshrl.u32 %v3004, 7
    %v3006 = vsub.s32 %v3003, %v3005
    %v3007 = vrot.slane %v3000, %v3006
    %v3008 = vcombine.low %v2145, %v2151
    %v3010 = vunpack.c.l.s4 1983009808
    %v3011 = vunpack.c.0.s8 %v3010
    %v3012 = vlaneseq
    %v3013 = vshrl.u32 %v3012, 7
    %v3014 = vsub.s32 %v3011, %v3013
    %v3015 = vrot.slane %v3008, %v3014
    %v3016 = vcombine.low %v2148, %v2154
    %v3018 = vunpack.c.l.s4 1983009808
    %v3019 = vunpack.c.0.s8 %v3018
    %v3020 = vlaneseq
    %v3021 = vshrl.u32 %v3020, 7
    %v3022 = vsub.s32 %v3019, %v3021
    %v3023 = vrot.slane %v3016, %v3022
    %v3024 = vcombine.low %v2999, %v3007
    %v3026 = vunpack.c.l.s4 1934713408
    %v3027 = vunpack.c.0.s8 %v3026
    %v3028 = vlaneseq
    %v3029 = vshrl.u32 %v3028, 7
    %v3030 = vsub.s32 %v3027, %v3029
    %v3031 = vrot.slane %v3024, %v3030
    %v3032 = vcombine.low %v3015, %v3023
    %v3034 = vunpack.c.l.s4 1934713408
    %v3035 = vunpack.c.0.s8 %v3034
    %v3036 = vlaneseq
    %v3037 = vshrl.u32 %v3036, 7
    %v3038 = vsub.s32 %v3035, %v3037
    %v3039 = vrot.slane %v3032, %v3038
    %v3040 = vcombine.low %v3031, %v3039
    %v3041 = vcombine.high %v3031, %v3039
    %v3042 = vcombine.low %v2157, %v2163
    %v3044 = vunpack.c.l.s4 1983009808
    %v3045 = vunpack.c.0.s8 %v3044
    %v3046 = vlaneseq
    %v3047 = vshrl.u32 %v3046, 7
    %v3048 = vsub.s32 %v3045, %v3047
    %v3049 = vrot.slane %v3042, %v3048
    %v3050 = vcombine.low %v2160, %v2166
    %v3052 = vunpack.c.l.s4 1983009808
    %v3053 = vunpack.c.0.s8 %v3052
    %v3054 = vlaneseq
    %v3055 = vshrl.u32 %v3054, 7
    %v3056 = vsub.s32 %v3053, %v3055
    %v3057 = vrot.slane %v3050, %v3056
    %v3058 = vcombine.low %v2169, %v2175
    %v3060 = vunpack.c.l.s4 1983009808
    %v3061 = vunpack.c.0.s8 %v3060
    %v3062 = vlaneseq
    %v3063 = vshrl.u32 %v3062, 7
    %v3064 = vsub.s32 %v3061, %v3063
    %v3065 = vrot.slane %v3058, %v3064
    %v3066 = vcombine.low %v2172, %v2178
    %v3068 = vunpack.c.l.s4 1983009808
    %v3069 = vunpack.c.0.s8 %v3068
    %v3070 = vlaneseq
    %v3071 = vshrl.u32 %v3070, 7
    %v3072 = vsub.s32 %v3069, %v3071
    %v3073 = vrot.slane %v3066, %v3072
    %v3074 = vcombine.low %v3049, %v3057
    %v3076 = vunpack.c.l.s4 1934713408
    %v3077 = vunpack.c.0.s8 %v3076
    %v3078 = vlaneseq
    %v3079 = vshrl.u32 %v3078, 7
    %v3080 = vsub.s32 %v3077, %v3079
    %v3081 = vrot.slane %v3074, %v3080
    %v3082 = vcombine.low %v3065, %v3073
    %v3084 = vunpack.c.l.s4 1934713408
    %v3085 = vunpack.c.0.s8 %v3084
    %v3086 = vlaneseq
    %v3087 = vshrl.u32 %v3086, 7
    %v3088 = vsub.s32 %v3085, %v3087
    %v3089 = vrot.slane %v3082, %v3088
    %v3090 = vcombine.low %v3081, %v3089
    %v3091 = vcombine.high %v3081, %v3089
    %v3092 = vcombine.low %v2181, %v2187
    %v3094 = vunpack.c.l.s4 1983009808
    %v3095 = vunpack.c.0.s8 %v3094
    %v3096 = vlaneseq
    %v3097 = vshrl.u32 %v3096, 7
    %v3098 = vsub.s32 %v3095, %v3097
    %v3099 = vrot.slane %v3092, %v3098
    %v3100 = vcombine.low %v2184, %v2190
    %v3102 = vunpack.c.l.s4 1983009808
    %v3103 = vunpack.c.0.s8 %v3102
    %v3104 = vlaneseq
    %v3105 = vshrl.u32 %v3104, 7
    %v3106 = vsub.s32 %v3103, %v3105
    %v3107 = vrot.slane %v3100, %v3106
    %v3108 = vcombine.low %v2193, %v2199
    %v3110 = vunpack.c.l.s4 1983009808
    %v3111 = vunpack.c.0.s8 %v3110
    %v3112 = vlaneseq
    %v3113 = vshrl.u32 %v3112, 7
    %v3114 = vsub.s32 %v3111, %v3113
    %v3115 = vrot.slane %v3108, %v3114
    %v3116 = vcombine.low %v2196, %v2202
    %v3118 = vunpack.c.l.s4 1983009808
    %v3119 = vunpack.c.0.s8 %v3118
    %v3120 = vlaneseq
    %v3121 = vshrl.u32 %v3120, 7
    %v3122 = vsub.s32 %v3119, %v3121
    %v3123 = vrot.slane %v3116, %v3122
    %v3124 = vcombine.low %v3099, %v3107
    %v3126 = vunpack.c.l.s4 1934713408
    %v3127 = vunpack.c.0.s8 %v3126
    %v3128 = vlaneseq
    %v3129 = vshrl.u32 %v3128, 7
    %v3130 = vsub.s32 %v3127, %v3129
    %v3131 = vrot.slane %v3124, %v3130
    %v3132 = vcombine.low %v3115, %v3123
    %v3134 = vunpack.c.l.s4 1934713408
    %v3135 = vunpack.c.0.s8 %v3134
    %v3136 = vlaneseq
    %v3137 = vshrl.u32 %v3136, 7
    %v3138 = vsub.s32 %v3135, %v3137
    %v3139 = vrot.slane %v3132, %v3138
    %v3140 = vcombine.low %v3131, %v3139
    %v3141 = vcombine.high %v3131, %v3139
    %v3142 = vcombine.low %v2205, %v2211
    %v3144 = vunpack.c.l.s4 1983009808
    %v3145 = vunpack.c.0.s8 %v3144
    %v3146 = vlaneseq
    %v3147 = vshrl.u32 %v3146, 7
    %v3148 = vsub.s32 %v3145, %v3147
    %v3149 = vrot.slane %v3142, %v3148
    %v3150 = vcombine.low %v2208, %v2214
    %v3152 = vunpack.c.l.s4 1983009808
    %v3153 = vunpack.c.0.s8 %v3152
    %v3154 = vlaneseq
    %v3155 = vshrl.u32 %v3154, 7
    %v3156 = vsub.s32 %v3153, %v3155
    %v3157 = vrot.slane %v3150, %v3156
    %v3158 = vcombine.low %v2217, %v2223
    %v3160 = vunpack.c.l.s4 1983009808
    %v3161 = vunpack.c.0.s8 %v3160
    %v3162 = vlaneseq
    %v3163 = vshrl.u32 %v3162, 7
    %v3164 = vsub.s32 %v3161, %v3163
    %v3165 = vrot.slane %v3158, %v3164
    %v3166 = vcombine.low %v2220, %v2226
    %v3168 = vunpack.c.l.s4 1983009808
    %v3169 = vunpack.c.0.s8 %v3168
    %v3170 = vlaneseq
    %v3171 = vshrl.u32 %v3170, 7
    %v3172 = vsub.s32 %v3169, %v3171
    %v3173 = vrot.slane %v3166, %v3172
    %v3174 = vcombine.low %v3149, %v3157
    %v3176 = vunpack.c.l.s4 1934713408
    %v3177 = vunpack.c.0.s8 %v3176
    %v3178 = vlaneseq
    %v3179 = vshrl.u32 %v3178, 7
    %v3180 = vsub.s32 %v3177, %v3179
    %v3181 = vrot.slane %v3174, %v3180
    %v3182 = vcombine.low %v3165, %v3173
    %v3184 = vunpack.c.l.s4 1934713408
    %v3185 = vunpack.c.0.s8 %v3184
    %v3186 = vlaneseq
    %v3187 = vshrl.u32 %v3186, 7
    %v3188 = vsub.s32 %v3185, %v3187
    %v3189 = vrot.slane %v3182, %v3188
    %v3190 = vcombine.low %v3181, %v3189
    %v3191 = vcombine.high %v3181, %v3189
    %v3192 = vcombine.low %v2034, %v2233
    %v3194 = vunpack.c.l.s4 1983009808
    %v3195 = vunpack.c.0.s8 %v3194
    %v3196 = vlaneseq
    %v3197 = vshrl.u32 %v3196, 7
    %v3198 = vsub.s32 %v3195, %v3197
    %v3199 = vrot.slane %v3192, %v3198
    %v3200 = vcombine.low %v2230, %v2236
    %v3202 = vunpack.c.l.s4 1983009808
    %v3203 = vunpack.c.0.s8 %v3202
    %v3204 = vlaneseq
    %v3205 = vshrl.u32 %v3204, 7
    %v3206 = vsub.s32 %v3203, %v3205
    %v3207 = vrot.slane %v3200, %v3206
    %v3208 = vcombine.low %v2239, %v2245
    %v3210 = vunpack.c.l.s4 1983009808
    %v3211 = vunpack.c.0.s8 %v3210
    %v3212 = vlaneseq
    %v3213 = vshrl.u32 %v3212, 7
    %v3214 = vsub.s32 %v3211, %v3213
    %v3215 = vrot.slane %v3208, %v3214
    %v3216 = vcombine.low %v2242, %v2248
    %v3218 = vunpack.c.l.s4 1983009808
    %v3219 = vunpack.c.0.s8 %v3218
    %v3220 = vlaneseq
    %v3221 = vshrl.u32 %v3220, 7
    %v3222 = vsub.s32 %v3219, %v3221
    %v3223 = vrot.slane %v3216, %v3222
    %v3224 = vcombine.low %v3199, %v3207
    %v3226 = vunpack.c.l.s4 1934713408
    %v3227 = vunpack.c.0.s8 %v3226
    %v3228 = vlaneseq
    %v3229 = vshrl.u32 %v3228, 7
    %v3230 = vsub.s32 %v3227, %v3229
    %v3231 = vrot.slane %v3224, %v3230
    %v3232 = vcombine.low %v3215, %v3223
    %v3234 = vunpack.c.l.s4 1934713408
    %v3235 = vunpack.c.0.s8 %v3234
    %v3236 = vlaneseq
    %v3237 = vshrl.u32 %v3236, 7
    %v3238 = vsub.s32 %v3235, %v3237
    %v3239 = vrot.slane %v3232, %v3238
    %v3240 = vcombine.low %v3231, %v3239
    %v3241 = vcombine.high %v3231, %v3239
    %v3242 = vcombine.low %v2251, %v2257
    %v3244 = vunpack.c.l.s4 1983009808
    %v3245 = vunpack.c.0.s8 %v3244
    %v3246 = vlaneseq
    %v3247 = vshrl.u32 %v3246, 7
    %v3248 = vsub.s32 %v3245, %v3247
    %v3249 = vrot.slane %v3242, %v3248
    %v3250 = vcombine.low %v2254, %v2260
    %v3252 = vunpack.c.l.s4 1983009808
    %v3253 = vunpack.c.0.s8 %v3252
    %v3254 = vlaneseq
    %v3255 = vshrl.u32 %v3254, 7
    %v3256 = vsub.s32 %v3253, %v3255
    %v3257 = vrot.slane %v3250, %v3256
    %v3258 = vcombine.low %v2263, %v2269
    %v3260 = vunpack.c.l.s4 1983009808
    %v3261 = vunpack.c.0.s8 %v3260
    %v3262 = vlaneseq
    %v3263 = vshrl.u32 %v3262, 7
    %v3264 = vsub.s32 %v3261, %v3263
    %v3265 = vrot.slane %v3258, %v3264
    %v3266 = vcombine.low %v2266, %v2272
    %v3268 = vunpack.c.l.s4 1983009808
    %v3269 = vunpack.c.0.s8 %v3268
    %v3270 = vlaneseq
    %v3271 = vshrl.u32 %v3270, 7
    %v3272 = vsub.s32 %v3269, %v3271
    %v3273 = vrot.slane %v3266, %v3272
    %v3274 = vcombine.low %v3249, %v3257
    %v3276 = vunpack.c.l.s4 1934713408
    %v3277 = vunpack.c.0.s8 %v3276
    %v3278 = vlaneseq
    %v3279 = vshrl.u32 %v3278, 7
    %v3280 = vsub.s32 %v3277, %v3279
    %v3281 = vrot.slane %v3274, %v3280
    %v3282 = vcombine.low %v3265, %v3273
    %v3284 = vunpack.c.l.s4 1934713408
    %v3285 = vunpack.c.0.s8 %v3284
    %v3286 = vlaneseq
    %v3287 = vshrl.u32 %v3286, 7
    %v3288 = vsub.s32 %v3285, %v3287
    %v3289 = vrot.slane %v3282, %v3288
    %v3290 = vcombine.low %v3281, %v3289
    %v3291 = vcombine.high %v3281, %v3289
    %v3292 = vcombine.low %v2275, %v2281
    %v3294 = vunpack.c.l.s4 1983009808
    %v3295 = vunpack.c.0.s8 %v3294
    %v3296 = vlaneseq
    %v3297 = vshrl.u32 %v3296, 7
    %v3298 = vsub.s32 %v3295, %v3297
    %v3299 = vrot.slane %v3292, %v3298
    %v3300 = vcombine.low %v2278, %v2284
    %v3302 = vunpack.c.l.s4 1983009808
    %v3303 = vunpack.c.0.s8 %v3302
    %v3304 = vlaneseq
    %v3305 = vshrl.u32 %v3304, 7
    %v3306 = vsub.s32 %v3303, %v3305
    %v3307 = vrot.slane %v3300, %v3306
    %v3308 = vcombine.low %v2287, %v2293
    %v3310 = vunpack.c.l.s4 1983009808
    %v3311 = vunpack.c.0.s8 %v3310
    %v3312 = vlaneseq
    %v3313 = vshrl.u32 %v3312, 7
    %v3314 = vsub.s32 %v3311, %v3313
    %v3315 = vrot.slane %v3308, %v3314
    %v3316 = vcombine.low %v2290, %v2296
    %v3318 = vunpack.c.l.s4 1983009808
    %v3319 = vunpack.c.0.s8 %v3318
    %v3320 = vlaneseq
    %v3321 = vshrl.u32 %v3320, 7
    %v3322 = vsub.s32 %v3319, %v3321
    %v3323 = vrot.slane %v3316, %v3322
    %v3324 = vcombine.low %v3299, %v3307
    %v3326 = vunpack.c.l.s4 1934713408
    %v3327 = vunpack.c.0.s8 %v3326
    %v3328 = vlaneseq
    %v3329 = vshrl.u32 %v3328, 7
    %v3330 = vsub.s32 %v3327, %v3329
    %v3331 = vrot.slane %v3324, %v3330
    %v3332 = vcombine.low %v3315, %v3323
    %v3334 = vunpack.c.l.s4 1934713408
    %v3335 = vunpack.c.0.s8 %v3334
    %v3336 = vlaneseq
    %v3337 = vshrl.u32 %v3336, 7
    %v3338 = vsub.s32 %v3335, %v3337
    %v3339 = vrot.slane %v3332, %v3338
    %v3340 = vcombine.low %v3331, %v3339
    %v3341 = vcombine.high %v3331, %v3339
    %v3342 = vcombine.low %v2299, %v2305
    %v3344 = vunpack.c.l.s4 1983009808
    %v3345 = vunpack.c.0.s8 %v3344
    %v3346 = vlaneseq
    %v3347 = vshrl.u32 %v3346, 7
    %v3348 = vsub.s32 %v3345, %v3347
    %v3349 = vrot.slane %v3342, %v3348
    %v3350 = vcombine.low %v2302, %v2308
    %v3352 = vunpack.c.l.s4 1983009808
    %v3353 = vunpack.c.0.s8 %v3352
    %v3354 = vlaneseq
    %v3355 = vshrl.u32 %v3354, 7
    %v3356 = vsub.s32 %v3353, %v3355
    %v3357 = vrot.slane %v3350, %v3356
    %v3358 = vcombine.low %v2311, %v2317
    %v3360 = vunpack.c.l.s4 1983009808
    %v3361 = vunpack.c.0.s8 %v3360
    %v3362 = vlaneseq
    %v3363 = vshrl.u32 %v3362, 7
    %v3364 = vsub.s32 %v3361, %v3363
    %v3365 = vrot.slane %v3358, %v3364
    %v3366 = vcombine.low %v2314, %v2320
    %v3368 = vunpack.c.l.s4 1983009808
    %v3369 = vunpack.c.0.s8 %v3368
    %v3370 = vlaneseq
    %v3371 = vshrl.u32 %v3370, 7
    %v3372 = vsub.s32 %v3369, %v3371
    %v3373 = vrot.slane %v3366, %v3372
    %v3374 = vcombine.low %v3349, %v3357
    %v3376 = vunpack.c.l.s4 1934713408
    %v3377 = vunpack.c.0.s8 %v3376
    %v3378 = vlaneseq
    %v3379 = vshrl.u32 %v3378, 7
    %v3380 = vsub.s32 %v3377, %v3379
    %v3381 = vrot.slane %v3374, %v3380
    %v3382 = vcombine.low %v3365, %v3373
    %v3384 = vunpack.c.l.s4 1934713408
    %v3385 = vunpack.c.0.s8 %v3384
    %v3386 = vlaneseq
    %v3387 = vshrl.u32 %v3386, 7
    %v3388 = vsub.s32 %v3385, %v3387
    %v3389 = vrot.slane %v3382, %v3388
    %v3390 = vcombine.low %v3381, %v3389
    %v3391 = vcombine.high %v3381, %v3389
    %v3392 = vcombine.low %v2035, %v2327
    %v3394 = vunpack.c.l.s4 1983009808
    %v3395 = vunpack.c.0.s8 %v3394
    %v3396 = vlaneseq
    %v3397 = vshrl.u32 %v3396, 7
    %v3398 = vsub.s32 %v3395, %v3397
    %v3399 = vrot.slane %v3392, %v3398
    %v3400 = vcombine.low %v2324, %v2330
    %v3402 = vunpack.c.l.s4 1983009808
    %v3403 = vunpack.c.0.s8 %v3402
    %v3404 = vlaneseq
    %v3405 = vshrl.u32 %v3404, 7
    %v3406 = vsub.s32 %v3403, %v3405
    %v3407 = vrot.slane %v3400, %v3406
    %v3408 = vcombine.low %v2333, %v2339
    %v3410 = vunpack.c.l.s4 1983009808
    %v3411 = vunpack.c.0.s8 %v3410
    %v3412 = vlaneseq
    %v3413 = vshrl.u32 %v3412, 7
    %v3414 = vsub.s32 %v3411, %v3413
    %v3415 = vrot.slane %v3408, %v3414
    %v3416 = vcombine.low %v2336, %v2342
    %v3418 = vunpack.c.l.s4 1983009808
    %v3419 = vunpack.c.0.s8 %v3418
    %v3420 = vlaneseq
    %v3421 = vshrl.u32 %v3420, 7
    %v3422 = vsub.s32 %v3419, %v3421
    %v3423 = vrot.slane %v3416, %v3422
    %v3424 = vcombine.low %v3399, %v3407
    %v3426 = vunpack.c.l.s4 1934713408
    %v3427 = vunpack.c.0.s8 %v3426
    %v3428 = vlaneseq
    %v3429 = vshrl.u32 %v3428, 7
    %v3430 = vsub.s32 %v3427, %v3429
    %v3431 = vrot.slane %v3424, %v3430
    %v3432 = vcombine.low %v3415, %v3423
    %v3434 = vunpack.c.l.s4 1934713408
    %v3435 = vunpack.c.0.s8 %v3434
    %v3436 = vlaneseq
    %v3437 = vshrl.u32 %v3436, 7
    %v3438 = vsub.s32 %v3435, %v3437
    %v3439 = vrot.slane %v3432, %v3438
    %v3440 = vcombine.low %v3431, %v3439
    %v3441 = vcombine.high %v3431, %v3439
    %v3442 = vcombine.low %v2345, %v2351
    %v3444 = vunpack.c.l.s4 1983009808
    %v3445 = vunpack.c.0.s8 %v3444
    %v3446 = vlaneseq
    %v3447 = vshrl.u32 %v3446, 7
    %v3448 = vsub.s32 %v3445, %v3447
    %v3449 = vrot.slane %v3442, %v3448
    %v3450 = vcombine.low %v2348, %v2354
    %v3452 = vunpack.c.l.s4 1983009808
    %v3453 = vunpack.c.0.s8 %v3452
    %v3454 = vlaneseq
    %v3455 = vshrl.u32 %v3454, 7
    %v3456 = vsub.s32 %v3453, %v3455
    %v3457 = vrot.slane %v3450, %v3456
    %v3458 = vcombine.low %v2357, %v2363
    %v3460 = vunpack.c.l.s4 1983009808
    %v3461 = vunpack.c.0.s8 %v3460
    %v3462 = vlaneseq
    %v3463 = vshrl.u32 %v3462, 7
    %v3464 = vsub.s32 %v3461, %v3463
    %v3465 = vrot.slane %v3458, %v3464
    %v3466 = vcombine.low %v2360, %v2366
    %v3468 = vunpack.c.l.s4 1983009808
    %v3469 = vunpack.c.0.s8 %v3468
    %v3470 = vlaneseq
    %v3471 = vshrl.u32 %v3470, 7
    %v3472 = vsub.s32 %v3469, %v3471
    %v3473 = vrot.slane %v3466, %v3472
    %v3474 = vcombine.low %v3449, %v3457
    %v3476 = vunpack.c.l.s4 1934713408
    %v3477 = vunpack.c.0.s8 %v3476
    %v3478 = vlaneseq
    %v3479 = vshrl.u32 %v3478, 7
    %v3480 = vsub.s32 %v3477, %v3479
    %v3481 = vrot.slane %v3474, %v3480
    %v3482 = vcombine.low %v3465, %v3473
    %v3484 = vunpack.c.l.s4 1934713408
    %v3485 = vunpack.c.0.s8 %v3484
    %v3486 = vlaneseq
    %v3487 = vshrl.u32 %v3486, 7
    %v3488 = vsub.s32 %v3485, %v3487
    %v3489 = vrot.slane %v3482, %v3488
    %v3490 = vcombine.low %v3481, %v3489
    %v3491 = vcombine.high %v3481, %v3489
    %v3492 = vcombine.low %v2369, %v2375
    %v3494 = vunpack.c.l.s4 1983009808
    %v3495 = vunpack.c.0.s8 %v3494
    %v3496 = vlaneseq
    %v3497 = vshrl.u32 %v3496, 7
    %v3498 = vsub.s32 %v3495, %v3497
    %v3499 = vrot.slane %v3492, %v3498
    %v3500 = vcombine.low %v2372, %v2378
    %v3502 = vunpack.c.l.s4 1983009808
    %v3503 = vunpack.c.0.s8 %v3502
    %v3504 = vlaneseq
    %v3505 = vshrl.u32 %v3504, 7
    %v3506 = vsub.s32 %v3503, %v3505
    %v3507 = vrot.slane %v3500, %v3506
    %v3508 = vcombine.low %v2381, %v2387
    %v3510 = vunpack.c.l.s4 1983009808
    %v3511 = vunpack.c.0.s8 %v3510
    %v3512 = vlaneseq
    %v3513 = vshrl.u32 %v3512, 7
    %v3514 = vsub.s32 %v3511, %v3513
    %v3515 = vrot.slane %v3508, %v3514
    %v3516 = vcombine.low %v2384, %v2390
    %v3518 = vunpack.c.l.s4 1983009808
    %v3519 = vunpack.c.0.s8 %v3518
    %v3520 = vlaneseq
    %v3521 = vshrl.u32 %v3520, 7
    %v3522 = vsub.s32 %v3519, %v3521
    %v3523 = vrot.slane %v3516, %v3522
    %v3524 = vcombine.low %v3499, %v3507
    %v3526 = vunpack.c.l.s4 1934713408
    %v3527 = vunpack.c.0.s8 %v3526
    %v3528 = vlaneseq
    %v3529 = vshrl.u32 %v3528, 7
    %v3530 = vsub.s32 %v3527, %v3529
    %v3531 = vrot.slane %v3524, %v3530
    %v3532 = vcombine.low %v3515, %v3523
    %v3534 = vunpack.c.l.s4 1934713408
    %v3535 = vunpack.c.0.s8 %v3534
    %v3536 = vlaneseq
    %v3537 = vshrl.u32 %v3536, 7
    %v3538 = vsub.s32 %v3535, %v3537
    %v3539 = vrot.slane %v3532, %v3538
    %v3540 = vcombine.low %v3531, %v3539
    %v3541 = vcombine.high %v3531, %v3539
    %v3542 = vcombine.low %v2393, %v2399
    %v3544 = vunpack.c.l.s4 1983009808
    %v3545 = vunpack.c.0.s8 %v3544
    %v3546 = vlaneseq
    %v3547 = vshrl.u32 %v3546, 7
    %v3548 = vsub.s32 %v3545, %v3547
    %v3549 = vrot.slane %v3542, %v3548
    %v3550 = vcombine.low %v2396, %v2402
    %v3552 = vunpack.c.l.s4 1983009808
    %v3553 = vunpack.c.0.s8 %v3552
    %v3554 = vlaneseq
    %v3555 = vshrl.u32 %v3554, 7
    %v3556 = vsub.s32 %v3553, %v3555
    %v3557 = vrot.slane %v3550, %v3556
    %v3558 = vcombine.low %v2405, %v2411
    %v3560 = vunpack.c.l.s4 1983009808
    %v3561 = vunpack.c.0.s8 %v3560
    %v3562 = vlaneseq
    %v3563 = vshrl.u32 %v3562, 7
    %v3564 = vsub.s32 %v3561, %v3563
    %v3565 = vrot.slane %v3558, %v3564
    %v3566 = vcombine.low %v2408, %v2414
    %v3568 = vunpack.c.l.s4 1983009808
    %v3569 = vunpack.c.0.s8 %v3568
    %v3570 = vlaneseq
    %v3571 = vshrl.u32 %v3570, 7
    %v3572 = vsub.s32 %v3569, %v3571
    %v3573 = vrot.slane %v3566, %v3572
    %v3574 = vcombine.low %v3549, %v3557
    %v3576 = vunpack.c.l.s4 1934713408
    %v3577 = vunpack.c.0.s8 %v3576
    %v3578 = vlaneseq
    %v3579 = vshrl.u32 %v3578, 7
    %v3580 = vsub.s32 %v3577, %v3579
    %v3581 = vrot.slane %v3574, %v3580
    %v3582 = vcombine.low %v3565, %v3573
    %v3584 = vunpack.c.l.s4 1934713408
    %v3585 = vunpack.c.0.s8 %v3584
    %v3586 = vlaneseq
    %v3587 = vshrl.u32 %v3586, 7
    %v3588 = vsub.s32 %v3585, %v3587
    %v3589 = vrot.slane %v3582, %v3588
    %v3590 = vcombine.low %v3581, %v3589
    %v3591 = vcombine.high %v3581, %v3589
    %v3592 = vcombine.low %v2036, %v2421
    %v3594 = vunpack.c.l.s4 1983009808
    %v3595 = vunpack.c.0.s8 %v3594
    %v3596 = vlaneseq
    %v3597 = vshrl.u32 %v3596, 7
    %v3598 = vsub.s32 %v3595, %v3597
    %v3599 = vrot.slane %v3592, %v3598
    %v3600 = vcombine.low %v2418, %v2424
    %v3602 = vunpack.c.l.s4 1983009808
    %v3603 = vunpack.c.0.s8 %v3602
    %v3604 = vlaneseq
    %v3605 = vshrl.u32 %v3604, 7
    %v3606 = vsub.s32 %v3603, %v3605
    %v3607 = vrot.slane %v3600, %v3606
    %v3608 = vcombine.low %v2427, %v2433
    %v3610 = vunpack.c.l.s4 1983009808
    %v3611 = vunpack.c.0.s8 %v3610
    %v3612 = vlaneseq
    %v3613 = vshrl.u32 %v3612, 7
    %v3614 = vsub.s32 %v3611, %v3613
    %v3615 = vrot.slane %v3608, %v3614
    %v3616 = vcombine.low %v2430, %v2436
    %v3618 = vunpack.c.l.s4 1983009808
    %v3619 = vunpack.c.0.s8 %v3618
    %v3620 = vlaneseq
    %v3621 = vshrl.u32 %v3620, 7
    %v3622 = vsub.s32 %v3619, %v3621
    %v3623 = vrot.slane %v3616, %v3622
    %v3624 = vcombine.low %v3599, %v3607
    %v3626 = vunpack.c.l.s4 1934713408
    %v3627 = vunpack.c.0.s8 %v3626
    %v3628 = vlaneseq
    %v3629 = vshrl.u32 %v3628, 7
    %v3630 = vsub.s32 %v3627, %v3629
    %v3631 = vrot.slane %v3624, %v3630
    %v3632 = vcombine.low %v3615, %v3623
    %v3634 = vunpack.c.l.s4 1934713408
    %v3635 = vunpack.c.0.s8 %v3634
    %v3636 = vlaneseq
    %v3637 = vshrl.u32 %v3636, 7
    %v3638 = vsub.s32 %v3635, %v3637
    %v3639 = vrot.slane %v3632, %v3638
    %v3640 = vcombine.low %v3631, %v3639
    %v3641 = vcombine.high %v3631, %v3639
    %v3642 = vcombine.low %v2439, %v2445
    %v3644 = vunpack.c.l.s4 1983009808
    %v3645 = vunpack.c.0.s8 %v3644
    %v3646 = vlaneseq
    %v3647 = vshrl.u32 %v3646, 7
    %v3648 = vsub.s32 %v3645, %v3647
    %v3649 = vrot.slane %v3642, %v3648
    %v3650 = vcombine.low %v2442, %v2448
    %v3652 = vunpack.c.l.s4 1983009808
    %v3653 = vunpack.c.0.s8 %v3652
    %v3654 = vlaneseq
    %v3655 = vshrl.u32 %v3654, 7
    %v3656 = vsub.s32 %v3653, %v3655
    %v3657 = vrot.slane %v3650, %v3656
    %v3658 = vcombine.low %v2451, %v2457
    %v3660 = vunpack.c.l.s4 1983009808
    %v3661 = vunpack.c.0.s8 %v3660
    %v3662 = vlaneseq
    %v3663 = vshrl.u32 %v3662, 7
    %v3664 = vsub.s32 %v3661, %v3663
    %v3665 = vrot.slane %v3658, %v3664
    %v3666 = vcombine.low %v2454, %v2460
    %v3668 = vunpack.c.l.s4 1983009808
    %v3669 = vunpack.c.0.s8 %v3668
    %v3670 = vlaneseq
    %v3671 = vshrl.u32 %v3670, 7
    %v3672 = vsub.s32 %v3669, %v3671
    %v3673 = vrot.slane %v3666, %v3672
    %v3674 = vcombine.low %v3649, %v3657
    %v3676 = vunpack.c.l.s4 1934713408
    %v3677 = vunpack.c.0.s8 %v3676
    %v3678 = vlaneseq
    %v3679 = vshrl.u32 %v3678, 7
    %v3680 = vsub.s32 %v3677, %v3679
    %v3681 = vrot.slane %v3674, %v3680
    %v3682 = vcombine.low %v3665, %v3673
    %v3684 = vunpack.c.l.s4 1934713408
    %v3685 = vunpack.c.0.s8 %v3684
    %v3686 = vlaneseq
    %v3687 = vshrl.u32 %v3686, 7
    %v3688 = vsub.s32 %v3685, %v3687
    %v3689 = vrot.slane %v3682, %v3688
    %v3690 = vcombine.low %v3681, %v3689
    %v3691 = vcombine.high %v3681, %v3689
    %v3692 = vcombine.low %v2463, %v2469
    %v3694 = vunpack.c.l.s4 1983009808
    %v3695 = vunpack.c.0.s8 %v3694
    %v3696 = vlaneseq
    %v3697 = vshrl.u32 %v3696, 7
    %v3698 = vsub.s32 %v3695, %v3697
    %v3699 = vrot.slane %v3692, %v3698
    %v3700 = vcombine.low %v2466, %v2472
    %v3702 = vunpack.c.l.s4 1983009808
    %v3703 = vunpack.c.0.s8 %v3702
    %v3704 = vlaneseq
    %v3705 = vshrl.u32 %v3704, 7
    %v3706 = vsub.s32 %v3703, %v3705
    %v3707 = vrot.slane %v3700, %v3706
    %v3708 = vcombine.low %v2475, %v2481
    %v3710 = vunpack.c.l.s4 1983009808
    %v3711 = vunpack.c.0.s8 %v3710
    %v3712 = vlaneseq
    %v3713 = vshrl.u32 %v3712, 7
    %v3714 = vsub.s32 %v3711, %v3713
    %v3715 = vrot.slane %v3708, %v3714
    %v3716 = vcombine.low %v2478, %v2484
    %v3718 = vunpack.c.l.s4 1983009808
    %v3719 = vunpack.c.0.s8 %v3718
    %v3720 = vlaneseq
    %v3721 = vshrl.u32 %v3720, 7
    %v3722 = vsub.s32 %v3719, %v3721
    %v3723 = vrot.slane %v3716, %v3722
    %v3724 = vcombine.low %v3699, %v3707
    %v3726 = vunpack.c.l.s4 1934713408
    %v3727 = vunpack.c.0.s8 %v3726
    %v3728 = vlaneseq
    %v3729 = vshrl.u32 %v3728, 7
    %v3730 = vsub.s32 %v3727, %v3729
    %v3731 = vrot.slane %v3724, %v3730
    %v3732 = vcombine.low %v3715, %v3723
    %v3734 = vunpack.c.l.s4 1934713408
    %v3735 = vunpack.c.0.s8 %v3734
    %v3736 = vlaneseq
    %v3737 = vshrl.u32 %v3736, 7
    %v3738 = vsub.s32 %v3735, %v3737
    %v3739 = vrot.slane %v3732, %v3738
    %v3740 = vcombine.low %v3731, %v3739
    %v3741 = vcombine.high %v3731, %v3739
    %v3742 = vcombine.low %v2487, %v2493
    %v3744 = vunpack.c.l.s4 1983009808
    %v3745 = vunpack.c.0.s8 %v3744
    %v3746 = vlaneseq
    %v3747 = vshrl.u32 %v3746, 7
    %v3748 = vsub.s32 %v3745, %v3747
    %v3749 = vrot.slane %v3742, %v3748
    %v3750 = vcombine.low %v2490, %v2496
    %v3752 = vunpack.c.l.s4 1983009808
    %v3753 = vunpack.c.0.s8 %v3752
    %v3754 = vlaneseq
    %v3755 = vshrl.u32 %v3754, 7
    %v3756 = vsub.s32 %v3753, %v3755
    %v3757 = vrot.slane %v3750, %v3756
    %v3758 = vcombine.low %v2499, %v2505
    %v3760 = vunpack.c.l.s4 1983009808
    %v3761 = vunpack.c.0.s8 %v3760
    %v3762 = vlaneseq
    %v3763 = vshrl.u32 %v3762, 7
    %v3764 = vsub.s32 %v3761, %v3763
    %v3765 = vrot.slane %v3758, %v3764
    %v3766 = vcombine.low %v2502, %v2508
    %v3768 = vunpack.c.l.s4 1983009808
    %v3769 = vunpack.c.0.s8 %v3768
    %v3770 = vlaneseq
    %v3771 = vshrl.u32 %v3770, 7
    %v3772 = vsub.s32 %v3769, %v3771
    %v3773 = vrot.slane %v3766, %v3772
    %v3774 = vcombine.low %v3749, %v3757
    %v3776 = vunpack.c.l.s4 1934713408
    %v3777 = vunpack.c.0.s8 %v3776
    %v3778 = vlaneseq
    %v3779 = vshrl.u32 %v3778, 7
    %v3780 = vsub.s32 %v3777, %v3779
    %v3781 = vrot.slane %v3774, %v3780
    %v3782 = vcombine.low %v3765, %v3773
    %v3784 = vunpack.c.l.s4 1934713408
    %v3785 = vunpack.c.0.s8 %v3784
    %v3786 = vlaneseq
    %v3787 = vshrl.u32 %v3786, 7
    %v3788 = vsub.s32 %v3785, %v3787
    %v3789 = vrot.slane %v3782, %v3788
    %v3790 = vcombine.low %v3781, %v3789
    %v3791 = vcombine.high %v3781, %v3789
    %v3792 = vcombine.low %v2037, %v2515
    %v3794 = vunpack.c.l.s4 1983009808
    %v3795 = vunpack.c.0.s8 %v3794
    %v3796 = vlaneseq
    %v3797 = vshrl.u32 %v3796, 7
    %v3798 = vsub.s32 %v3795, %v3797
    %v3799 = vrot.slane %v3792, %v3798
    %v3800 = vcombine.low %v2512, %v2518
    %v3802 = vunpack.c.l.s4 1983009808
    %v3803 = vunpack.c.0.s8 %v3802
    %v3804 = vlaneseq
    %v3805 = vshrl.u32 %v3804, 7
    %v3806 = vsub.s32 %v3803, %v3805
    %v3807 = vrot.slane %v3800, %v3806
    %v3808 = vcombine.low %v2521, %v2527
    %v3810 = vunpack.c.l.s4 1983009808
    %v3811 = vunpack.c.0.s8 %v3810
    %v3812 = vlaneseq
    %v3813 = vshrl.u32 %v3812, 7
    %v3814 = vsub.s32 %v3811, %v3813
    %v3815 = vrot.slane %v3808, %v3814
    %v3816 = vcombine.low %v2524, %v2530
    %v3818 = vunpack.c.l.s4 1983009808
    %v3819 = vunpack.c.0.s8 %v3818
    %v3820 = vlaneseq
    %v3821 = vshrl.u32 %v3820, 7
    %v3822 = vsub.s32 %v3819, %v3821
    %v3823 = vrot.slane %v3816, %v3822
    %v3824 = vcombine.low %v3799, %v3807
    %v3826 = vunpack.c.l.s4 1934713408
    %v3827 = vunpack.c.0.s8 %v3826
    %v3828 = vlaneseq
    %v3829 = vshrl.u32 %v3828, 7
    %v3830 = vsub.s32 %v3827, %v3829
    %v3831 = vrot.slane %v3824, %v3830
    %v3832 = vcombine.low %v3815, %v3823
    %v3834 = vunpack.c.l.s4 1934713408
    %v3835 = vunpack.c.0.s8 %v3834
    %v3836 = vlaneseq
    %v3837 = vshrl.u32 %v3836, 7
    %v3838 = vsub.s32 %v3835, %v3837
    %v3839 = vrot.slane %v3832, %v3838
    %v3840 = vcombine.low %v3831, %v3839
    %v3841 = vcombine.high %v3831, %v3839
    %v3842 = vcombine.low %v2533, %v2539
    %v3844 = vunpack.c.l.s4 1983009808
    %v3845 = vunpack.c.0.s8 %v3844
    %v3846 = vlaneseq
    %v3847 = vshrl.u32 %v3846, 7
    %v3848 = vsub.s32 %v3845, %v3847
    %v3849 = vrot.slane %v3842, %v3848
    %v3850 = vcombine.low %v2536, %v2542
    %v3852 = vunpack.c.l.s4 1983009808
    %v3853 = vunpack.c.0.s8 %v3852
    %v3854 = vlaneseq
    %v3855 = vshrl.u32 %v3854, 7
    %v3856 = vsub.s32 %v3853, %v3855
    %v3857 = vrot.slane %v3850, %v3856
    %v3858 = vcombine.low %v2545, %v2551
    %v3860 = vunpack.c.l.s4 1983009808
    %v3861 = vunpack.c.0.s8 %v3860
    %v3862 = vlaneseq
    %v3863 = vshrl.u32 %v3862, 7
    %v3864 = vsub.s32 %v3861, %v3863
    %v3865 = vrot.slane %v3858, %v3864
    %v3866 = vcombine.low %v2548, %v2554
    %v3868 = vunpack.c.l.s4 1983009808
    %v3869 = vunpack.c.0.s8 %v3868
    %v3870 = vlaneseq
    %v3871 = vshrl.u32 %v3870, 7
    %v3872 = vsub.s32 %v3869, %v3871
    %v3873 = vrot.slane %v3866, %v3872
    %v3874 = vcombine.low %v3849, %v3857
    %v3876 = vunpack.c.l.s4 1934713408
    %v3877 = vunpack.c.0.s8 %v3876
    %v3878 = vlaneseq
    %v3879 = vshrl.u32 %v3878, 7
    %v3880 = vsub.s32 %v3877, %v3879
    %v3881 = vrot.slane %v3874, %v3880
    %v3882 = vcombine.low %v3865, %v3873
    %v3884 = vunpack.c.l.s4 1934713408
    %v3885 = vunpack.c.0.s8 %v3884
    %v3886 = vlaneseq
    %v3887 = vshrl.u32 %v3886, 7
    %v3888 = vsub.s32 %v3885, %v3887
    %v3889 = vrot.slane %v3882, %v3888
    %v3890 = vcombine.low %v3881, %v3889
    %v3891 = vcombine.high %v3881, %v3889
    %v3892 = vcombine.low %v2557, %v2563
    %v3894 = vunpack.c.l.s4 1983009808
    %v3895 = vunpack.c.0.s8 %v3894
    %v3896 = vlaneseq
    %v3897 = vshrl.u32 %v3896, 7
    %v3898 = vsub.s32 %v3895, %v3897
    %v3899 = vrot.slane %v3892, %v3898
    %v3900 = vcombine.low %v2560, %v2566
    %v3902 = vunpack.c.l.s4 1983009808
    %v3903 = vunpack.c.0.s8 %v3902
    %v3904 = vlaneseq
    %v3905 = vshrl.u32 %v3904, 7
    %v3906 = vsub.s32 %v3903, %v3905
    %v3907 = vrot.slane %v3900, %v3906
    %v3908 = vcombine.low %v2569, %v2575
    %v3910 = vunpack.c.l.s4 1983009808
    %v3911 = vunpack.c.0.s8 %v3910
    %v3912 = vlaneseq
    %v3913 = vshrl.u32 %v3912, 7
    %v3914 = vsub.s32 %v3911, %v3913
    %v3915 = vrot.slane %v3908, %v3914
    %v3916 = vcombine.low %v2572, %v2578
    %v3918 = vunpack.c.l.s4 1983009808
    %v3919 = vunpack.c.0.s8 %v3918
    %v3920 = vlaneseq
    %v3921 = vshrl.u32 %v3920, 7
    %v3922 = vsub.s32 %v3919, %v3921
    %v3923 = vrot.slane %v3916, %v3922
    %v3924 = vcombine.low %v3899, %v3907
    %v3926 = vunpack.c.l.s4 1934713408
    %v3927 = vunpack.c.0.s8 %v3926
    %v3928 = vlaneseq
    %v3929 = vshrl.u32 %v3928, 7
    %v3930 = vsub.s32 %v3927, %v3929
    %v3931 = vrot.slane %v3924, %v3930
    %v3932 = vcombine.low %v3915, %v3923
    %v3934 = vunpack.c.l.s4 1934713408
    %v3935 = vunpack.c.0.s8 %v3934
    %v3936 = vlaneseq
    %v3937 = vshrl.u32 %v3936, 7
    %v3938 = vsub.s32 %v3935, %v3937
    %v3939 = vrot.slane %v3932, %v3938
    %v3940 = vcombine.low %v3931, %v3939
    %v3941 = vcombine.high %v3931, %v3939
    %v3942 = vcombine.low %v2581, %v2587
    %v3944 = vunpack.c.l.s4 1983009808
    %v3945 = vunpack.c.0.s8 %v3944
    %v3946 = vlaneseq
    %v3947 = vshrl.u32 %v3946, 7
    %v3948 = vsub.s32 %v3945, %v3947
    %v3949 = vrot.slane %v3942, %v3948
    %v3950 = vcombine.low %v2584, %v2590
    %v3952 = vunpack.c.l.s4 1983009808
    %v3953 = vunpack.c.0.s8 %v3952
    %v3954 = vlaneseq
    %v3955 = vshrl.u32 %v3954, 7
    %v3956 = vsub.s32 %v3953, %v3955
    %v3957 = vrot.slane %v3950, %v3956
    %v3958 = vcombine.low %v2593, %v2599
    %v3960 = vunpack.c.l.s4 1983009808
    %v3961 = vunpack.c.0.s8 %v3960
    %v3962 = vlaneseq
    %v3963 = vshrl.u32 %v3962, 7
    %v3964 = vsub.s32 %v3961, %v3963
    %v3965 = vrot.slane %v3958, %v3964
    %v3966 = vcombine.low %v2596, %v2602
    %v3968 = vunpack.c.l.s4 1983009808
    %v3969 = vunpack.c.0.s8 %v3968
    %v3970 = vlaneseq
    %v3971 = vshrl.u32 %v3970, 7
    %v3972 = vsub.s32 %v3969, %v3971
    %v3973 = vrot.slane %v3966, %v3972
    %v3974 = vcombine.low %v3949, %v3957
    %v3976 = vunpack.c.l.s4 1934713408
    %v3977 = vunpack.c.0.s8 %v3976
    %v3978 = vlaneseq
    %v3979 = vshrl.u32 %v3978, 7
    %v3980 = vsub.s32 %v3977, %v3979
    %v3981 = vrot.slane %v3974, %v3980
    %v3982 = vcombine.low %v3965, %v3973
    %v3984 = vunpack.c.l.s4 1934713408
    %v3985 = vunpack.c.0.s8 %v3984
    %v3986 = vlaneseq
    %v3987 = vshrl.u32 %v3986, 7
    %v3988 = vsub.s32 %v3985, %v3987
    %v3989 = vrot.slane %v3982, %v3988
    %v3990 = vcombine.low %v3981, %v3989
    %v3991 = vcombine.high %v3981, %v3989
    %v3992 = vcombine.low %v2038, %v2609
    %v3994 = vunpack.c.l.s4 1983009808
    %v3995 = vunpack.c.0.s8 %v3994
    %v3996 = vlaneseq
    %v3997 = vshrl.u32 %v3996, 7
    %v3998 = vsub.s32 %v3995, %v3997
    %v3999 = vrot.slane %v3992, %v3998
    %v4000 = vcombine.low %v2606, %v2612
    %v4002 = vunpack.c.l.s4 1983009808
    %v4003 = vunpack.c.0.s8 %v4002
    %v4004 = vlaneseq
    %v4005 = vshrl.u32 %v4004, 7
    %v4006 = vsub.s32 %v4003, %v4005
    %v4007 = vrot.slane %v4000, %v4006
    %v4008 = vcombine.low %v2615, %v2621
    %v4010 = vunpack.c.l.s4 1983009808
    %v4011 = vunpack.c.0.s8 %v4010
    %v4012 = vlaneseq
    %v4013 = vshrl.u32 %v4012, 7
    %v4014 = vsub.s32 %v4011, %v4013
    %v4015 = vrot.slane %v4008, %v4014
    %v4016 = vcombine.low %v2618, %v2624
    %v4018 = vunpack.c.l.s4 1983009808
    %v4019 = vunpack.c.0.s8 %v4018
    %v4020 = vlaneseq
    %v4021 = vshrl.u32 %v4020, 7
    %v4022 = vsub.s32 %v4019, %v4021
    %v4023 = vrot.slane %v4016, %v4022
    %v4024 = vcombine.low %v3999, %v4007
    %v4026 = vunpack.c.l.s4 1934713408
    %v4027 = vunpack.c.0.s8 %v4026
    %v4028 = vlaneseq
    %v4029 = vshrl.u32 %v4028, 7
    %v4030 = vsub.s32 %v4027, %v4029
    %v4031 = vrot.slane %v4024, %v4030
    %v4032 = vcombine.low %v4015, %v4023
    %v4034 = vunpack.c.l.s4 1934713408
    %v4035 = vunpack.c.0.s8 %v4034
    %v4036 = vlaneseq
    %v4037 = vshrl.u32 %v4036, 7
    %v4038 = vsub.s32 %v4035, %v4037
    %v4039 = vrot.slane %v4032, %v4038
    %v4040 = vcombine.low %v4031, %v4039
    %v4041 = vcombine.high %v4031, %v4039
    %v4042 = vcombine.low %v2627, %v2633
    %v4044 = vunpack.c.l.s4 1983009808
    %v4045 = vunpack.c.0.s8 %v4044
    %v4046 = vlaneseq
    %v4047 = vshrl.u32 %v4046, 7
    %v4048 = vsub.s32 %v4045, %v4047
    %v4049 = vrot.slane %v4042, %v4048
    %v4050 = vcombine.low %v2630, %v2636
    %v4052 = vunpack.c.l.s4 1983009808
    %v4053 = vunpack.c.0.s8 %v4052
    %v4054 = vlaneseq
    %v4055 = vshrl.u32 %v4054, 7
    %v4056 = vsub.s32 %v4053, %v4055
    %v4057 = vrot.slane %v4050, %v4056
    %v4058 = vcombine.low %v2639, %v2645
    %v4060 = vunpack.c.l.s4 1983009808
    %v4061 = vunpack.c.0.s8 %v4060
    %v4062 = vlaneseq
    %v4063 = vshrl.u32 %v4062, 7
    %v4064 = vsub.s32 %v4061, %v4063
    %v4065 = vrot.slane %v4058, %v4064
    %v4066 = vcombine.low %v2642, %v2648
    %v4068 = vunpack.c.l.s4 1983009808
    %v4069 = vunpack.c.0.s8 %v4068
    %v4070 = vlaneseq
    %v4071 = vshrl.u32 %v4070, 7
    %v4072 = vsub.s32 %v4069, %v4071
    %v4073 = vrot.slane %v4066, %v4072
    %v4074 = vcombine.low %v4049, %v4057
    %v4076 = vunpack.c.l.s4 1934713408
    %v4077 = vunpack.c.0.s8 %v4076
    %v4078 = vlaneseq
    %v4079 = vshrl.u32 %v4078, 7
    %v4080 = vsub.s32 %v4077, %v4079
    %v4081 = vrot.slane %v4074, %v4080
    %v4082 = vcombine.low %v4065, %v4073
    %v4084 = vunpack.c.l.s4 1934713408
    %v4085 = vunpack.c.0.s8 %v4084
    %v4086 = vlaneseq
    %v4087 = vshrl.u32 %v4086, 7
    %v4088 = vsub.s32 %v4085, %v4087
    %v4089 = vrot.slane %v4082, %v4088
    %v4090 = vcombine.low %v4081, %v4089
    %v4091 = vcombine.high %v4081, %v4089
    %v4092 = vcombine.low %v2651, %v2657
    %v4094 = vunpack.c.l.s4 1983009808
    %v4095 = vunpack.c.0.s8 %v4094
    %v4096 = vlaneseq
    %v4097 = vshrl.u32 %v4096, 7
    %v4098 = vsub.s32 %v4095, %v4097
    %v4099 = vrot.slane %v4092, %v4098
    %v4100 = vcombine.low %v2654, %v2660
    %v4102 = vunpack.c.l.s4 1983009808
    %v4103 = vunpack.c.0.s8 %v4102
    %v4104 = vlaneseq
    %v4105 = vshrl.u32 %v4104, 7
    %v4106 = vsub.s32 %v4103, %v4105
    %v4107 = vrot.slane %v4100, %v4106
    %v4108 = vcombine.low %v2663, %v2669
    %v4110 = vunpack.c.l.s4 1983009808
    %v4111 = vunpack.c.0.s8 %v4110
    %v4112 = vlaneseq
    %v4113 = vshrl.u32 %v4112, 7
    %v4114 = vsub.s32 %v4111, %v4113
    %v4115 = vrot.slane %v4108, %v4114
    %v4116 = vcombine.low %v2666, %v2672
    %v4118 = vunpack.c.l.s4 1983009808
    %v4119 = vunpack.c.0.s8 %v4118
    %v4120 = vlaneseq
    %v4121 = vshrl.u32 %v4120, 7
    %v4122 = vsub.s32 %v4119, %v4121
    %v4123 = vrot.slane %v4116, %v4122
    %v4124 = vcombine.low %v4099, %v4107
    %v4126 = vunpack.c.l.s4 1934713408
    %v4127 = vunpack.c.0.s8 %v4126
    %v4128 = vlaneseq
    %v4129 = vshrl.u32 %v4128, 7
    %v4130 = vsub.s32 %v4127, %v4129
    %v4131 = vrot.slane %v4124, %v4130
    %v4132 = vcombine.low %v4115, %v4123
    %v4134 = vunpack.c.l.s4 1934713408
    %v4135 = vunpack.c.0.s8 %v4134
    %v4136 = vlaneseq
    %v4137 = vshrl.u32 %v4136, 7
    %v4138 = vsub.s32 %v4135, %v4137
    %v4139 = vrot.slane %v4132, %v4138
    %v4140 = vcombine.low %v4131, %v4139
    %v4141 = vcombine.high %v4131, %v4139
    %v4142 = vcombine.low %v2675, %v2681
    %v4144 = vunpack.c.l.s4 1983009808
    %v4145 = vunpack.c.0.s8 %v4144
    %v4146 = vlaneseq
    %v4147 = vshrl.u32 %v4146, 7
    %v4148 = vsub.s32 %v4145, %v4147
    %v4149 = vrot.slane %v4142, %v4148
    %v4150 = vcombine.low %v2678, %v2684
    %v4152 = vunpack.c.l.s4 1983009808
    %v4153 = vunpack.c.0.s8 %v4152
    %v4154 = vlaneseq
    %v4155 = vshrl.u32 %v4154, 7
    %v4156 = vsub.s32 %v4153, %v4155
    %v4157 = vrot.slane %v4150, %v4156
    %v4158 = vcombine.low %v2687, %v2693
    %v4160 = vunpack.c.l.s4 1983009808
    %v4161 = vunpack.c.0.s8 %v4160
    %v4162 = vlaneseq
    %v4163 = vshrl.u32 %v4162, 7
    %v4164 = vsub.s32 %v4161, %v4163
    %v4165 = vrot.slane %v4158, %v4164
    %v4166 = vcombine.low %v2690, %v2696
    %v4168 = vunpack.c.l.s4 1983009808
    %v4169 = vunpack.c.0.s8 %v4168
    %v4170 = vlaneseq
    %v4171 = vshrl.u32 %v4170, 7
    %v4172 = vsub.s32 %v4169, %v4171
    %v4173 = vrot.slane %v4166, %v4172
    %v4174 = vcombine.low %v4149, %v4157
    %v4176 = vunpack.c.l.s4 1934713408
    %v4177 = vunpack.c.0.s8 %v4176
    %v4178 = vlaneseq
    %v4179 = vshrl.u32 %v4178, 7
    %v4180 = vsub.s32 %v4177, %v4179
    %v4181 = vrot.slane %v4174, %v4180
    %v4182 = vcombine.low %v4165, %v4173
    %v4184 = vunpack.c.l.s4 1934713408
    %v4185 = vunpack.c.0.s8 %v4184
    %v4186 = vlaneseq
    %v4187 = vshrl.u32 %v4186, 7
    %v4188 = vsub.s32 %v4185, %v4187
    %v4189 = vrot.slane %v4182, %v4188
    %v4190 = vcombine.low %v4181, %v4189
    %v4191 = vcombine.high %v4181, %v4189
    %v4192 = vcombine.low %v2039, %v2703
    %v4194 = vunpack.c.l.s4 1983009808
    %v4195 = vunpack.c.0.s8 %v4194
    %v4196 = vlaneseq
    %v4197 = vshrl.u32 %v4196, 7
    %v4198 = vsub.s32 %v4195, %v4197
    %v4199 = vrot.slane %v4192, %v4198
    %v4200 = vcombine.low %v2700, %v2706
    %v4202 = vunpack.c.l.s4 1983009808
    %v4203 = vunpack.c.0.s8 %v4202
    %v4204 = vlaneseq
    %v4205 = vshrl.u32 %v4204, 7
    %v4206 = vsub.s32 %v4203, %v4205
    %v4207 = vrot.slane %v4200, %v4206
    %v4208 = vcombine.low %v2709, %v2715
    %v4210 = vunpack.c.l.s4 1983009808
    %v4211 = vunpack.c.0.s8 %v4210
    %v4212 = vlaneseq
    %v4213 = vshrl.u32 %v4212, 7
    %v4214 = vsub.s32 %v4211, %v4213
    %v4215 = vrot.slane %v4208, %v4214
    %v4216 = vcombine.low %v2712, %v2718
    %v4218 = vunpack.c.l.s4 1983009808
    %v4219 = vunpack.c.0.s8 %v4218
    %v4220 = vlaneseq
    %v4221 = vshrl.u32 %v4220, 7
    %v4222 = vsub.s32 %v4219, %v4221
    %v4223 = vrot.slane %v4216, %v4222
    %v4224 = vcombine.low %v4199, %v4207
    %v4226 = vunpack.c.l.s4 1934713408
    %v4227 = vunpack.c.0.s8 %v4226
    %v4228 = vlaneseq
    %v4229 = vshrl.u32 %v4228, 7
    %v4230 = vsub.s32 %v4227, %v4229
    %v4231 = vrot.slane %v4224, %v4230
    %v4232 = vcombine.low %v4215, %v4223
    %v4234 = vunpack.c.l.s4 1934713408
    %v4235 = vunpack.c.0.s8 %v4234
    %v4236 = vlaneseq
    %v4237 = vshrl.u32 %v4236, 7
    %v4238 = vsub.s32 %v4235, %v4237
    %v4239 = vrot.slane %v4232, %v4238
    %v4240 = vcombine.low %v4231, %v4239
    %v4241 = vcombine.high %v4231, %v4239
    %v4242 = vcombine.low %v2721, %v2727
    %v4244 = vunpack.c.l.s4 1983009808
    %v4245 = vunpack.c.0.s8 %v4244
    %v4246 = vlaneseq
    %v4247 = vshrl.u32 %v4246, 7
    %v4248 = vsub.s32 %v4245, %v4247
    %v4249 = vrot.slane %v4242, %v4248
    %v4250 = vcombine.low %v2724, %v2730
    %v4252 = vunpack.c.l.s4 1983009808
    %v4253 = vunpack.c.0.s8 %v4252
    %v4254 = vlaneseq
    %v4255 = vshrl.u32 %v4254, 7
    %v4256 = vsub.s32 %v4253, %v4255
    %v4257 = vrot.slane %v4250, %v4256
    %v4258 = vcombine.low %v2733, %v2739
    %v4260 = vunpack.c.l.s4 1983009808
    %v4261 = vunpack.c.0.s8 %v4260
    %v4262 = vlaneseq
    %v4263 = vshrl.u32 %v4262, 7
    %v4264 = vsub.s32 %v4261, %v4263
    %v4265 = vrot.slane %v4258, %v4264
    %v4266 = vcombine.low %v2736, %v2742
    %v4268 = vunpack.c.l.s4 1983009808
    %v4269 = vunpack.c.0.s8 %v4268
    %v4270 = vlaneseq
    %v4271 = vshrl.u32 %v4270, 7
    %v4272 = vsub.s32 %v4269, %v4271
    %v4273 = vrot.slane %v4266, %v4272
    %v4274 = vcombine.low %v4249, %v4257
    %v4276 = vunpack.c.l.s4 1934713408
    %v4277 = vunpack.c.0.s8 %v4276
    %v4278 = vlaneseq
    %v4279 = vshrl.u32 %v4278, 7
    %v4280 = vsub.s32 %v4277, %v4279
    %v4281 = vrot.slane %v4274, %v4280
    %v4282 = vcombine.low %v4265, %v4273
    %v4284 = vunpack.c.l.s4 1934713408
    %v4285 = vunpack.c.0.s8 %v4284
    %v4286 = vlaneseq
    %v4287 = vshrl.u32 %v4286, 7
    %v4288 = vsub.s32 %v4285, %v4287
    %v4289 = vrot.slane %v4282, %v4288
    %v4290 = vcombine.low %v4281, %v4289
    %v4291 = vcombine.high %v4281, %v4289
    %v4292 = vcombine.low %v2745, %v2751
    %v4294 = vunpack.c.l.s4 1983009808
    %v4295 = vunpack.c.0.s8 %v4294
    %v4296 = vlaneseq
    %v4297 = vshrl.u32 %v4296, 7
    %v4298 = vsub.s32 %v4295, %v4297
    %v4299 = vrot.slane %v4292, %v4298
    %v4300 = vcombine.low %v2748, %v2754
    %v4302 = vunpack.c.l.s4 1983009808
    %v4303 = vunpack.c.0.s8 %v4302
    %v4304 = vlaneseq
    %v4305 = vshrl.u32 %v4304, 7
    %v4306 = vsub.s32 %v4303, %v4305
    %v4307 = vrot.slane %v4300, %v4306
    %v4308 = vcombine.low %v2757, %v2763
    %v4310 = vunpack.c.l.s4 1983009808
    %v4311 = vunpack.c.0.s8 %v4310
    %v4312 = vlaneseq
    %v4313 = vshrl.u32 %v4312, 7
    %v4314 = vsub.s32 %v4311, %v4313
    %v4315 = vrot.slane %v4308, %v4314
    %v4316 = vcombine.low %v2760, %v2766
    %v4318 = vunpack.c.l.s4 1983009808
    %v4319 = vunpack.c.0.s8 %v4318
    %v4320 = vlaneseq
    %v4321 = vshrl.u32 %v4320, 7
    %v4322 = vsub.s32 %v4319, %v4321
    %v4323 = vrot.slane %v4316, %v4322
    %v4324 = vcombine.low %v4299, %v4307
    %v4326 = vunpack.c.l.s4 1934713408
    %v4327 = vunpack.c.0.s8 %v4326
    %v4328 = vlaneseq
    %v4329 = vshrl.u32 %v4328, 7
    %v4330 = vsub.s32 %v4327, %v4329
    %v4331 = vrot.slane %v4324, %v4330
    %v4332 = vcombine.low %v4315, %v4323
    %v4334 = vunpack.c.l.s4 1934713408
    %v4335 = vunpack.c.0.s8 %v4334
    %v4336 = vlaneseq
    %v4337 = vshrl.u32 %v4336, 7
    %v4338 = vsub.s32 %v4335, %v4337
    %v4339 = vrot.slane %v4332, %v4338
    %v4340 = vcombine.low %v4331, %v4339
    %v4341 = vcombine.high %v4331, %v4339
    %v4342 = vcombine.low %v2769, %v2775
    %v4344 = vunpack.c.l.s4 1983009808
    %v4345 = vunpack.c.0.s8 %v4344
    %v4346 = vlaneseq
    %v4347 = vshrl.u32 %v4346, 7
    %v4348 = vsub.s32 %v4345, %v4347
    %v4349 = vrot.slane %v4342, %v4348
    %v4350 = vcombine.low %v2772, %v2778
    %v4352 = vunpack.c.l.s4 1983009808
    %v4353 = vunpack.c.0.s8 %v4352
    %v4354 = vlaneseq
    %v4355 = vshrl.u32 %v4354, 7
    %v4356 = vsub.s32 %v4353, %v4355
    %v4357 = vrot.slane %v4350, %v4356
    %v4358 = vcombine.low %v2781, %v2787
    %v4360 = vunpack.c.l.s4 1983009808
    %v4361 = vunpack.c.0.s8 %v4360
    %v4362 = vlaneseq
    %v4363 = vshrl.u32 %v4362, 7
    %v4364 = vsub.s32 %v4361, %v4363
    %v4365 = vrot.slane %v4358, %v4364
    %v4366 = vcombine.low %v2784, %v2790
    %v4368 = vunpack.c.l.s4 1983009808
    %v4369 = vunpack.c.0.s8 %v4368
    %v4370 = vlaneseq
    %v4371 = vshrl.u32 %v4370, 7
    %v4372 = vsub.s32 %v4369, %v4371
    %v4373 = vrot.slane %v4366, %v4372
    %v4374 = vcombine.low %v4349, %v4357
    %v4376 = vunpack.c.l.s4 1934713408
    %v4377 = vunpack.c.0.s8 %v4376
    %v4378 = vlaneseq
    %v4379 = vshrl.u32 %v4378, 7
    %v4380 = vsub.s32 %v4377, %v4379
    %v4381 = vrot.slane %v4374, %v4380
    %v4382 = vcombine.low %v4365, %v4373
    %v4384 = vunpack.c.l.s4 1934713408
    %v4385 = vunpack.c.0.s8 %v4384
    %v4386 = vlaneseq
    %v4387 = vshrl.u32 %v4386, 7
    %v4388 = vsub.s32 %v4385, %v4387
    %v4389 = vrot.slane %v4382, %v4388
    %v4390 = vcombine.low %v4381, %v4389
    %v4391 = vcombine.high %v4381, %v4389
    %vm4392 = vcmask 31744
    %v4393 = vsel %vm4392, %v2840, 0.0
    %4394 = vadd.xlane.f32.xlu0 %v4393
    %v4395 = vpop.xlane.xlu0 %4394
    %v4396 = vsel %vm4392, %v2890, 0.0
    %4397 = vadd.xlane.f32.xlu0 %v4396
    %v4398 = vpop.xlane.xlu0 %4397
    %v4399 = vsel %vm4392, %v2940, 0.0
    %4400 = vadd.xlane.f32.xlu0 %v4399
    %v4401 = vpop.xlane.xlu0 %4400
    %v4402 = vsel %vm4392, %v2990, 0.0
    %4403 = vadd.xlane.f32.xlu0 %v4402
    %v4404 = vpop.xlane.xlu0 %4403
    %v4405 = vsel %vm4392, %v3040, 0.0
    %4406 = vadd.xlane.f32.xlu0 %v4405
    %v4407 = vpop.xlane.xlu0 %4406
    %v4408 = vsel %vm4392, %v3090, 0.0
    %4409 = vadd.xlane.f32.xlu0 %v4408
    %v4410 = vpop.xlane.xlu0 %4409
    %v4411 = vsel %vm4392, %v3140, 0.0
    %4412 = vadd.xlane.f32.xlu0 %v4411
    %v4413 = vpop.xlane.xlu0 %4412
    %v4414 = vsel %vm4392, %v3190, 0.0
    %4415 = vadd.xlane.f32.xlu0 %v4414
    %v4416 = vpop.xlane.xlu0 %4415
    %v4417 = vsel %vm4392, %v3240, 0.0
    %4418 = vadd.xlane.f32.xlu0 %v4417
    %v4419 = vpop.xlane.xlu0 %4418
    %v4420 = vsel %vm4392, %v3290, 0.0
    %4421 = vadd.xlane.f32.xlu0 %v4420
    %v4422 = vpop.xlane.xlu0 %4421
    %v4423 = vsel %vm4392, %v3340, 0.0
    %4424 = vadd.xlane.f32.xlu0 %v4423
    %v4425 = vpop.xlane.xlu0 %4424
    %v4426 = vsel %vm4392, %v3390, 0.0
    %4427 = vadd.xlane.f32.xlu0 %v4426
    %v4428 = vpop.xlane.xlu0 %4427
    %v4429 = vsel %vm4392, %v3440, 0.0
    %4430 = vadd.xlane.f32.xlu0 %v4429
    %v4431 = vpop.xlane.xlu0 %4430
    %v4432 = vsel %vm4392, %v3490, 0.0
    %4433 = vadd.xlane.f32.xlu0 %v4432
    %v4434 = vpop.xlane.xlu0 %4433
    %v4435 = vsel %vm4392, %v3540, 0.0
    %4436 = vadd.xlane.f32.xlu0 %v4435
    %v4437 = vpop.xlane.xlu0 %4436
    %v4438 = vsel %vm4392, %v3590, 0.0
    %4439 = vadd.xlane.f32.xlu0 %v4438
    %v4440 = vpop.xlane.xlu0 %4439
    %v4441 = vsel %vm4392, %v3640, 0.0
    %4442 = vadd.xlane.f32.xlu0 %v4441
    %v4443 = vpop.xlane.xlu0 %4442
    %v4444 = vsel %vm4392, %v3690, 0.0
    %4445 = vadd.xlane.f32.xlu0 %v4444
    %v4446 = vpop.xlane.xlu0 %4445
    %v4447 = vsel %vm4392, %v3740, 0.0
    %4448 = vadd.xlane.f32.xlu0 %v4447
    %v4449 = vpop.xlane.xlu0 %4448
    %v4450 = vsel %vm4392, %v3790, 0.0
    %4451 = vadd.xlane.f32.xlu0 %v4450
    %v4452 = vpop.xlane.xlu0 %4451
    %v4453 = vsel %vm4392, %v3840, 0.0
    %4454 = vadd.xlane.f32.xlu0 %v4453
    %v4455 = vpop.xlane.xlu0 %4454
    %v4456 = vsel %vm4392, %v3890, 0.0
    %4457 = vadd.xlane.f32.xlu0 %v4456
    %v4458 = vpop.xlane.xlu0 %4457
    %v4459 = vsel %vm4392, %v3940, 0.0
    %4460 = vadd.xlane.f32.xlu0 %v4459
    %v4461 = vpop.xlane.xlu0 %4460
    %v4462 = vsel %vm4392, %v3990, 0.0
    %4463 = vadd.xlane.f32.xlu0 %v4462
    %v4464 = vpop.xlane.xlu0 %4463
    %v4465 = vsel %vm4392, %v4040, 0.0
    %4466 = vadd.xlane.f32.xlu0 %v4465
    %v4467 = vpop.xlane.xlu0 %4466
    %v4468 = vsel %vm4392, %v4090, 0.0
    %4469 = vadd.xlane.f32.xlu0 %v4468
    %v4470 = vpop.xlane.xlu0 %4469
    %v4471 = vsel %vm4392, %v4140, 0.0
    %4472 = vadd.xlane.f32.xlu0 %v4471
    %v4473 = vpop.xlane.xlu0 %4472
    %v4474 = vsel %vm4392, %v4190, 0.0
    %4475 = vadd.xlane.f32.xlu0 %v4474
    %v4476 = vpop.xlane.xlu0 %4475
    %v4477 = vsel %vm4392, %v4240, 0.0
    %4478 = vadd.xlane.f32.xlu0 %v4477
    %v4479 = vpop.xlane.xlu0 %4478
    %v4480 = vsel %vm4392, %v4290, 0.0
    %4481 = vadd.xlane.f32.xlu0 %v4480
    %v4482 = vpop.xlane.xlu0 %4481
    %v4483 = vsel %vm4392, %v4340, 0.0
    %4484 = vadd.xlane.f32.xlu0 %v4483
    %v4485 = vpop.xlane.xlu0 %4484
    %v4486 = vsel %vm4392, %v4390, 0.0
    %4487 = vadd.xlane.f32.xlu0 %v4486
    %v4488 = vpop.xlane.xlu0 %4487
    %v4489 = vsel %vm4392, %v2841, 0.0
    %4490 = vadd.xlane.f32.xlu0 %v4489
    %v4491 = vpop.xlane.xlu0 %4490
    %v4492 = vsel %vm4392, %v2891, 0.0
    %4493 = vadd.xlane.f32.xlu0 %v4492
    %v4494 = vpop.xlane.xlu0 %4493
    %v4495 = vsel %vm4392, %v2941, 0.0
    %4496 = vadd.xlane.f32.xlu0 %v4495
    %v4497 = vpop.xlane.xlu0 %4496
    %v4498 = vsel %vm4392, %v2991, 0.0
    %4499 = vadd.xlane.f32.xlu0 %v4498
    %v4500 = vpop.xlane.xlu0 %4499
    %v4501 = vsel %vm4392, %v3041, 0.0
    %4502 = vadd.xlane.f32.xlu0 %v4501
    %v4503 = vpop.xlane.xlu0 %4502
    %v4504 = vsel %vm4392, %v3091, 0.0
    %4505 = vadd.xlane.f32.xlu0 %v4504
    %v4506 = vpop.xlane.xlu0 %4505
    %v4507 = vsel %vm4392, %v3141, 0.0
    %4508 = vadd.xlane.f32.xlu0 %v4507
    %v4509 = vpop.xlane.xlu0 %4508
    %v4510 = vsel %vm4392, %v3191, 0.0
    %4511 = vadd.xlane.f32.xlu0 %v4510
    %v4512 = vpop.xlane.xlu0 %4511
    %v4513 = vsel %vm4392, %v3241, 0.0
    %4514 = vadd.xlane.f32.xlu0 %v4513
    %v4515 = vpop.xlane.xlu0 %4514
    %v4516 = vsel %vm4392, %v3291, 0.0
    %4517 = vadd.xlane.f32.xlu0 %v4516
    %v4518 = vpop.xlane.xlu0 %4517
    %v4519 = vsel %vm4392, %v3341, 0.0
    %4520 = vadd.xlane.f32.xlu0 %v4519
    %v4521 = vpop.xlane.xlu0 %4520
    %v4522 = vsel %vm4392, %v3391, 0.0
    %4523 = vadd.xlane.f32.xlu0 %v4522
    %v4524 = vpop.xlane.xlu0 %4523
    %v4525 = vsel %vm4392, %v3441, 0.0
    %4526 = vadd.xlane.f32.xlu0 %v4525
    %v4527 = vpop.xlane.xlu0 %4526
    %v4528 = vsel %vm4392, %v3491, 0.0
    %4529 = vadd.xlane.f32.xlu0 %v4528
    %v4530 = vpop.xlane.xlu0 %4529
    %v4531 = vsel %vm4392, %v3541, 0.0
    %4532 = vadd.xlane.f32.xlu0 %v4531
    %v4533 = vpop.xlane.xlu0 %4532
    %v4534 = vsel %vm4392, %v3591, 0.0
    %4535 = vadd.xlane.f32.xlu0 %v4534
    %v4536 = vpop.xlane.xlu0 %4535
    %v4537 = vsel %vm4392, %v3641, 0.0
    %4538 = vadd.xlane.f32.xlu0 %v4537
    %v4539 = vpop.xlane.xlu0 %4538
    %v4540 = vsel %vm4392, %v3691, 0.0
    %4541 = vadd.xlane.f32.xlu0 %v4540
    %v4542 = vpop.xlane.xlu0 %4541
    %v4543 = vsel %vm4392, %v3741, 0.0
    %4544 = vadd.xlane.f32.xlu0 %v4543
    %v4545 = vpop.xlane.xlu0 %4544
    %v4546 = vsel %vm4392, %v3791, 0.0
    %4547 = vadd.xlane.f32.xlu0 %v4546
    %v4548 = vpop.xlane.xlu0 %4547
    %v4549 = vsel %vm4392, %v3841, 0.0
    %4550 = vadd.xlane.f32.xlu0 %v4549
    %v4551 = vpop.xlane.xlu0 %4550
    %v4552 = vsel %vm4392, %v3891, 0.0
    %4553 = vadd.xlane.f32.xlu0 %v4552
    %v4554 = vpop.xlane.xlu0 %4553
    %v4555 = vsel %vm4392, %v3941, 0.0
    %4556 = vadd.xlane.f32.xlu0 %v4555
    %v4557 = vpop.xlane.xlu0 %4556
    %v4558 = vsel %vm4392, %v3991, 0.0
    %4559 = vadd.xlane.f32.xlu0 %v4558
    %v4560 = vpop.xlane.xlu0 %4559
    %v4561 = vsel %vm4392, %v4041, 0.0
    %4562 = vadd.xlane.f32.xlu0 %v4561
    %v4563 = vpop.xlane.xlu0 %4562
    %v4564 = vsel %vm4392, %v4091, 0.0
    %4565 = vadd.xlane.f32.xlu0 %v4564
    %v4566 = vpop.xlane.xlu0 %4565
    %v4567 = vsel %vm4392, %v4141, 0.0
    %4568 = vadd.xlane.f32.xlu0 %v4567
    %v4569 = vpop.xlane.xlu0 %4568
    %v4570 = vsel %vm4392, %v4191, 0.0
    %4571 = vadd.xlane.f32.xlu0 %v4570
    %v4572 = vpop.xlane.xlu0 %4571
    %v4573 = vsel %vm4392, %v4241, 0.0
    %4574 = vadd.xlane.f32.xlu0 %v4573
    %v4575 = vpop.xlane.xlu0 %4574
    %v4576 = vsel %vm4392, %v4291, 0.0
    %4577 = vadd.xlane.f32.xlu0 %v4576
    %v4578 = vpop.xlane.xlu0 %4577
    %v4579 = vsel %vm4392, %v4341, 0.0
    %4580 = vadd.xlane.f32.xlu0 %v4579
    %v4581 = vpop.xlane.xlu0 %4580
    %v4582 = vsel %vm4392, %v4391, 0.0
    %4583 = vadd.xlane.f32.xlu0 %v4582
    %v4584 = vpop.xlane.xlu0 %4583
    %v4585 = vmul.f32 %v4395, 0.25
    %v4586 = vmul.f32 %v4398, 0.25
    %v4587 = vmul.f32 %v4401, 0.25
    %v4588 = vmul.f32 %v4404, 0.25
    %v4589 = vmul.f32 %v4407, 0.25
    %v4590 = vmul.f32 %v4410, 0.25
    %v4591 = vmul.f32 %v4413, 0.25
    %v4592 = vmul.f32 %v4416, 0.25
    %v4593 = vmul.f32 %v4419, 0.25
    %v4594 = vmul.f32 %v4422, 0.25
    %v4595 = vmul.f32 %v4425, 0.25
    %v4596 = vmul.f32 %v4428, 0.25
    %v4597 = vmul.f32 %v4431, 0.25
    %v4598 = vmul.f32 %v4434, 0.25
    %v4599 = vmul.f32 %v4437, 0.25
    %v4600 = vmul.f32 %v4440, 0.25
    %v4601 = vmul.f32 %v4443, 0.25
    %v4602 = vmul.f32 %v4446, 0.25
    %v4603 = vmul.f32 %v4449, 0.25
    %v4604 = vmul.f32 %v4452, 0.25
    %v4605 = vmul.f32 %v4455, 0.25
    %v4606 = vmul.f32 %v4458, 0.25
    %v4607 = vmul.f32 %v4461, 0.25
    %v4608 = vmul.f32 %v4464, 0.25
    %v4609 = vmul.f32 %v4467, 0.25
    %v4610 = vmul.f32 %v4470, 0.25
    %v4611 = vmul.f32 %v4473, 0.25
    %v4612 = vmul.f32 %v4476, 0.25
    %v4613 = vmul.f32 %v4479, 0.25
    %v4614 = vmul.f32 %v4482, 0.25
    %v4615 = vmul.f32 %v4485, 0.25
    %v4616 = vmul.f32 %v4488, 0.25
    %v4617 = vmul.f32 %v4491, 0.25
    %v4618 = vmul.f32 %v4494, 0.25
    %v4619 = vmul.f32 %v4497, 0.25
    %v4620 = vmul.f32 %v4500, 0.25
    %v4621 = vmul.f32 %v4503, 0.25
    %v4622 = vmul.f32 %v4506, 0.25
    %v4623 = vmul.f32 %v4509, 0.25
    %v4624 = vmul.f32 %v4512, 0.25
    %v4625 = vmul.f32 %v4515, 0.25
    %v4626 = vmul.f32 %v4518, 0.25
    %v4627 = vmul.f32 %v4521, 0.25
    %v4628 = vmul.f32 %v4524, 0.25
    %v4629 = vmul.f32 %v4527, 0.25
    %v4630 = vmul.f32 %v4530, 0.25
    %v4631 = vmul.f32 %v4533, 0.25
    %v4632 = vmul.f32 %v4536, 0.25
    %v4633 = vmul.f32 %v4539, 0.25
    %v4634 = vmul.f32 %v4542, 0.25
    %v4635 = vmul.f32 %v4545, 0.25
    %v4636 = vmul.f32 %v4548, 0.25
    %v4637 = vmul.f32 %v4551, 0.25
    %v4638 = vmul.f32 %v4554, 0.25
    %v4639 = vmul.f32 %v4557, 0.25
    %v4640 = vmul.f32 %v4560, 0.25
    %v4641 = vmul.f32 %v4563, 0.25
    %v4642 = vmul.f32 %v4566, 0.25
    %v4643 = vmul.f32 %v4569, 0.25
    %v4644 = vmul.f32 %v4572, 0.25
    %v4645 = vmul.f32 %v4575, 0.25
    %v4646 = vmul.f32 %v4578, 0.25
    %v4647 = vmul.f32 %v4581, 0.25
    %v4648 = vmul.f32 %v4584, 0.25
    %v4649 = vpack.c.bf16 %v4586, %v4585
    %v4650 = vpack.c.bf16 %v4588, %v4587
    %v4651 = vpack.c.bf16 %v4590, %v4589
    %v4652 = vpack.c.bf16 %v4592, %v4591
    %v4653 = vpack.c.bf16 %v4594, %v4593
    %v4654 = vpack.c.bf16 %v4596, %v4595
    %v4655 = vpack.c.bf16 %v4598, %v4597
    %v4656 = vpack.c.bf16 %v4600, %v4599
    %v4657 = vpack.c.bf16 %v4602, %v4601
    %v4658 = vpack.c.bf16 %v4604, %v4603
    %v4659 = vpack.c.bf16 %v4606, %v4605
    %v4660 = vpack.c.bf16 %v4608, %v4607
    %v4661 = vpack.c.bf16 %v4610, %v4609
    %v4662 = vpack.c.bf16 %v4612, %v4611
    %v4663 = vpack.c.bf16 %v4614, %v4613
    %v4664 = vpack.c.bf16 %v4616, %v4615
    %v4665 = vpack.c.bf16 %v4618, %v4617
    %v4666 = vpack.c.bf16 %v4620, %v4619
    %v4667 = vpack.c.bf16 %v4622, %v4621
    %v4668 = vpack.c.bf16 %v4624, %v4623
    %v4669 = vpack.c.bf16 %v4626, %v4625
    %v4670 = vpack.c.bf16 %v4628, %v4627
    %v4671 = vpack.c.bf16 %v4630, %v4629
    %v4672 = vpack.c.bf16 %v4632, %v4631
    %v4673 = vpack.c.bf16 %v4634, %v4633
    %v4674 = vpack.c.bf16 %v4636, %v4635
    %v4675 = vpack.c.bf16 %v4638, %v4637
    %v4676 = vpack.c.bf16 %v4640, %v4639
    %v4677 = vpack.c.bf16 %v4642, %v4641
    %v4678 = vpack.c.bf16 %v4644, %v4643
    %v4679 = vpack.c.bf16 %v4646, %v4645
    %v4680 = vpack.c.bf16 %v4648, %v4647
    %v4681 = vld [vmem:[#allocation5] sm:$0xff]
    %v4682 = vld [vmem:[#allocation5 + $0x8] sm:$0xff]
    %v4683 = vld [vmem:[#allocation5 + $0x10] sm:$0xff]
    %v4684 = vld [vmem:[#allocation5 + $0x18] sm:$0xff]
    %v4685 = vld [vmem:[#allocation5 + $0x20] sm:$0xff]
    %v4686 = vld [vmem:[#allocation5 + $0x28] sm:$0xff]
    %v4687 = vld [vmem:[#allocation5 + $0x30] sm:$0xff]
    %v4688 = vld [vmem:[#allocation5 + $0x38] sm:$0xff]
    %v4689 = vld [vmem:[#allocation5 + $0x40] sm:$0xff]
    %v4690 = vld [vmem:[#allocation5 + $0x48] sm:$0xff]
    %v4691 = vld [vmem:[#allocation5 + $0x50] sm:$0xff]
    %v4692 = vld [vmem:[#allocation5 + $0x58] sm:$0xff]
    %v4693 = vld [vmem:[#allocation5 + $0x60] sm:$0xff]
    %v4694 = vld [vmem:[#allocation5 + $0x68] sm:$0xff]
    %v4695 = vld [vmem:[#allocation5 + $0x70] sm:$0xff]
    %v4696 = vld [vmem:[#allocation5 + $0x78] sm:$0xff]
    %v4697 = vld [vmem:[#allocation5 + $0x80] sm:$0xff]
    %v4698 = vld [vmem:[#allocation5 + $0x88] sm:$0xff]
    %v4699 = vld [vmem:[#allocation5 + $0x90] sm:$0xff]
    %v4700 = vld [vmem:[#allocation5 + $0x98] sm:$0xff]
    %v4701 = vld [vmem:[#allocation5 + $0xa0] sm:$0xff]
    %v4702 = vld [vmem:[#allocation5 + $0xa8] sm:$0xff]
    %v4703 = vld [vmem:[#allocation5 + $0xb0] sm:$0xff]
    %v4704 = vld [vmem:[#allocation5 + $0xb8] sm:$0xff]
    %v4705 = vld [vmem:[#allocation5 + $0xc0] sm:$0xff]
    %v4706 = vld [vmem:[#allocation5 + $0xc8] sm:$0xff]
    %v4707 = vld [vmem:[#allocation5 + $0xd0] sm:$0xff]
    %v4708 = vld [vmem:[#allocation5 + $0xd8] sm:$0xff]
    %v4709 = vld [vmem:[#allocation5 + $0xe0] sm:$0xff]
    %v4710 = vld [vmem:[#allocation5 + $0xe8] sm:$0xff]
    %v4711 = vld [vmem:[#allocation5 + $0xf0] sm:$0xff]
    %v4712 = vld [vmem:[#allocation5 + $0xf8] sm:$0xff]
    %v4713 = vld [vmem:[%s4] sm:$0x3]
    %v4715 = vlaneseq
    %v4716 = vshrl.u32 %v4715, 7
    %v4717 = vsub.s32 0, %v4716
    %v4718 = vrot.slane %v4713, %v4717
    %v4719 = vlaneseq
    %v4720 = vshrl.u32 %v4719, 7
    %v4721 = vsub.s32 1, %v4720
    %v4722 = vrot.slane %v4713, %v4721
    %v4757 = vunpack.c.l.b16 %v4649
    %v4758 = vunpack.c.h.b16 %v4649
    %v4759 = vunpack.c.l.b16 %v4650
    %v4760 = vunpack.c.h.b16 %v4650
    %v4761 = vunpack.c.l.b16 %v4651
    %v4762 = vunpack.c.h.b16 %v4651
    %v4763 = vunpack.c.l.b16 %v4652
    %v4764 = vunpack.c.h.b16 %v4652
    %v4765 = vunpack.c.l.b16 %v4653
    %v4766 = vunpack.c.h.b16 %v4653
    %v4767 = vunpack.c.l.b16 %v4654
    %v4768 = vunpack.c.h.b16 %v4654
    %v4769 = vunpack.c.l.b16 %v4655
    %v4770 = vunpack.c.h.b16 %v4655
    %v4771 = vunpack.c.l.b16 %v4656
    %v4772 = vunpack.c.h.b16 %v4656
    %v4773 = vunpack.c.l.b16 %v4657
    %v4774 = vunpack.c.h.b16 %v4657
    %v4775 = vunpack.c.l.b16 %v4658
    %v4776 = vunpack.c.h.b16 %v4658
    %v4777 = vunpack.c.l.b16 %v4659
    %v4778 = vunpack.c.h.b16 %v4659
    %v4779 = vunpack.c.l.b16 %v4660
    %v4780 = vunpack.c.h.b16 %v4660
    %v4781 = vunpack.c.l.b16 %v4661
    %v4782 = vunpack.c.h.b16 %v4661
    %v4783 = vunpack.c.l.b16 %v4662
    %v4784 = vunpack.c.h.b16 %v4662
    %v4785 = vunpack.c.l.b16 %v4663
    %v4786 = vunpack.c.h.b16 %v4663
    %v4787 = vunpack.c.l.b16 %v4664
    %v4788 = vunpack.c.h.b16 %v4664
    %v4789 = vunpack.c.l.b16 %v4665
    %v4790 = vunpack.c.h.b16 %v4665
    %v4791 = vunpack.c.l.b16 %v4666
    %v4792 = vunpack.c.h.b16 %v4666
    %v4793 = vunpack.c.l.b16 %v4667
    %v4794 = vunpack.c.h.b16 %v4667
    %v4795 = vunpack.c.l.b16 %v4668
    %v4796 = vunpack.c.h.b16 %v4668
    %v4797 = vunpack.c.l.b16 %v4669
    %v4798 = vunpack.c.h.b16 %v4669
    %v4799 = vunpack.c.l.b16 %v4670
    %v4800 = vunpack.c.h.b16 %v4670
    %v4801 = vunpack.c.l.b16 %v4671
    %v4802 = vunpack.c.h.b16 %v4671
    %v4803 = vunpack.c.l.b16 %v4672
    %v4804 = vunpack.c.h.b16 %v4672
    %v4805 = vunpack.c.l.b16 %v4673
    %v4806 = vunpack.c.h.b16 %v4673
    %v4807 = vunpack.c.l.b16 %v4674
    %v4808 = vunpack.c.h.b16 %v4674
    %v4809 = vunpack.c.l.b16 %v4675
    %v4810 = vunpack.c.h.b16 %v4675
    %v4811 = vunpack.c.l.b16 %v4676
    %v4812 = vunpack.c.h.b16 %v4676
    %v4813 = vunpack.c.l.b16 %v4677
    %v4814 = vunpack.c.h.b16 %v4677
    %v4815 = vunpack.c.l.b16 %v4678
    %v4816 = vunpack.c.h.b16 %v4678
    %v4817 = vunpack.c.l.b16 %v4679
    %v4818 = vunpack.c.h.b16 %v4679
    %v4819 = vunpack.c.l.b16 %v4680
    %v4820 = vunpack.c.h.b16 %v4680
    %v4821 = vlaneseq
    %v4822 = vand.u32 %v4821, 127
    %v4823 = vlaneseq
    %v4824 = vshrl.u32 %v4823, 7
    %v4825 = vsub.s32 %v4822, %v4824
    %v4826 = vrot.slane %v4757, %v4825
    %v4827 = vadd.s32 %v4822, 4294967288
    %v4828 = vlaneseq
    %v4829 = vshrl.u32 %v4828, 7
    %v4830 = vsub.s32 %v4827, %v4829
    %v4831 = vrot.slane %v4758, %v4830
    %vm4832 = vcmask 130112
    %v4833 = vsel %vm4832, %v4831, %v4826
    %v4834 = vadd.s32 %v4822, 4294967280
    %v4835 = vlaneseq
    %v4836 = vshrl.u32 %v4835, 7
    %v4837 = vsub.s32 %v4834, %v4836
    %v4838 = vrot.slane %v4759, %v4837
    %vm4839 = vcmask 195712
    %v4840 = vsel %vm4839, %v4838, %v4833
    %v4841 = vadd.s32 %v4822, 4294967272
    %v4842 = vlaneseq
    %v4843 = vshrl.u32 %v4842, 7
    %v4844 = vsub.s32 %v4841, %v4843
    %v4845 = vrot.slane %v4760, %v4844
    %vm4846 = vcmask 261312
    %v4847 = vsel %vm4846, %v4845, %v4840
    %v4848 = vadd.s32 %v4822, 4294967264
    %v4849 = vlaneseq
    %v4850 = vshrl.u32 %v4849, 7
    %v4851 = vsub.s32 %v4848, %v4850
    %v4852 = vrot.slane %v4761, %v4851
    %vm4853 = vcmask 326912
    %v4854 = vsel %vm4853, %v4852, %v4847
    %v4855 = vadd.s32 %v4822, 4294967256
    %v4856 = vlaneseq
    %v4857 = vshrl.u32 %v4856, 7
    %v4858 = vsub.s32 %v4855, %v4857
    %v4859 = vrot.slane %v4762, %v4858
    %vm4860 = vcmask 392512
    %v4861 = vsel %vm4860, %v4859, %v4854
    %v4862 = vadd.s32 %v4822, 4294967248
    %v4863 = vlaneseq
    %v4864 = vshrl.u32 %v4863, 7
    %v4865 = vsub.s32 %v4862, %v4864
    %v4866 = vrot.slane %v4763, %v4865
    %vm4867 = vcmask 458112
    %v4868 = vsel %vm4867, %v4866, %v4861
    %v4869 = vadd.s32 %v4822, 4294967240
    %v4870 = vlaneseq
    %v4871 = vshrl.u32 %v4870, 7
    %v4872 = vsub.s32 %v4869, %v4871
    %v4873 = vrot.slane %v4764, %v4872
    %vm4874 = vcmask 523712
    %v4875 = vsel %vm4874, %v4873, %v4868
    %v4876 = vadd.s32 %v4822, 4294967232
    %v4877 = vlaneseq
    %v4878 = vshrl.u32 %v4877, 7
    %v4879 = vsub.s32 %v4876, %v4878
    %v4880 = vrot.slane %v4765, %v4879
    %vm4881 = vcmask 589312
    %v4882 = vsel %vm4881, %v4880, %v4875
    %v4883 = vadd.s32 %v4822, 4294967224
    %v4884 = vlaneseq
    %v4885 = vshrl.u32 %v4884, 7
    %v4886 = vsub.s32 %v4883, %v4885
    %v4887 = vrot.slane %v4766, %v4886
    %vm4888 = vcmask 654912
    %v4889 = vsel %vm4888, %v4887, %v4882
    %v4890 = vadd.s32 %v4822, 4294967216
    %v4891 = vlaneseq
    %v4892 = vshrl.u32 %v4891, 7
    %v4893 = vsub.s32 %v4890, %v4892
    %v4894 = vrot.slane %v4767, %v4893
    %vm4895 = vcmask 720512
    %v4896 = vsel %vm4895, %v4894, %v4889
    %v4897 = vadd.s32 %v4822, 4294967208
    %v4898 = vlaneseq
    %v4899 = vshrl.u32 %v4898, 7
    %v4900 = vsub.s32 %v4897, %v4899
    %v4901 = vrot.slane %v4768, %v4900
    %vm4902 = vcmask 786112
    %v4903 = vsel %vm4902, %v4901, %v4896
    %v4904 = vadd.s32 %v4822, 4294967200
    %v4905 = vlaneseq
    %v4906 = vshrl.u32 %v4905, 7
    %v4907 = vsub.s32 %v4904, %v4906
    %v4908 = vrot.slane %v4769, %v4907
    %vm4909 = vcmask 851712
    %v4910 = vsel %vm4909, %v4908, %v4903
    %v4911 = vadd.s32 %v4822, 4294967192
    %v4912 = vlaneseq
    %v4913 = vshrl.u32 %v4912, 7
    %v4914 = vsub.s32 %v4911, %v4913
    %v4915 = vrot.slane %v4770, %v4914
    %vm4916 = vcmask 917312
    %v4917 = vsel %vm4916, %v4915, %v4910
    %v4918 = vadd.s32 %v4822, 4294967184
    %v4919 = vlaneseq
    %v4920 = vshrl.u32 %v4919, 7
    %v4921 = vsub.s32 %v4918, %v4920
    %v4922 = vrot.slane %v4771, %v4921
    %vm4923 = vcmask 982912
    %v4924 = vsel %vm4923, %v4922, %v4917
    %v4925 = vadd.s32 %v4822, 4294967176
    %v4926 = vlaneseq
    %v4927 = vshrl.u32 %v4926, 7
    %v4928 = vsub.s32 %v4925, %v4927
    %v4929 = vrot.slane %v4772, %v4928
    %vm4930 = vcmask 1048512
    %v4931 = vsel %vm4930, %v4929, %v4924
    %v4932 = vlaneseq
    %v4933 = vshrl.u32 %v4932, 7
    %v4934 = vsub.s32 %v4822, %v4933
    %v4935 = vrot.slane %v4773, %v4934
    %v4936 = vlaneseq
    %v4937 = vshrl.u32 %v4936, 7
    %v4938 = vsub.s32 %v4827, %v4937
    %v4939 = vrot.slane %v4774, %v4938
    %v4940 = vsel %vm4832, %v4939, %v4935
    %v4941 = vlaneseq
    %v4942 = vshrl.u32 %v4941, 7
    %v4943 = vsub.s32 %v4834, %v4942
    %v4944 = vrot.slane %v4775, %v4943
    %v4945 = vsel %vm4839, %v4944, %v4940
    %v4946 = vlaneseq
    %v4947 = vshrl.u32 %v4946, 7
    %v4948 = vsub.s32 %v4841, %v4947
    %v4949 = vrot.slane %v4776, %v4948
    %v4950 = vsel %vm4846, %v4949, %v4945
    %v4951 = vlaneseq
    %v4952 = vshrl.u32 %v4951, 7
    %v4953 = vsub.s32 %v4848, %v4952
    %v4954 = vrot.slane %v4777, %v4953
    %v4955 = vsel %vm4853, %v4954, %v4950
    %v4956 = vlaneseq
    %v4957 = vshrl.u32 %v4956, 7
    %v4958 = vsub.s32 %v4855, %v4957
    %v4959 = vrot.slane %v4778, %v4958
    %v4960 = vsel %vm4860, %v4959, %v4955
    %v4961 = vlaneseq
    %v4962 = vshrl.u32 %v4961, 7
    %v4963 = vsub.s32 %v4862, %v4962
    %v4964 = vrot.slane %v4779, %v4963
    %v4965 = vsel %vm4867, %v4964, %v4960
    %v4966 = vlaneseq
    %v4967 = vshrl.u32 %v4966, 7
    %v4968 = vsub.s32 %v4869, %v4967
    %v4969 = vrot.slane %v4780, %v4968
    %v4970 = vsel %vm4874, %v4969, %v4965
    %v4971 = vlaneseq
    %v4972 = vshrl.u32 %v4971, 7
    %v4973 = vsub.s32 %v4876, %v4972
    %v4974 = vrot.slane %v4781, %v4973
    %v4975 = vsel %vm4881, %v4974, %v4970
    %v4976 = vlaneseq
    %v4977 = vshrl.u32 %v4976, 7
    %v4978 = vsub.s32 %v4883, %v4977
    %v4979 = vrot.slane %v4782, %v4978
    %v4980 = vsel %vm4888, %v4979, %v4975
    %v4981 = vlaneseq
    %v4982 = vshrl.u32 %v4981, 7
    %v4983 = vsub.s32 %v4890, %v4982
    %v4984 = vrot.slane %v4783, %v4983
    %v4985 = vsel %vm4895, %v4984, %v4980
    %v4986 = vlaneseq
    %v4987 = vshrl.u32 %v4986, 7
    %v4988 = vsub.s32 %v4897, %v4987
    %v4989 = vrot.slane %v4784, %v4988
    %v4990 = vsel %vm4902, %v4989, %v4985
    %v4991 = vlaneseq
    %v4992 = vshrl.u32 %v4991, 7
    %v4993 = vsub.s32 %v4904, %v4992
    %v4994 = vrot.slane %v4785, %v4993
    %v4995 = vsel %vm4909, %v4994, %v4990
    %v4996 = vlaneseq
    %v4997 = vshrl.u32 %v4996, 7
    %v4998 = vsub.s32 %v4911, %v4997
    %v4999 = vrot.slane %v4786, %v4998
    %v5000 = vsel %vm4916, %v4999, %v4995
    %v5001 = vlaneseq
    %v5002 = vshrl.u32 %v5001, 7
    %v5003 = vsub.s32 %v4918, %v5002
    %v5004 = vrot.slane %v4787, %v5003
    %v5005 = vsel %vm4923, %v5004, %v5000
    %v5006 = vlaneseq
    %v5007 = vshrl.u32 %v5006, 7
    %v5008 = vsub.s32 %v4925, %v5007
    %v5009 = vrot.slane %v4788, %v5008
    %v5010 = vsel %vm4930, %v5009, %v5005
    %v5011 = vlaneseq
    %v5012 = vshrl.u32 %v5011, 7
    %v5013 = vsub.s32 %v4822, %v5012
    %v5014 = vrot.slane %v4789, %v5013
    %v5015 = vlaneseq
    %v5016 = vshrl.u32 %v5015, 7
    %v5017 = vsub.s32 %v4827, %v5016
    %v5018 = vrot.slane %v4790, %v5017
    %v5019 = vsel %vm4832, %v5018, %v5014
    %v5020 = vlaneseq
    %v5021 = vshrl.u32 %v5020, 7
    %v5022 = vsub.s32 %v4834, %v5021
    %v5023 = vrot.slane %v4791, %v5022
    %v5024 = vsel %vm4839, %v5023, %v5019
    %v5025 = vlaneseq
    %v5026 = vshrl.u32 %v5025, 7
    %v5027 = vsub.s32 %v4841, %v5026
    %v5028 = vrot.slane %v4792, %v5027
    %v5029 = vsel %vm4846, %v5028, %v5024
    %v5030 = vlaneseq
    %v5031 = vshrl.u32 %v5030, 7
    %v5032 = vsub.s32 %v4848, %v5031
    %v5033 = vrot.slane %v4793, %v5032
    %v5034 = vsel %vm4853, %v5033, %v5029
    %v5035 = vlaneseq
    %v5036 = vshrl.u32 %v5035, 7
    %v5037 = vsub.s32 %v4855, %v5036
    %v5038 = vrot.slane %v4794, %v5037
    %v5039 = vsel %vm4860, %v5038, %v5034
    %v5040 = vlaneseq
    %v5041 = vshrl.u32 %v5040, 7
    %v5042 = vsub.s32 %v4862, %v5041
    %v5043 = vrot.slane %v4795, %v5042
    %v5044 = vsel %vm4867, %v5043, %v5039
    %v5045 = vlaneseq
    %v5046 = vshrl.u32 %v5045, 7
    %v5047 = vsub.s32 %v4869, %v5046
    %v5048 = vrot.slane %v4796, %v5047
    %v5049 = vsel %vm4874, %v5048, %v5044
    %v5050 = vlaneseq
    %v5051 = vshrl.u32 %v5050, 7
    %v5052 = vsub.s32 %v4876, %v5051
    %v5053 = vrot.slane %v4797, %v5052
    %v5054 = vsel %vm4881, %v5053, %v5049
    %v5055 = vlaneseq
    %v5056 = vshrl.u32 %v5055, 7
    %v5057 = vsub.s32 %v4883, %v5056
    %v5058 = vrot.slane %v4798, %v5057
    %v5059 = vsel %vm4888, %v5058, %v5054
    %v5060 = vlaneseq
    %v5061 = vshrl.u32 %v5060, 7
    %v5062 = vsub.s32 %v4890, %v5061
    %v5063 = vrot.slane %v4799, %v5062
    %v5064 = vsel %vm4895, %v5063, %v5059
    %v5065 = vlaneseq
    %v5066 = vshrl.u32 %v5065, 7
    %v5067 = vsub.s32 %v4897, %v5066
    %v5068 = vrot.slane %v4800, %v5067
    %v5069 = vsel %vm4902, %v5068, %v5064
    %v5070 = vlaneseq
    %v5071 = vshrl.u32 %v5070, 7
    %v5072 = vsub.s32 %v4904, %v5071
    %v5073 = vrot.slane %v4801, %v5072
    %v5074 = vsel %vm4909, %v5073, %v5069
    %v5075 = vlaneseq
    %v5076 = vshrl.u32 %v5075, 7
    %v5077 = vsub.s32 %v4911, %v5076
    %v5078 = vrot.slane %v4802, %v5077
    %v5079 = vsel %vm4916, %v5078, %v5074
    %v5080 = vlaneseq
    %v5081 = vshrl.u32 %v5080, 7
    %v5082 = vsub.s32 %v4918, %v5081
    %v5083 = vrot.slane %v4803, %v5082
    %v5084 = vsel %vm4923, %v5083, %v5079
    %v5085 = vlaneseq
    %v5086 = vshrl.u32 %v5085, 7
    %v5087 = vsub.s32 %v4925, %v5086
    %v5088 = vrot.slane %v4804, %v5087
    %v5089 = vsel %vm4930, %v5088, %v5084
    %v5090 = vlaneseq
    %v5091 = vshrl.u32 %v5090, 7
    %v5092 = vsub.s32 %v4822, %v5091
    %v5093 = vrot.slane %v4805, %v5092
    %v5094 = vlaneseq
    %v5095 = vshrl.u32 %v5094, 7
    %v5096 = vsub.s32 %v4827, %v5095
    %v5097 = vrot.slane %v4806, %v5096
    %v5098 = vsel %vm4832, %v5097, %v5093
    %v5099 = vlaneseq
    %v5100 = vshrl.u32 %v5099, 7
    %v5101 = vsub.s32 %v4834, %v5100
    %v5102 = vrot.slane %v4807, %v5101
    %v5103 = vsel %vm4839, %v5102, %v5098
    %v5104 = vlaneseq
    %v5105 = vshrl.u32 %v5104, 7
    %v5106 = vsub.s32 %v4841, %v5105
    %v5107 = vrot.slane %v4808, %v5106
    %v5108 = vsel %vm4846, %v5107, %v5103
    %v5109 = vlaneseq
    %v5110 = vshrl.u32 %v5109, 7
    %v5111 = vsub.s32 %v4848, %v5110
    %v5112 = vrot.slane %v4809, %v5111
    %v5113 = vsel %vm4853, %v5112, %v5108
    %v5114 = vlaneseq
    %v5115 = vshrl.u32 %v5114, 7
    %v5116 = vsub.s32 %v4855, %v5115
    %v5117 = vrot.slane %v4810, %v5116
    %v5118 = vsel %vm4860, %v5117, %v5113
    %v5119 = vlaneseq
    %v5120 = vshrl.u32 %v5119, 7
    %v5121 = vsub.s32 %v4862, %v5120
    %v5122 = vrot.slane %v4811, %v5121
    %v5123 = vsel %vm4867, %v5122, %v5118
    %v5124 = vlaneseq
    %v5125 = vshrl.u32 %v5124, 7
    %v5126 = vsub.s32 %v4869, %v5125
    %v5127 = vrot.slane %v4812, %v5126
    %v5128 = vsel %vm4874, %v5127, %v5123
    %v5129 = vlaneseq
    %v5130 = vshrl.u32 %v5129, 7
    %v5131 = vsub.s32 %v4876, %v5130
    %v5132 = vrot.slane %v4813, %v5131
    %v5133 = vsel %vm4881, %v5132, %v5128
    %v5134 = vlaneseq
    %v5135 = vshrl.u32 %v5134, 7
    %v5136 = vsub.s32 %v4883, %v5135
    %v5137 = vrot.slane %v4814, %v5136
    %v5138 = vsel %vm4888, %v5137, %v5133
    %v5139 = vlaneseq
    %v5140 = vshrl.u32 %v5139, 7
    %v5141 = vsub.s32 %v4890, %v5140
    %v5142 = vrot.slane %v4815, %v5141
    %v5143 = vsel %vm4895, %v5142, %v5138
    %v5144 = vlaneseq
    %v5145 = vshrl.u32 %v5144, 7
    %v5146 = vsub.s32 %v4897, %v5145
    %v5147 = vrot.slane %v4816, %v5146
    %v5148 = vsel %vm4902, %v5147, %v5143
    %v5149 = vlaneseq
    %v5150 = vshrl.u32 %v5149, 7
    %v5151 = vsub.s32 %v4904, %v5150
    %v5152 = vrot.slane %v4817, %v5151
    %v5153 = vsel %vm4909, %v5152, %v5148
    %v5154 = vlaneseq
    %v5155 = vshrl.u32 %v5154, 7
    %v5156 = vsub.s32 %v4911, %v5155
    %v5157 = vrot.slane %v4818, %v5156
    %v5158 = vsel %vm4916, %v5157, %v5153
    %v5159 = vlaneseq
    %v5160 = vshrl.u32 %v5159, 7
    %v5161 = vsub.s32 %v4918, %v5160
    %v5162 = vrot.slane %v4819, %v5161
    %v5163 = vsel %vm4923, %v5162, %v5158
    %v5164 = vlaneseq
    %v5165 = vshrl.u32 %v5164, 7
    %v5166 = vsub.s32 %v4925, %v5165
    %v5167 = vrot.slane %v4820, %v5166
    %v5168 = vsel %vm4930, %v5167, %v5163
    %vm5169 = vcmask 1041409
    %v5170 = vsel %vm5169, %v5089, %v4931
    %v5171 = vsel %vm5169, %v5168, %v5010
    %v5172 = vpack.c.b16 %v5170, %v5170
    %v5173 = vpack.c.b16 %v5171, %v5171
    %v5208 = vunpack.c.l.b16 %v4681
    %v5209 = vunpack.c.h.b16 %v4681
    %v5210 = vunpack.c.l.b16 %v4682
    %v5211 = vunpack.c.h.b16 %v4682
    %v5212 = vunpack.c.l.b16 %v4683
    %v5213 = vunpack.c.h.b16 %v4683
    %v5214 = vunpack.c.l.b16 %v4684
    %v5215 = vunpack.c.h.b16 %v4684
    %v5216 = vunpack.c.l.b16 %v4685
    %v5217 = vunpack.c.h.b16 %v4685
    %v5218 = vunpack.c.l.b16 %v4686
    %v5219 = vunpack.c.h.b16 %v4686
    %v5220 = vunpack.c.l.b16 %v4687
    %v5221 = vunpack.c.h.b16 %v4687
    %v5222 = vunpack.c.l.b16 %v4688
    %v5223 = vunpack.c.h.b16 %v4688
    %v5224 = vunpack.c.l.b16 %v4689
    %v5225 = vunpack.c.h.b16 %v4689
    %v5226 = vunpack.c.l.b16 %v4690
    %v5227 = vunpack.c.h.b16 %v4690
    %v5228 = vunpack.c.l.b16 %v4691
    %v5229 = vunpack.c.h.b16 %v4691
    %v5230 = vunpack.c.l.b16 %v4692
    %v5231 = vunpack.c.h.b16 %v4692
    %v5232 = vunpack.c.l.b16 %v4693
    %v5233 = vunpack.c.h.b16 %v4693
    %v5234 = vunpack.c.l.b16 %v4694
    %v5235 = vunpack.c.h.b16 %v4694
    %v5236 = vunpack.c.l.b16 %v4695
    %v5237 = vunpack.c.h.b16 %v4695
    %v5238 = vunpack.c.l.b16 %v4696
    %v5239 = vunpack.c.h.b16 %v4696
    %v5240 = vunpack.c.l.b16 %v4697
    %v5241 = vunpack.c.h.b16 %v4697
    %v5242 = vunpack.c.l.b16 %v4698
    %v5243 = vunpack.c.h.b16 %v4698
    %v5244 = vunpack.c.l.b16 %v4699
    %v5245 = vunpack.c.h.b16 %v4699
    %v5246 = vunpack.c.l.b16 %v4700
    %v5247 = vunpack.c.h.b16 %v4700
    %v5248 = vunpack.c.l.b16 %v4701
    %v5249 = vunpack.c.h.b16 %v4701
    %v5250 = vunpack.c.l.b16 %v4702
    %v5251 = vunpack.c.h.b16 %v4702
    %v5252 = vunpack.c.l.b16 %v4703
    %v5253 = vunpack.c.h.b16 %v4703
    %v5254 = vunpack.c.l.b16 %v4704
    %v5255 = vunpack.c.h.b16 %v4704
    %v5256 = vunpack.c.l.b16 %v4705
    %v5257 = vunpack.c.h.b16 %v4705
    %v5258 = vunpack.c.l.b16 %v4706
    %v5259 = vunpack.c.h.b16 %v4706
    %v5260 = vunpack.c.l.b16 %v4707
    %v5261 = vunpack.c.h.b16 %v4707
    %v5262 = vunpack.c.l.b16 %v4708
    %v5263 = vunpack.c.h.b16 %v4708
    %v5264 = vunpack.c.l.b16 %v4709
    %v5265 = vunpack.c.h.b16 %v4709
    %v5266 = vunpack.c.l.b16 %v4710
    %v5267 = vunpack.c.h.b16 %v4710
    %v5268 = vunpack.c.l.b16 %v4711
    %v5269 = vunpack.c.h.b16 %v4711
    %v5270 = vunpack.c.l.b16 %v4712
    %v5271 = vunpack.c.h.b16 %v4712
    %v5272 = vpack.c.b16 %v5210, %v5208
    %v5273 = vpack.c.b16 %v5211, %v5209
    %v5274 = vpack.c.b16 %v5214, %v5212
    %v5275 = vpack.c.b16 %v5215, %v5213
    %v5276 = vpack.c.b16 %v5218, %v5216
    %v5277 = vpack.c.b16 %v5219, %v5217
    %v5278 = vpack.c.b16 %v5222, %v5220
    %v5279 = vpack.c.b16 %v5223, %v5221
    %v5280 = vpack.c.b16 %v5226, %v5224
    %v5281 = vpack.c.b16 %v5227, %v5225
    %v5282 = vpack.c.b16 %v5230, %v5228
    %v5283 = vpack.c.b16 %v5231, %v5229
    %v5284 = vpack.c.b16 %v5234, %v5232
    %v5285 = vpack.c.b16 %v5235, %v5233
    %v5286 = vpack.c.b16 %v5238, %v5236
    %v5287 = vpack.c.b16 %v5239, %v5237
    %v5288 = vpack.c.b16 %v5242, %v5240
    %v5289 = vpack.c.b16 %v5243, %v5241
    %v5290 = vpack.c.b16 %v5246, %v5244
    %v5291 = vpack.c.b16 %v5247, %v5245
    %v5292 = vpack.c.b16 %v5250, %v5248
    %v5293 = vpack.c.b16 %v5251, %v5249
    %v5294 = vpack.c.b16 %v5254, %v5252
    %v5295 = vpack.c.b16 %v5255, %v5253
    %v5296 = vpack.c.b16 %v5258, %v5256
    %v5297 = vpack.c.b16 %v5259, %v5257
    %v5298 = vpack.c.b16 %v5262, %v5260
    %v5299 = vpack.c.b16 %v5263, %v5261
    %v5300 = vpack.c.b16 %v5266, %v5264
    %v5301 = vpack.c.b16 %v5267, %v5265
    %v5302 = vpack.c.b16 %v5270, %v5268
    %v5303 = vpack.c.b16 %v5271, %v5269
    %5336 = vmatprep.subr.bf16.mxu0 %v5273
    %5337 = vmatpush1.bf16.msra.mxu0 %v5272
    %5338 = vmatprep.subr.bf16.mxu0 %v5275
    %5339 = vmatpush1.bf16.msra.mxu0 %v5274
    %5340 = vmatprep.subr.bf16.mxu0 %v5277
    %5341 = vmatpush1.bf16.msra.mxu0 %v5276
    %5342 = vmatprep.subr.bf16.mxu0 %v5279
    %5343 = vmatpush1.bf16.msra.mxu0 %v5278
    %5344 = vmatprep.subr.bf16.mxu0 %v5281
    %5345 = vmatpush1.bf16.msra.mxu0 %v5280
    %5346 = vmatprep.subr.bf16.mxu0 %v5283
    %5347 = vmatpush1.bf16.msra.mxu0 %v5282
    %5348 = vmatprep.subr.bf16.mxu0 %v5285
    %5349 = vmatpush1.bf16.msra.mxu0 %v5284
    %5350 = vmatprep.subr.bf16.mxu0 %v5287
    %5351 = vmatpush1.bf16.msra.mxu0 %v5286
    %5352 = vmatprep.subr.bf16.mxu0 %v5289
    %5353 = vmatpush1.bf16.msra.mxu0 %v5288
    %5354 = vmatprep.subr.bf16.mxu0 %v5291
    %5355 = vmatpush1.bf16.msra.mxu0 %v5290
    %5356 = vmatprep.subr.bf16.mxu0 %v5293
    %5357 = vmatpush1.bf16.msra.mxu0 %v5292
    %5358 = vmatprep.subr.bf16.mxu0 %v5295
    %5359 = vmatpush1.bf16.msra.mxu0 %v5294
    %5360 = vmatprep.subr.bf16.mxu0 %v5297
    %5361 = vmatpush1.bf16.msra.mxu0 %v5296
    %5362 = vmatprep.subr.bf16.mxu0 %v5299
    %5363 = vmatpush1.bf16.msra.mxu0 %v5298
    %5364 = vmatprep.subr.bf16.mxu0 %v5301
    %5365 = vmatpush1.bf16.msra.mxu0 %v5300
    %5366 = vmatprep.subr.bf16.mxu0 %v5303
    %5367 = vmatpush1.bf16.msra.mxu0 %v5302
    %5368 = vmatprep.mubr.bf16.mxu0 %v5173
    %5369 = vmatmul.mubr.bf16.gmra.mrb[0].mxu0 %v5172
    %v5370 = vpop.f32.mrb[0].mxu0
    %v5371 = vadd.f32 %v4718, %v5370
    %v5372 = vpop.f32.mrb[0].mxu0
    %v5373 = vadd.f32 %v4722, %v5372
    %v5374 = vpop.f32.mrb[0].mxu0
    %v5375 = vpop.f32.mrb[0].mxu0
    %5376 = vdwg.mxu0
    %vm5377 = vcmp.gt.f32.partialorder %v5371, 0.0
    %vm5378 = vcmp.gt.f32.partialorder %v5373, 0.0
    %v5379 = vmin.f32 %v5371, 0.0
    %v5380 = vmin.f32 %v5373, 0.0
    %v5381 = vmul.f32 %v5379, 1.442695
    %v5382 = vpow.pop %v5381
    %v5383 = vmul.f32 %v5380, 1.442695
    %v5384 = vpow.pop %v5383
    %v5385 = vsub.f32 %v5382, 1.0
    %v5386 = vsub.f32 %v5384, 1.0
    %v5387 = vsel %vm5377, %v5371, %v5385
    %v5388 = vsel %vm5378, %v5373, %v5386
    %v5389 = vpack.c.bf16 %v5387, %v5387
    %v5390 = vpack.c.bf16 %v5388, %v5388
    %v5391 = vld [vmem:[%s5] sm:$0xf]
    %v5392 = vld [vmem:[%s5 + $0x4] sm:$0xf]
    %v5393 = vld [vmem:[%s5 + $0x8] sm:$0xf]
    %v5394 = vld [vmem:[%s5 + $0xc] sm:$0xf]
    %v5395 = vld [vmem:[%s5 + $0x10] sm:$0xf]
    %v5396 = vld [vmem:[%s5 + $0x14] sm:$0xf]
    %v5397 = vld [vmem:[%s5 + $0x18] sm:$0xf]
    %v5398 = vld [vmem:[%s5 + $0x1c] sm:$0xf]
    %v5399 = vld [vmem:[%s5 + $0x20] sm:$0xf]
    %v5400 = vld [vmem:[%s5 + $0x24] sm:$0xf]
    %v5401 = vld [vmem:[%s5 + $0x28] sm:$0xf]
    %v5402 = vld [vmem:[%s5 + $0x2c] sm:$0xf]
    %v5403 = vld [vmem:[%s5 + $0x30] sm:$0xf]
    %v5404 = vld [vmem:[%s5 + $0x34] sm:$0xf]
    %v5405 = vld [vmem:[%s5 + $0x38] sm:$0xf]
    %v5406 = vld [vmem:[%s5 + $0x3c] sm:$0xf]
    %v5407 = vld [vmem:[%s5 + $0x40] sm:$0xf]
    %v5408 = vld [vmem:[%s5 + $0x44] sm:$0xf]
    %v5409 = vld [vmem:[%s5 + $0x48] sm:$0xf]
    %v5410 = vld [vmem:[%s5 + $0x4c] sm:$0xf]
    %v5411 = vld [vmem:[%s5 + $0x50] sm:$0xf]
    %v5412 = vld [vmem:[%s5 + $0x54] sm:$0xf]
    %v5413 = vld [vmem:[%s5 + $0x58] sm:$0xf]
    %v5414 = vld [vmem:[%s5 + $0x5c] sm:$0xf]
    %v5415 = vld [vmem:[%s5 + $0x60] sm:$0xf]
    %v5416 = vld [vmem:[%s5 + $0x64] sm:$0xf]
    %v5417 = vld [vmem:[%s5 + $0x68] sm:$0xf]
    %v5418 = vld [vmem:[%s5 + $0x6c] sm:$0xf]
    %v5419 = vld [vmem:[%s5 + $0x70] sm:$0xf]
    %v5420 = vld [vmem:[%s5 + $0x74] sm:$0xf]
    %v5421 = vld [vmem:[%s5 + $0x78] sm:$0xf]
    %v5422 = vld [vmem:[%s5 + $0x7c] sm:$0xf]
    %v5423 = vld [vmem:[%s6] sm:$0x1]
    %v5425 = vlaneseq
    %v5426 = vshrl.u32 %v5425, 7
    %v5427 = vsub.s32 0, %v5426
    %v5428 = vrot.slane %v5423, %v5427
    %v5462 = vunpack.c.l.b16 %v5391
    %v5463 = vunpack.c.l.b16 %v5392
    %v5464 = vunpack.c.l.b16 %v5393
    %v5465 = vunpack.c.l.b16 %v5394
    %v5466 = vunpack.c.l.b16 %v5395
    %v5467 = vunpack.c.l.b16 %v5396
    %v5468 = vunpack.c.l.b16 %v5397
    %v5469 = vunpack.c.l.b16 %v5398
    %v5470 = vunpack.c.l.b16 %v5399
    %v5471 = vunpack.c.l.b16 %v5400
    %v5472 = vunpack.c.l.b16 %v5401
    %v5473 = vunpack.c.l.b16 %v5402
    %v5474 = vunpack.c.l.b16 %v5403
    %v5475 = vunpack.c.l.b16 %v5404
    %v5476 = vunpack.c.l.b16 %v5405
    %v5477 = vunpack.c.l.b16 %v5406
    %v5478 = vunpack.c.l.b16 %v5407
    %v5479 = vunpack.c.l.b16 %v5408
    %v5480 = vunpack.c.l.b16 %v5409
    %v5481 = vunpack.c.l.b16 %v5410
    %v5482 = vunpack.c.l.b16 %v5411
    %v5483 = vunpack.c.l.b16 %v5412
    %v5484 = vunpack.c.l.b16 %v5413
    %v5485 = vunpack.c.l.b16 %v5414
    %v5486 = vunpack.c.l.b16 %v5415
    %v5487 = vunpack.c.l.b16 %v5416
    %v5488 = vunpack.c.l.b16 %v5417
    %v5489 = vunpack.c.l.b16 %v5418
    %v5490 = vunpack.c.l.b16 %v5419
    %v5491 = vunpack.c.l.b16 %v5420
    %v5492 = vunpack.c.l.b16 %v5421
    %v5493 = vunpack.c.l.b16 %v5422
    %v5494 = vpack.c.b16 %v5463, %v5462
    %v5495 = vpack.c.b16 %v5465, %v5464
    %v5496 = vpack.c.b16 %v5467, %v5466
    %v5497 = vpack.c.b16 %v5469, %v5468
    %v5498 = vpack.c.b16 %v5471, %v5470
    %v5499 = vpack.c.b16 %v5473, %v5472
    %v5500 = vpack.c.b16 %v5475, %v5474
    %v5501 = vpack.c.b16 %v5477, %v5476
    %v5502 = vpack.c.b16 %v5479, %v5478
    %v5503 = vpack.c.b16 %v5481, %v5480
    %v5504 = vpack.c.b16 %v5483, %v5482
    %v5505 = vpack.c.b16 %v5485, %v5484
    %v5506 = vpack.c.b16 %v5487, %v5486
    %v5507 = vpack.c.b16 %v5489, %v5488
    %v5508 = vpack.c.b16 %v5491, %v5490
    %v5509 = vpack.c.b16 %v5493, %v5492
    %5526 = vmatprep.subr.bf16.mxu0 0
    %5527 = vmatpush1.bf16.msra.mxu0 %v5494
    %5528 = vmatprep.subr.bf16.mxu0 0
    %5529 = vmatpush1.bf16.msra.mxu0 %v5495
    %5530 = vmatprep.subr.bf16.mxu0 0
    %5531 = vmatpush1.bf16.msra.mxu0 %v5496
    %5532 = vmatprep.subr.bf16.mxu0 0
    %5533 = vmatpush1.bf16.msra.mxu0 %v5497
    %5534 = vmatprep.subr.bf16.mxu0 0
    %5535 = vmatpush1.bf16.msra.mxu0 %v5498
    %5536 = vmatprep.subr.bf16.mxu0 0
    %5537 = vmatpush1.bf16.msra.mxu0 %v5499
    %5538 = vmatprep.subr.bf16.mxu0 0
    %5539 = vmatpush1.bf16.msra.mxu0 %v5500
    %5540 = vmatprep.subr.bf16.mxu0 0
    %5541 = vmatpush1.bf16.msra.mxu0 %v5501
    %5542 = vmatprep.subr.bf16.mxu0 0
    %5543 = vmatpush1.bf16.msra.mxu0 %v5502
    %5544 = vmatprep.subr.bf16.mxu0 0
    %5545 = vmatpush1.bf16.msra.mxu0 %v5503
    %5546 = vmatprep.subr.bf16.mxu0 0
    %5547 = vmatpush1.bf16.msra.mxu0 %v5504
    %5548 = vmatprep.subr.bf16.mxu0 0
    %5549 = vmatpush1.bf16.msra.mxu0 %v5505
    %5550 = vmatprep.subr.bf16.mxu0 0
    %5551 = vmatpush1.bf16.msra.mxu0 %v5506
    %5552 = vmatprep.subr.bf16.mxu0 0
    %5553 = vmatpush1.bf16.msra.mxu0 %v5507
    %5554 = vmatprep.subr.bf16.mxu0 0
    %5555 = vmatpush1.bf16.msra.mxu0 %v5508
    %5556 = vmatprep.subr.bf16.mxu0 0
    %5557 = vmatpush1.bf16.msra.mxu0 %v5509
    %5558 = vmatprep.mubr.bf16.mxu0 %v5390
    %5559 = vmatmul.mubr.bf16.gmra.mrb[0].mxu0 %v5389
    %v5560 = vpop.f32.mrb[0].mxu0
    %v5561 = vadd.f32 %v5428, %v5560
    %v5562 = vpop.f32.mrb[0].mxu0
    %v5563 = vpop.f32.mrb[0].mxu0
    %v5564 = vpop.f32.mrb[0].mxu0
    %5565 = vdwg.mxu0
    %vm5566 = vcmask 25600
    %v5567 = vsel %vm5566, %v5561, -inf
    %5568 = vmax.xlane.f32.xlu0 %v5567
    %v5569 = vpop.xlane.xlu0 %5568
    %v5570 = vsub.f32 %v5561, %v5569
    %v5571 = vmul.f32 %v5570, 1.442695
    %v5572 = vpow.pop %v5571
    %v5573 = vsel %vm5566, %v5572, 0.0
    %5574 = vadd.xlane.f32.xlu0 %v5573
    %v5575 = vpop.xlane.xlu0 %5574
    %v5576 = vlog2.pop %v5575
    %v5577 = vmul.f32 %v5576, 0.6931472
    %v5578 = vsub.f32 %v5570, %v5577
    %5579 = vst.msk [vmem:[#allocation7] sm:$0x3] %vm5566, %v5578
    // Predicated region
    $region38: #{tpu_custom_call.1} parent=1 // pred_check
      _
    $region39: #{tpu_custom_call.1} parent=1 // pred_check_branch
      %5581 = sbr.rel (0) target = $region41
    $region40: #{tpu_custom_call.1} parent=1 // pred_region
      %s5583 = ssub.s32 32, 32
      %5584 = vsyncadd [#allocation4], %s5583
      %s5586 = sshll.u32 [#allocation7], 4
      %s5587 = int_to_ptr.vmem [resolvable:$true] %s5586
      %5589 = dma.vmem_to_hbm [thread:$0]  %s5587, 32, %s7, [#allocation4]
    $region41: #{tpu_custom_call.1} parent=1 // pred_fallthru
      _
    // Predicated region
    $region42: #{tpu_custom_call.1} parent=1 // pred_check
      _
    $region43: #{tpu_custom_call.1} parent=1 // pred_check_branch
      %5591 = sbr.rel (0) target = $region45
    $region44: #{tpu_custom_call.1} parent=1 // pred_region
      %5592 = dma.done [#allocation4], 32
    $region45: #{tpu_custom_call.1} parent=1 // pred_fallthru
      _
    %5593 = vsyncpa [#allocation3], 1
    %5594 = vsyncpa [#allocation6], 1
    %5595 = vsyncpa [#allocation4], 1

</llo_original>
